<compile_context>
chip_gen: v5e
topology: v5e:2x2
jax: 0.10.0
libtpu: 0.0.40
codegen_flags: <defaults>
</compile_context>

<pallas_src>
import functools

import jax
import jax.numpy as jnp
from jax import lax
from jax.experimental import pallas as pl
from jax.experimental.pallas import tpu as pltpu

LANE = 128
VMEM_BUDGET = 48 * 1024 * 1024   # conservative vs v7x's 64 MiB physical VMEM


def _round_up(n, m):
    return ((n + m - 1) // m) * m


def _pad2(x, rows, cols):
    return jnp.pad(x, ((0, rows - x.shape[0]), (0, cols - x.shape[1])))


# ---------------------------------------------------------------------------
# Fused LGNNCore kernel: one grid step == one full core (g-core / lg-core)
# ---------------------------------------------------------------------------
def _lgnn_kernel(feat_a_ref, feat_b_ref, deg_ref, adj_ref, pm_ref,
                 w_ref, b_ref, gamma_ref, beta_ref, out_ref, *,
                 radius, in_feats, half, n_rows0, n_rows1):
    c = pl.program_id(0)                       # 0 = g-core, 1 = lg-core
    n_rows = jnp.where(c == 0, jnp.int32(n_rows0), jnp.int32(n_rows1))
    inv_n = jnp.where(c == 0, jnp.float32(1.0 / n_rows0), jnp.float32(1.0 / n_rows1))

    m, of = out_ref.shape
    fa = feat_a_ref[...]                       # (M, F) f32
    fb = feat_b_ref[...]                       # (M, F) f32
    deg = deg_ref[...]                         # (M, 1) f32
    adj = adj_ref[...]                         # (M, M) bf16, 0/1 exact
    pm = pm_ref[...]                           # (M, M) bf16, 0/1 exact (pm or pm^T)

    # Hop chain z_k = A^(2^k) @ feat_a: bf16 x bf16 MXU path, f32 accumulation.
    # z is carried in f32 between hops; only the dot operand is recast to bf16.
    z = jnp.dot(adj, fa.astype(jnp.bfloat16), preferred_element_type=jnp.float32)
    z_list = [z]
    for i in range(radius - 1):
        for _ in range(2 ** i):
            z = jnp.dot(adj, z.astype(jnp.bfloat16), preferred_element_type=jnp.float32)
        z_list.append(z)

    # Fuse operand: pm_pd @ feat_b (g core) / pm_pd^T @ feat_b (lg core).
    pmfb = jnp.dot(pm, fb.astype(jnp.bfloat16), preferred_element_type=jnp.float32)

    # Projections: per-operand dots against the stacked weights (order must match the
    # wrapper's weight stacking); all biases were pre-summed into b_ref.
    ops = [fa, deg * fa, pmfb] + z_list
    r = jnp.zeros((m, of), jnp.float32)
    for j, op in enumerate(ops):
        wj = w_ref[j * in_feats:(j + 1) * in_feats, :]
        r = r + jnp.dot(op, wj, preferred_element_type=jnp.float32)
    r = r + b_ref[...]

    # cat(result[:, :half], relu(result[:, half:])) via a lane mask (no concat).
    col = lax.broadcasted_iota(jnp.int32, (m, of), 1)
    r = jnp.where(col < half, r, jnp.maximum(r, 0.0))

    # BatchNorm1d (training mode) with padded rows masked out of the statistics.
    # Two-pass (mean, then centered sum of squares) avoids E[x^2]-E[x]^2 cancellation.
    row = lax.broadcasted_iota(jnp.int32, (m, of), 0)
    valid = (row < n_rows).astype(jnp.float32)
    mean = jnp.sum(r * valid, axis=0, keepdims=True) * inv_n
    centered = (r - mean) * valid
    var = jnp.sum(centered * centered, axis=0, keepdims=True) * inv_n
    scale = gamma_ref[...] * lax.rsqrt(var + 1e-5)
    out_ref[...] = centered * scale + beta_ref[...]


# ---------------------------------------------------------------------------
# Wrapper: stack the two cores along a leading "parallel" grid axis
# ---------------------------------------------------------------------------
def _pack_params(p, radius, out_feats, of_pad):
    # Row order must match the kernel's operand order [feat, deg*feat, pmfb, z_0..z_{r-1}].
    ws = [p["w_prev"], p["w_deg"], p["w_fuse"]] + [p["w_rad"][k] for k in range(radius)]
    w = jnp.concatenate(ws, axis=0)                                   # [(3+r)*F, out]
    w = jnp.pad(w, ((0, 0), (0, of_pad - out_feats)))
    b = p["b_prev"] + p["b_deg"] + p["b_fuse"] + jnp.sum(p["b_rad"], axis=0)
    b = jnp.pad(b, ((0, 0), (0, of_pad - out_feats)))
    gamma = jnp.pad(p["bn_w"], ((0, 0), (0, of_pad - out_feats)))
    beta = jnp.pad(p["bn_b"], ((0, 0), (0, of_pad - out_feats)))
    return w, b, gamma, beta


def lgnn_layer(x, lg_x, deg_g, deg_lg, adj_g, adj_lg, pm_pd, g_params, lg_params,
               *, radius, out_feats):
    n, f = x.shape
    e = lg_x.shape[0]
    m = _round_up(max(n, e), LANE)          # common lane-dense padded node count
    of_pad = _round_up(out_feats, LANE)
    pk = (3 + radius) * f

    # Stack the two cores along axis 0 (core 0 = g, core 1 = lg).  0/1-valued adjacency /
    # incidence operands are exact in bf16 -> halves the dominant M^2 HBM stream and
    # enables the fast bf16 MXU path.
    feat_a = jnp.stack([_pad2(x, m, f), _pad2(lg_x, m, f)])
    feat_b = jnp.stack([_pad2(lg_x, m, f), _pad2(x, m, f)])
    deg = jnp.stack([_pad2(deg_g, m, 1), _pad2(deg_lg, m, 1)])
    adj = jnp.stack([_pad2(adj_g, m, m), _pad2(adj_lg, m, m)]).astype(jnp.bfloat16)
    pm = jnp.stack([_pad2(pm_pd, m, m), _pad2(pm_pd.T, m, m)]).astype(jnp.bfloat16)

    packed = [_pack_params(p, radius, out_feats, of_pad) for p in (g_params, lg_params)]
    w = jnp.stack([pp[0] for pp in packed])
    b = jnp.stack([pp[1] for pp in packed])
    gamma = jnp.stack([pp[2] for pp in packed])
    beta = jnp.stack([pp[3] for pp in packed])

    # Approximate per-call VMEM footprint: double-buffered input blocks + output blocks
    # + headroom for in-kernel temporaries (z chain, pmfb, pre-BN result).
    vmem_need = (2 * (2 * m * f * 4 + m * LANE * 4 + 2 * m * m * 2
                      + pk * of_pad * 4 + 3 * 8 * of_pad * 4 + m * of_pad * 4)
                 + (4 + radius) * m * max(of_pad, LANE) * 4)
    if vmem_need > VMEM_BUDGET:
        raise NotImplementedError(
            "TODO(synk): graph exceeds the whole-graph VMEM-resident budget; add a "
            "row/K-tiled streaming fallback for padded node counts beyond a few thousand.")

    out = pl.pallas_call(
        functools.partial(_lgnn_kernel, radius=radius, in_feats=f,
                          half=out_feats // 2, n_rows0=n, n_rows1=e),
        out_shape=jax.ShapeDtypeStruct((2, m, of_pad), jnp.float32),
        grid=(2,),   # one grid step per LGNNCore; "parallel" -> one TensorCore each on v7x
        in_specs=[
            pl.BlockSpec((None, m, f), lambda c: (c, 0, 0)),        # feat_a
            pl.BlockSpec((None, m, f), lambda c: (c, 0, 0)),        # feat_b
            pl.BlockSpec((None, m, 1), lambda c: (c, 0, 0)),        # deg
            pl.BlockSpec((None, m, m), lambda c: (c, 0, 0)),        # adjacency (bf16)
            pl.BlockSpec((None, m, m), lambda c: (c, 0, 0)),        # pm_pd / pm_pd^T (bf16)
            pl.BlockSpec((None, pk, of_pad), lambda c: (c, 0, 0)),  # stacked weights
            pl.BlockSpec((None, 1, of_pad), lambda c: (c, 0, 0)),   # folded bias
            pl.BlockSpec((None, 1, of_pad), lambda c: (c, 0, 0)),   # BN gamma
            pl.BlockSpec((None, 1, of_pad), lambda c: (c, 0, 0)),   # BN beta
        ],
        out_specs=pl.BlockSpec((None, m, of_pad), lambda c: (c, 0, 0)),
        compiler_params=pltpu.CompilerParams(
            dimension_semantics=("parallel",),
            vmem_limit_bytes=VMEM_BUDGET),
    )(feat_a, feat_b, deg, adj, pm, w, b, gamma, beta)

    return out[0, :n, :out_feats], out[1, :e, :out_feats]


# ---------------------------------------------------------------------------
# Parameters + pure-JAX reference
# ---------------------------------------------------------------------------
def init_core_params(key, in_feats, out_feats, radius):
    ks = jax.random.split(key, 8)
    bound = 1.0 / float(in_feats) ** 0.5

    def u(k, shape):
        return jax.random.uniform(k, shape, jnp.float32, -bound, bound)

    return {
        # nn.Linear weights are [out, in]; store transposed [in, out] for x @ W.
        "w_prev": u(ks[0], (in_feats, out_feats)),
        "b_prev": u(ks[1], (1, out_feats)),
        "w_deg": u(ks[2], (in_feats, out_feats)),
        "b_deg": u(ks[3], (1, out_feats)),
        "w_rad": u(ks[4], (radius, in_feats, out_feats)),
        "b_rad": u(ks[5], (radius, 1, out_feats)),
        "w_fuse": u(ks[6], (in_feats, out_feats)),
        "b_fuse": u(ks[7], (1, out_feats)),
        "bn_w": jnp.ones((1, out_feats), jnp.float32),
        "bn_b": jnp.zeros((1, out_feats), jnp.float32),
    }


def lgnn_core_ref(feat_a, feat_b, deg, adj, pm_pd, p, *, radius, out_feats):
    mm = functools.partial(jnp.matmul, precision=jax.lax.Precision.HIGHEST)
    prev = mm(feat_a, p["w_prev"]) + p["b_prev"]
    degp = mm(deg * feat_a, p["w_deg"]) + p["b_deg"]
    z = mm(adj, feat_a)
    rad = mm(z, p["w_rad"][0]) + p["b_rad"][0]
    for i in range(radius - 1):
        for _ in range(2 ** i):
            z = mm(adj, z)
        rad = rad + mm(z, p["w_rad"][i + 1]) + p["b_rad"][i + 1]
    fuse = mm(mm(pm_pd, feat_b), p["w_fuse"]) + p["b_fuse"]
    r = prev + degp + rad + fuse
    half = out_feats // 2
    r = jnp.concatenate([r[:, :half], jnp.maximum(r[:, half:], 0.0)], axis=1)
    mean = jnp.mean(r, axis=0, keepdims=True)
    var = jnp.mean((r - mean) ** 2, axis=0, keepdims=True)
    return (r - mean) * lax.rsqrt(var + 1e-5) * p["bn_w"] + p["bn_b"]


if __name__ == "__main__":
    in_feats, out_feats, radius = 16, 16, 2
    N, E = 200, 336     # N graph nodes; E line-graph nodes (edges of g)

    key = jax.random.PRNGKey(0)
    k_x, k_lgx, k_ag, k_alg, k_pm, k_pg, k_plg = jax.random.split(key, 7)

    x = jax.random.normal(k_x, (N, in_feats), jnp.float32)
    lg_x = jax.random.normal(k_lgx, (E, in_feats), jnp.float32)

    # Synthetic dense adjacency matrices (symmetric, zero diagonal).
    ag = (jax.random.uniform(k_ag, (N, N)) > 0.90).astype(jnp.float32)
    adj_g = jnp.triu(ag, 1) + jnp.triu(ag, 1).T
    alg = (jax.random.uniform(k_alg, (E, E)) > 0.93).astype(jnp.float32)
    adj_lg = jnp.triu(alg, 1) + jnp.triu(alg, 1).T

    deg_g = jnp.sum(adj_g, axis=1, keepdims=True)
    deg_lg = jnp.sum(adj_lg, axis=1, keepdims=True)

    # Incidence-like P_m - P_d matrix, shape [N, E] (0/1 valued for the demo).
    pm_pd = (jax.random.uniform(k_pm, (N, E)) > 0.95).astype(jnp.float32)

    g_params = init_core_params(k_pg, in_feats, out_feats, radius)
    lg_params = init_core_params(k_plg, in_feats, out_feats, radius)

    layer = jax.jit(functools.partial(lgnn_layer, radius=radius, out_feats=out_feats))
    next_x, next_lg_x = layer(x, lg_x, deg_g, deg_lg, adj_g, adj_lg, pm_pd,
                              g_params, lg_params)
    jax.block_until_ready((next_x, next_lg_x))
    assert next_x.shape == (N, out_feats) and next_lg_x.shape == (E, out_feats)

    # Pure-JAX reference check (same forward semantics as the PyTorch module).
    # Tolerance accounts for the bf16 MXU propagation path vs. the HIGHEST-precision ref.
    ref_x = lgnn_core_ref(x, lg_x, deg_g, adj_g, pm_pd, g_params,
                          radius=radius, out_feats=out_feats)
    ref_lg = lgnn_core_ref(lg_x, x, deg_lg, adj_lg, pm_pd.T, lg_params,
                           radius=radius, out_feats=out_feats)
    assert jnp.allclose(next_x, ref_x, rtol=2e-2, atol=5e-2), \
        float(jnp.max(jnp.abs(next_x - ref_x)))
    assert jnp.allclose(next_lg_x, ref_lg, rtol=2e-2, atol=5e-2), \
        float(jnp.max(jnp.abs(next_lg_x - ref_lg)))

    print("KERNEL_OK")
</pallas_src>

<mosaic_0001>
module attributes {stable_mosaic.version = 11 : i64} {
  func.func @_lgnn_kernel(%arg0: i32, %arg1: memref<1x384x16xf32, #tpu.memory_space<vmem>>, %arg2: memref<1x384x16xf32, #tpu.memory_space<vmem>>, %arg3: memref<1x384x1xf32, #tpu.memory_space<vmem>>, %arg4: memref<1x384x384xbf16, #tpu.memory_space<vmem>>, %arg5: memref<1x384x384xbf16, #tpu.memory_space<vmem>>, %arg6: memref<1x80x128xf32, #tpu.memory_space<vmem>>, %arg7: memref<1x1x128xf32, #tpu.memory_space<vmem>>, %arg8: memref<1x1x128xf32, #tpu.memory_space<vmem>>, %arg9: memref<1x1x128xf32, #tpu.memory_space<vmem>>, %arg10: memref<1x384x128xf32, #tpu.memory_space<vmem>>) attributes {dimension_semantics = [#tpu.dimension_semantics<parallel>], iteration_bounds = array<i64: 2>, scalar_prefetch = 0 : i64, scratch_operands = 0 : i64, tpu.core_type = #tpu.core_type<tc>, window_params = [{transform_indices = @transform_0, window_bounds = array<i64: 1, 384, 16>}, {transform_indices = @transform_1, window_bounds = array<i64: 1, 384, 16>}, {transform_indices = @transform_2, window_bounds = array<i64: 1, 384, 1>}, {transform_indices = @transform_3, window_bounds = array<i64: 1, 384, 384>}, {transform_indices = @transform_4, window_bounds = array<i64: 1, 384, 384>}, {transform_indices = @transform_5, window_bounds = array<i64: 1, 80, 128>}, {transform_indices = @transform_6, window_bounds = array<i64: 1, 1, 128>}, {transform_indices = @transform_7, window_bounds = array<i64: 1, 1, 128>}, {transform_indices = @transform_8, window_bounds = array<i64: 1, 1, 128>}, {transform_indices = @transform_9, window_bounds = array<i64: 1, 384, 128>}]} {
    %c0_i32 = arith.constant 0 : i32
    %0 = arith.cmpi eq, %arg0, %c0_i32 : i32
    %c200_i32 = arith.constant 200 : i32
    %c336_i32 = arith.constant 336 : i32
    %1 = arith.select %0, %c200_i32, %c336_i32 : i32
    %c0_i32_0 = arith.constant 0 : i32
    %2 = arith.cmpi eq, %arg0, %c0_i32_0 : i32
    %cst = arith.constant 5.000000e-03 : f32
    %cst_1 = arith.constant 0.00297619053 : f32
    %3 = arith.select %2, %cst, %cst_1 : f32
    %c0 = arith.constant 0 : index
    %c0_2 = arith.constant 0 : index
    %c0_3 = arith.constant 0 : index
    %4 = vector.load %arg1[%c0, %c0_2, %c0_3] : memref<1x384x16xf32, #tpu.memory_space<vmem>>, vector<1x384x16xf32>
    %5 = vector.shape_cast %4 : vector<1x384x16xf32> to vector<384x16xf32>
    %c0_4 = arith.constant 0 : index
    %c0_5 = arith.constant 0 : index
    %c0_6 = arith.constant 0 : index
    %6 = vector.load %arg2[%c0_4, %c0_5, %c0_6] : memref<1x384x16xf32, #tpu.memory_space<vmem>>, vector<1x384x16xf32>
    %7 = vector.shape_cast %6 : vector<1x384x16xf32> to vector<384x16xf32>
    %c0_7 = arith.constant 0 : index
    %c0_8 = arith.constant 0 : index
    %c0_9 = arith.constant 0 : index
    %8 = vector.load %arg3[%c0_7, %c0_8, %c0_9] : memref<1x384x1xf32, #tpu.memory_space<vmem>>, vector<1x384x1xf32>
    %9 = vector.shape_cast %8 : vector<1x384x1xf32> to vector<384x1xf32>
    %c0_10 = arith.constant 0 : index
    %c0_11 = arith.constant 0 : index
    %c0_12 = arith.constant 0 : index
    %10 = vector.load %arg4[%c0_10, %c0_11, %c0_12] : memref<1x384x384xbf16, #tpu.memory_space<vmem>>, vector<1x384x384xbf16>
    %11 = vector.shape_cast %10 : vector<1x384x384xbf16> to vector<384x384xbf16>
    %c0_13 = arith.constant 0 : index
    %c0_14 = arith.constant 0 : index
    %c0_15 = arith.constant 0 : index
    %12 = vector.load %arg5[%c0_13, %c0_14, %c0_15] : memref<1x384x384xbf16, #tpu.memory_space<vmem>>, vector<1x384x384xbf16>
    %13 = vector.shape_cast %12 : vector<1x384x384xbf16> to vector<384x384xbf16>
    %14 = arith.truncf %5 : vector<384x16xf32> to vector<384x16xbf16>
    %cst_16 = arith.constant dense<0.000000e+00> : vector<384x16xf32>
    %15 = tpu.matmul %11, %14, %cst_16 {dimension_numbers = #tpu.dot_dimension_numbers<[1], [0], [0], [1], [0, 0, 1, 1], [], []>} : vector<384x384xbf16>, vector<384x16xbf16>, vector<384x16xf32> -> vector<384x16xf32>
    %16 = arith.truncf %15 : vector<384x16xf32> to vector<384x16xbf16>
    %cst_17 = arith.constant dense<0.000000e+00> : vector<384x16xf32>
    %17 = tpu.matmul %11, %16, %cst_17 {dimension_numbers = #tpu.dot_dimension_numbers<[1], [0], [0], [1], [0, 0, 1, 1], [], []>} : vector<384x384xbf16>, vector<384x16xbf16>, vector<384x16xf32> -> vector<384x16xf32>
    %18 = arith.truncf %7 : vector<384x16xf32> to vector<384x16xbf16>
    %cst_18 = arith.constant dense<0.000000e+00> : vector<384x16xf32>
    %19 = tpu.matmul %13, %18, %cst_18 {dimension_numbers = #tpu.dot_dimension_numbers<[1], [0], [0], [1], [0, 0, 1, 1], [], []>} : vector<384x384xbf16>, vector<384x16xbf16>, vector<384x16xf32> -> vector<384x16xf32>
    %20 = vector.broadcast %9 : vector<384x1xf32> to vector<384x16xf32>
    %21 = arith.mulf %20, %5 : vector<384x16xf32>
    %cst_19 = arith.constant 0.000000e+00 : f32
    %22 = vector.broadcast %cst_19 : f32 to vector<384x128xf32>
    %c0_20 = arith.constant 0 : index
    %c0_21 = arith.constant 0 : index
    %c0_22 = arith.constant 0 : index
    %23 = vector.load %arg6[%c0_20, %c0_21, %c0_22] : memref<1x80x128xf32, #tpu.memory_space<vmem>>, vector<1x16x128xf32>
    %24 = vector.shape_cast %23 : vector<1x16x128xf32> to vector<16x128xf32>
    %cst_23 = arith.constant dense<0.000000e+00> : vector<384x128xf32>
    %25 = tpu.matmul %5, %24, %cst_23 {dimension_numbers = #tpu.dot_dimension_numbers<[1], [0], [0], [1], [0, 0, 1, 1], [], []>} : vector<384x16xf32>, vector<16x128xf32>, vector<384x128xf32> -> vector<384x128xf32>
    %26 = arith.addf %22, %25 : vector<384x128xf32>
    %c0_24 = arith.constant 0 : index
    %c16 = arith.constant 16 : index
    %c0_25 = arith.constant 0 : index
    %27 = vector.load %arg6[%c0_24, %c16, %c0_25] : memref<1x80x128xf32, #tpu.memory_space<vmem>>, vector<1x16x128xf32>
    %28 = vector.shape_cast %27 : vector<1x16x128xf32> to vector<16x128xf32>
    %cst_26 = arith.constant dense<0.000000e+00> : vector<384x128xf32>
    %29 = tpu.matmul %21, %28, %cst_26 {dimension_numbers = #tpu.dot_dimension_numbers<[1], [0], [0], [1], [0, 0, 1, 1], [], []>} : vector<384x16xf32>, vector<16x128xf32>, vector<384x128xf32> -> vector<384x128xf32>
    %30 = arith.addf %26, %29 : vector<384x128xf32>
    %c0_27 = arith.constant 0 : index
    %c32 = arith.constant 32 : index
    %c0_28 = arith.constant 0 : index
    %31 = vector.load %arg6[%c0_27, %c32, %c0_28] : memref<1x80x128xf32, #tpu.memory_space<vmem>>, vector<1x16x128xf32>
    %32 = vector.shape_cast %31 : vector<1x16x128xf32> to vector<16x128xf32>
    %cst_29 = arith.constant dense<0.000000e+00> : vector<384x128xf32>
    %33 = tpu.matmul %19, %32, %cst_29 {dimension_numbers = #tpu.dot_dimension_numbers<[1], [0], [0], [1], [0, 0, 1, 1], [], []>} : vector<384x16xf32>, vector<16x128xf32>, vector<384x128xf32> -> vector<384x128xf32>
    %34 = arith.addf %30, %33 : vector<384x128xf32>
    %c0_30 = arith.constant 0 : index
    %c48 = arith.constant 48 : index
    %c0_31 = arith.constant 0 : index
    %35 = vector.load %arg6[%c0_30, %c48, %c0_31] : memref<1x80x128xf32, #tpu.memory_space<vmem>>, vector<1x16x128xf32>
    %36 = vector.shape_cast %35 : vector<1x16x128xf32> to vector<16x128xf32>
    %cst_32 = arith.constant dense<0.000000e+00> : vector<384x128xf32>
    %37 = tpu.matmul %15, %36, %cst_32 {dimension_numbers = #tpu.dot_dimension_numbers<[1], [0], [0], [1], [0, 0, 1, 1], [], []>} : vector<384x16xf32>, vector<16x128xf32>, vector<384x128xf32> -> vector<384x128xf32>
    %38 = arith.addf %34, %37 : vector<384x128xf32>
    %c0_33 = arith.constant 0 : index
    %c64 = arith.constant 64 : index
    %c0_34 = arith.constant 0 : index
    %39 = vector.load %arg6[%c0_33, %c64, %c0_34] : memref<1x80x128xf32, #tpu.memory_space<vmem>>, vector<1x16x128xf32>
    %40 = vector.shape_cast %39 : vector<1x16x128xf32> to vector<16x128xf32>
    %cst_35 = arith.constant dense<0.000000e+00> : vector<384x128xf32>
    %41 = tpu.matmul %17, %40, %cst_35 {dimension_numbers = #tpu.dot_dimension_numbers<[1], [0], [0], [1], [0, 0, 1, 1], [], []>} : vector<384x16xf32>, vector<16x128xf32>, vector<384x128xf32> -> vector<384x128xf32>
    %42 = arith.addf %38, %41 : vector<384x128xf32>
    %c0_36 = arith.constant 0 : index
    %c0_37 = arith.constant 0 : index
    %c0_38 = arith.constant 0 : index
    %43 = vector.load %arg7[%c0_36, %c0_37, %c0_38] : memref<1x1x128xf32, #tpu.memory_space<vmem>>, vector<1x1x128xf32>
    %44 = vector.shape_cast %43 : vector<1x1x128xf32> to vector<1x128xf32>
    %45 = vector.broadcast %44 : vector<1x128xf32> to vector<384x128xf32>
    %46 = arith.addf %42, %45 : vector<384x128xf32>
    %47 = tpu.iota {dimensions = array<i32: 1>} : vector<384x128xi32>
    %c8_i32 = arith.constant 8 : i32
    %48 = vector.broadcast %c8_i32 : i32 to vector<384x128xi32>
    %49 = arith.cmpi slt, %47, %48 : vector<384x128xi32>
    %cst_39 = arith.constant 0.000000e+00 : f32
    %50 = vector.broadcast %cst_39 : f32 to vector<384x128xf32>
    %51 = arith.maximumf %46, %50 : vector<384x128xf32>
    %52 = arith.select %49, %46, %51 : vector<384x128xi1>, vector<384x128xf32>
    %53 = tpu.iota {dimensions = array<i32: 0>} : vector<384x128xi32>
    %54 = vector.broadcast %1 : i32 to vector<384x128xi32>
    %55 = arith.cmpi slt, %53, %54 : vector<384x128xi32>
    %56 = arith.extui %55 : vector<384x128xi1> to vector<384x128xi32>
    %57 = arith.sitofp %56 : vector<384x128xi32> to vector<384x128xf32>
    %58 = arith.mulf %52, %57 : vector<384x128xf32>
    %cst_40 = arith.constant dense<0.000000e+00> : vector<128xf32>
    %59 = vector.multi_reduction <add>, %58, %cst_40 [0] : vector<384x128xf32> to vector<128xf32>
    %60 = vector.shape_cast %59 : vector<128xf32> to vector<1x128xf32>
    %61 = vector.broadcast %3 : f32 to vector<1x128xf32>
    %62 = arith.mulf %60, %61 : vector<1x128xf32>
    %63 = vector.broadcast %62 : vector<1x128xf32> to vector<384x128xf32>
    %64 = arith.subf %52, %63 : vector<384x128xf32>
    %65 = arith.mulf %64, %57 : vector<384x128xf32>
    %66 = arith.mulf %65, %65 : vector<384x128xf32>
    %cst_41 = arith.constant dense<0.000000e+00> : vector<128xf32>
    %67 = vector.multi_reduction <add>, %66, %cst_41 [0] : vector<384x128xf32> to vector<128xf32>
    %68 = vector.shape_cast %67 : vector<128xf32> to vector<1x128xf32>
    %69 = vector.broadcast %3 : f32 to vector<1x128xf32>
    %70 = arith.mulf %68, %69 : vector<1x128xf32>
    %c0_42 = arith.constant 0 : index
    %c0_43 = arith.constant 0 : index
    %c0_44 = arith.constant 0 : index
    %71 = vector.load %arg8[%c0_42, %c0_43, %c0_44] : memref<1x1x128xf32, #tpu.memory_space<vmem>>, vector<1x1x128xf32>
    %72 = vector.shape_cast %71 : vector<1x1x128xf32> to vector<1x128xf32>
    %cst_45 = arith.constant 9.99999974E-6 : f32
    %73 = vector.broadcast %cst_45 : f32 to vector<1x128xf32>
    %74 = arith.addf %70, %73 : vector<1x128xf32>
    %75 = math.rsqrt %74 : vector<1x128xf32>
    %76 = arith.mulf %72, %75 : vector<1x128xf32>
    %77 = vector.broadcast %76 : vector<1x128xf32> to vector<384x128xf32>
    %78 = arith.mulf %65, %77 : vector<384x128xf32>
    %c0_46 = arith.constant 0 : index
    %c0_47 = arith.constant 0 : index
    %c0_48 = arith.constant 0 : index
    %79 = vector.load %arg9[%c0_46, %c0_47, %c0_48] : memref<1x1x128xf32, #tpu.memory_space<vmem>>, vector<1x1x128xf32>
    %80 = vector.shape_cast %79 : vector<1x1x128xf32> to vector<1x128xf32>
    %81 = vector.broadcast %80 : vector<1x128xf32> to vector<384x128xf32>
    %82 = arith.addf %78, %81 : vector<384x128xf32>
    %c0_49 = arith.constant 0 : index
    %c0_50 = arith.constant 0 : index
    %c0_51 = arith.constant 0 : index
    %83 = vector.load %arg10[%c0_49, %c0_50, %c0_51] : memref<1x384x128xf32, #tpu.memory_space<vmem>>, vector<1x384x128xf32>
    %84 = vector.shape_cast %83 : vector<1x384x128xf32> to vector<384x128xf32>
    %85 = vector.shape_cast %82 : vector<384x128xf32> to vector<1x384x128xf32>
    tpu.vector_store %arg10[%c0_49, %c0_50, %c0_51], %85 {strides = array<i32>} : memref<1x384x128xf32, #tpu.memory_space<vmem>>, vector<1x384x128xf32>,
    return
  }
  func.func @transform_0(%arg0: i32) -> (i32, i32, i32) {
    %c0_i32 = arith.constant 0 : i32
    %c0_i32_0 = arith.constant 0 : i32
    %c0_i32_1 = arith.constant 0 : i32
    return %arg0, %c0_i32, %c0_i32_0 : i32, i32, i32
  }
  func.func @transform_1(%arg0: i32) -> (i32, i32, i32) {
    %c0_i32 = arith.constant 0 : i32
    %c0_i32_0 = arith.constant 0 : i32
    %c0_i32_1 = arith.constant 0 : i32
    return %arg0, %c0_i32, %c0_i32_0 : i32, i32, i32
  }
  func.func @transform_2(%arg0: i32) -> (i32, i32, i32) {
    %c0_i32 = arith.constant 0 : i32
    %c0_i32_0 = arith.constant 0 : i32
    %c0_i32_1 = arith.constant 0 : i32
    return %arg0, %c0_i32, %c0_i32_0 : i32, i32, i32
  }
  func.func @transform_3(%arg0: i32) -> (i32, i32, i32) {
    %c0_i32 = arith.constant 0 : i32
    %c0_i32_0 = arith.constant 0 : i32
    %c0_i32_1 = arith.constant 0 : i32
    return %arg0, %c0_i32, %c0_i32_0 : i32, i32, i32
  }
  func.func @transform_4(%arg0: i32) -> (i32, i32, i32) {
    %c0_i32 = arith.constant 0 : i32
    %c0_i32_0 = arith.constant 0 : i32
    %c0_i32_1 = arith.constant 0 : i32
    return %arg0, %c0_i32, %c0_i32_0 : i32, i32, i32
  }
  func.func @transform_5(%arg0: i32) -> (i32, i32, i32) {
    %c0_i32 = arith.constant 0 : i32
    %c0_i32_0 = arith.constant 0 : i32
    %c0_i32_1 = arith.constant 0 : i32
    return %arg0, %c0_i32, %c0_i32_0 : i32, i32, i32
  }
  func.func @transform_6(%arg0: i32) -> (i32, i32, i32) {
    %c0_i32 = arith.constant 0 : i32
    %c0_i32_0 = arith.constant 0 : i32
    %c0_i32_1 = arith.constant 0 : i32
    return %arg0, %c0_i32, %c0_i32_0 : i32, i32, i32
  }
  func.func @transform_7(%arg0: i32) -> (i32, i32, i32) {
    %c0_i32 = arith.constant 0 : i32
    %c0_i32_0 = arith.constant 0 : i32
    %c0_i32_1 = arith.constant 0 : i32
    return %arg0, %c0_i32, %c0_i32_0 : i32, i32, i32
  }
  func.func @transform_8(%arg0: i32) -> (i32, i32, i32) {
    %c0_i32 = arith.constant 0 : i32
    %c0_i32_0 = arith.constant 0 : i32
    %c0_i32_1 = arith.constant 0 : i32
    return %arg0, %c0_i32, %c0_i32_0 : i32, i32, i32
  }
  func.func @transform_9(%arg0: i32) -> (i32, i32, i32) {
    %c0_i32 = arith.constant 0 : i32
    %c0_i32_0 = arith.constant 0 : i32
    %c0_i32_1 = arith.constant 0 : i32
    return %arg0, %c0_i32, %c0_i32_0 : i32, i32, i32
  }
}

</mosaic_0001>

<llo_original>
// kernel: lgnn_layer.1
$region0: #{lgnn_layer.1}
  #allocation0 [shape = 'u32[]', space=smem, size = 0x4, offset = 0x4, fixed_abs, tag = 'smem constant byte address 0x4 - core index']
  #allocation1 [shape = 'u32[72,128]{1,0:T(1,128)}', space=vmem, size = 0x9000, scoped, tag = 'internal scratch']
  %s0 = inlined_call_operand.vmem [shape: f32[2,384,16], index: 0, kind: input, shape index: {}]
  %s1 = inlined_call_operand.vmem [shape: f32[2,384,16], index: 1, kind: input, shape index: {}]
  %s2 = inlined_call_operand.vmem [shape: f32[2,384,1], index: 2, kind: input, shape index: {}]
  %s3 = inlined_call_operand.vmem [shape: bf16[2,384,384], index: 3, kind: input, shape index: {}]
  %s4 = inlined_call_operand.vmem [shape: bf16[2,384,384], index: 4, kind: input, shape index: {}]
  %s5 = inlined_call_operand.vmem [shape: f32[2,80,128], index: 5, kind: input, shape index: {}]
  %s6 = inlined_call_operand.vmem [shape: f32[2,1,128], index: 6, kind: input, shape index: {}]
  %s7 = inlined_call_operand.vmem [shape: f32[2,1,128], index: 7, kind: input, shape index: {}]
  %s8 = inlined_call_operand.vmem [shape: f32[2,1,128], index: 8, kind: input, shape index: {}]
  %s9 = inlined_call_operand.vmem [shape: f32[2,384,128], index: 9, kind: output, shape index: {}]
  %s10 = sld [smem:[#allocation0]]
  $region69: #{lgnn_layer.1} parent=0
    _
  %s12 = ssub.s32 1, %s10
  %s13 = scalar_select 0, %s12, %s10
  loop: start=0, step=1, limit=4
  $region2: #{lgnn_layer.1} parent=0 // loop_pre_header
    _
  $region3: #{lgnn_layer.1} parent=0 // loop_header
    %s15 = sphi 0, %s19
    %p16 = scmp.ge.s32.totalorder %s15, 4
    %s25 = sphi 0, %s27
    %s28 = sphi 0, %s25
    %s29 = sphi 0, %s28
    %s45 = sphi 0, %s29
    %s51 = sphi 0, %s53
    %s54 = sphi 0, %s51
    %s55 = sphi 0, %s54
    %s71 = sphi 0, %s55
    %s77 = sphi 0, %s79
    %s80 = sphi 0, %s77
    %s81 = sphi 0, %s80
    %s97 = sphi 0, %s81
    %s103 = sphi 0, %s105
    %s106 = sphi 0, %s103
    %s107 = sphi 0, %s106
    %s123 = sphi 0, %s107
    %s129 = sphi 0, %s131
    %s132 = sphi 0, %s129
    %s133 = sphi 0, %s132
    %s149 = sphi 0, %s133
    %s155 = sphi 0, %s157
    %s158 = sphi 0, %s155
    %s159 = sphi 0, %s158
    %s175 = sphi 0, %s159
    %s181 = sphi 0, %s183
    %s184 = sphi 0, %s181
    %s185 = sphi 0, %s184
    %s201 = sphi 0, %s185
    %s207 = sphi 0, %s209
    %s210 = sphi 0, %s207
    %s211 = sphi 0, %s210
    %s227 = sphi 0, %s211
    %s233 = sphi 0, %s235
    %s236 = sphi 0, %s233
    %s237 = sphi 0, %s236
    %s253 = sphi 0, %s237
    %s259 = sphi 0, %s261
    %s262 = sphi 0, %s259
    %s263 = sphi 0, %s262
    %s279 = sphi 0, %s263
  $region4: #{lgnn_layer.1} parent=0 // loop_header_branch
    %18 = sbr.rel (%p16) target = $region8
  $region5: #{lgnn_layer.1} parent=0 // loop_body
    %s20 = ssub.s32 %s15, 1
    %s21 = ssub.s32 %s15, 2
    %s22 = sadd.s32 %s15, 1
    %s23 = ssub.s32 %s15, %s22
    %p24 = scmp.eq.s32.totalorder %s23, 0
    %s26 = sadd.s32 %s25, 1
    %s27 = scalar_select %p24, %s25, %s26
    %p30 = pneg %p24
    %p31 = scmp.eq.s32.totalorder %s15, 1
    %p32 = por %p30, %p31
    %p33 = scmp.ne.s32.totalorder %s25, %s28
    %p34 = scmp.eq.s32.totalorder %s15, 0
    %p35 = por %p33, %p34
    %p36 = scmp.ne.s32.totalorder %s25, %s28
    %p37 = scmp.eq.s32.totalorder %s20, 1
    %p38 = por %p36, %p37
    %p39 = scmp.ne.s32.totalorder %s28, %s29
    %p40 = scmp.eq.s32.totalorder %s20, 0
    %p41 = por %p39, %p40
    %p42 = scmp.ne.s32.totalorder %s28, %s29
    %p43 = scmp.eq.s32.totalorder %s21, 1
    %p44 = por %p42, %p43
    %p46 = scmp.ne.s32.totalorder %s29, %s45
    %p47 = scmp.eq.s32.totalorder %s21, 0
    %p48 = por %p46, %p47
    %s49 = ssub.s32 %s15, %s22
    %p50 = scmp.eq.s32.totalorder %s49, 0
    %s52 = sadd.s32 %s51, 1
    %s53 = scalar_select %p50, %s51, %s52
    %p56 = pneg %p50
    %p57 = scmp.eq.s32.totalorder %s15, 1
    %p58 = por %p56, %p57
    %p59 = scmp.ne.s32.totalorder %s51, %s54
    %p60 = scmp.eq.s32.totalorder %s15, 0
    %p61 = por %p59, %p60
    %p62 = scmp.ne.s32.totalorder %s51, %s54
    %p63 = scmp.eq.s32.totalorder %s20, 1
    %p64 = por %p62, %p63
    %p65 = scmp.ne.s32.totalorder %s54, %s55
    %p66 = scmp.eq.s32.totalorder %s20, 0
    %p67 = por %p65, %p66
    %p68 = scmp.ne.s32.totalorder %s54, %s55
    %p69 = scmp.eq.s32.totalorder %s21, 1
    %p70 = por %p68, %p69
    %p72 = scmp.ne.s32.totalorder %s55, %s71
    %p73 = scmp.eq.s32.totalorder %s21, 0
    %p74 = por %p72, %p73
    %s75 = ssub.s32 %s15, %s22
    %p76 = scmp.eq.s32.totalorder %s75, 0
    %s78 = sadd.s32 %s77, 1
    %s79 = scalar_select %p76, %s77, %s78
    %p82 = pneg %p76
    %p83 = scmp.eq.s32.totalorder %s15, 1
    %p84 = por %p82, %p83
    %p85 = scmp.ne.s32.totalorder %s77, %s80
    %p86 = scmp.eq.s32.totalorder %s15, 0
    %p87 = por %p85, %p86
    %p88 = scmp.ne.s32.totalorder %s77, %s80
    %p89 = scmp.eq.s32.totalorder %s20, 1
    %p90 = por %p88, %p89
    %p91 = scmp.ne.s32.totalorder %s80, %s81
    %p92 = scmp.eq.s32.totalorder %s20, 0
    %p93 = por %p91, %p92
    %p94 = scmp.ne.s32.totalorder %s80, %s81
    %p95 = scmp.eq.s32.totalorder %s21, 1
    %p96 = por %p94, %p95
    %p98 = scmp.ne.s32.totalorder %s81, %s97
    %p99 = scmp.eq.s32.totalorder %s21, 0
    %p100 = por %p98, %p99
    %s101 = ssub.s32 %s15, %s22
    %p102 = scmp.eq.s32.totalorder %s101, 0
    %s104 = sadd.s32 %s103, 1
    %s105 = scalar_select %p102, %s103, %s104
    %p108 = pneg %p102
    %p109 = scmp.eq.s32.totalorder %s15, 1
    %p110 = por %p108, %p109
    %p111 = scmp.ne.s32.totalorder %s103, %s106
    %p112 = scmp.eq.s32.totalorder %s15, 0
    %p113 = por %p111, %p112
    %p114 = scmp.ne.s32.totalorder %s103, %s106
    %p115 = scmp.eq.s32.totalorder %s20, 1
    %p116 = por %p114, %p115
    %p117 = scmp.ne.s32.totalorder %s106, %s107
    %p118 = scmp.eq.s32.totalorder %s20, 0
    %p119 = por %p117, %p118
    %p120 = scmp.ne.s32.totalorder %s106, %s107
    %p121 = scmp.eq.s32.totalorder %s21, 1
    %p122 = por %p120, %p121
    %p124 = scmp.ne.s32.totalorder %s107, %s123
    %p125 = scmp.eq.s32.totalorder %s21, 0
    %p126 = por %p124, %p125
    %s127 = ssub.s32 %s15, %s22
    %p128 = scmp.eq.s32.totalorder %s127, 0
    %s130 = sadd.s32 %s129, 1
    %s131 = scalar_select %p128, %s129, %s130
    %p134 = pneg %p128
    %p135 = scmp.eq.s32.totalorder %s15, 1
    %p136 = por %p134, %p135
    %p137 = scmp.ne.s32.totalorder %s129, %s132
    %p138 = scmp.eq.s32.totalorder %s15, 0
    %p139 = por %p137, %p138
    %p140 = scmp.ne.s32.totalorder %s129, %s132
    %p141 = scmp.eq.s32.totalorder %s20, 1
    %p142 = por %p140, %p141
    %p143 = scmp.ne.s32.totalorder %s132, %s133
    %p144 = scmp.eq.s32.totalorder %s20, 0
    %p145 = por %p143, %p144
    %p146 = scmp.ne.s32.totalorder %s132, %s133
    %p147 = scmp.eq.s32.totalorder %s21, 1
    %p148 = por %p146, %p147
    %p150 = scmp.ne.s32.totalorder %s133, %s149
    %p151 = scmp.eq.s32.totalorder %s21, 0
    %p152 = por %p150, %p151
    %s153 = ssub.s32 %s15, %s22
    %p154 = scmp.eq.s32.totalorder %s153, 0
    %s156 = sadd.s32 %s155, 1
    %s157 = scalar_select %p154, %s155, %s156
    %p160 = pneg %p154
    %p161 = scmp.eq.s32.totalorder %s15, 1
    %p162 = por %p160, %p161
    %p163 = scmp.ne.s32.totalorder %s155, %s158
    %p164 = scmp.eq.s32.totalorder %s15, 0
    %p165 = por %p163, %p164
    %p166 = scmp.ne.s32.totalorder %s155, %s158
    %p167 = scmp.eq.s32.totalorder %s20, 1
    %p168 = por %p166, %p167
    %p169 = scmp.ne.s32.totalorder %s158, %s159
    %p170 = scmp.eq.s32.totalorder %s20, 0
    %p171 = por %p169, %p170
    %p172 = scmp.ne.s32.totalorder %s158, %s159
    %p173 = scmp.eq.s32.totalorder %s21, 1
    %p174 = por %p172, %p173
    %p176 = scmp.ne.s32.totalorder %s159, %s175
    %p177 = scmp.eq.s32.totalorder %s21, 0
    %p178 = por %p176, %p177
    %s179 = ssub.s32 %s15, %s22
    %p180 = scmp.eq.s32.totalorder %s179, 0
    %s182 = sadd.s32 %s181, 1
    %s183 = scalar_select %p180, %s181, %s182
    %p186 = pneg %p180
    %p187 = scmp.eq.s32.totalorder %s15, 1
    %p188 = por %p186, %p187
    %p189 = scmp.ne.s32.totalorder %s181, %s184
    %p190 = scmp.eq.s32.totalorder %s15, 0
    %p191 = por %p189, %p190
    %p192 = scmp.ne.s32.totalorder %s181, %s184
    %p193 = scmp.eq.s32.totalorder %s20, 1
    %p194 = por %p192, %p193
    %p195 = scmp.ne.s32.totalorder %s184, %s185
    %p196 = scmp.eq.s32.totalorder %s20, 0
    %p197 = por %p195, %p196
    %p198 = scmp.ne.s32.totalorder %s184, %s185
    %p199 = scmp.eq.s32.totalorder %s21, 1
    %p200 = por %p198, %p199
    %p202 = scmp.ne.s32.totalorder %s185, %s201
    %p203 = scmp.eq.s32.totalorder %s21, 0
    %p204 = por %p202, %p203
    %s205 = ssub.s32 %s15, %s22
    %p206 = scmp.eq.s32.totalorder %s205, 0
    %s208 = sadd.s32 %s207, 1
    %s209 = scalar_select %p206, %s207, %s208
    %p212 = pneg %p206
    %p213 = scmp.eq.s32.totalorder %s15, 1
    %p214 = por %p212, %p213
    %p215 = scmp.ne.s32.totalorder %s207, %s210
    %p216 = scmp.eq.s32.totalorder %s15, 0
    %p217 = por %p215, %p216
    %p218 = scmp.ne.s32.totalorder %s207, %s210
    %p219 = scmp.eq.s32.totalorder %s20, 1
    %p220 = por %p218, %p219
    %p221 = scmp.ne.s32.totalorder %s210, %s211
    %p222 = scmp.eq.s32.totalorder %s20, 0
    %p223 = por %p221, %p222
    %p224 = scmp.ne.s32.totalorder %s210, %s211
    %p225 = scmp.eq.s32.totalorder %s21, 1
    %p226 = por %p224, %p225
    %p228 = scmp.ne.s32.totalorder %s211, %s227
    %p229 = scmp.eq.s32.totalorder %s21, 0
    %p230 = por %p228, %p229
    %s231 = ssub.s32 %s15, %s22
    %p232 = scmp.eq.s32.totalorder %s231, 0
    %s234 = sadd.s32 %s233, 1
    %s235 = scalar_select %p232, %s233, %s234
    %p238 = pneg %p232
    %p239 = scmp.eq.s32.totalorder %s15, 1
    %p240 = por %p238, %p239
    %p241 = scmp.ne.s32.totalorder %s233, %s236
    %p242 = scmp.eq.s32.totalorder %s15, 0
    %p243 = por %p241, %p242
    %p244 = scmp.ne.s32.totalorder %s233, %s236
    %p245 = scmp.eq.s32.totalorder %s20, 1
    %p246 = por %p244, %p245
    %p247 = scmp.ne.s32.totalorder %s236, %s237
    %p248 = scmp.eq.s32.totalorder %s20, 0
    %p249 = por %p247, %p248
    %p250 = scmp.ne.s32.totalorder %s236, %s237
    %p251 = scmp.eq.s32.totalorder %s21, 1
    %p252 = por %p250, %p251
    %p254 = scmp.ne.s32.totalorder %s237, %s253
    %p255 = scmp.eq.s32.totalorder %s21, 0
    %p256 = por %p254, %p255
    %s257 = ssub.s32 %s15, %s22
    %p258 = scmp.eq.s32.totalorder %s257, 0
    %s260 = sadd.s32 %s259, 1
    %s261 = scalar_select %p258, %s259, %s260
    %p264 = pneg %p258
    %p265 = scmp.eq.s32.totalorder %s15, 1
    %p266 = por %p264, %p265
    %p267 = scmp.ne.s32.totalorder %s259, %s262
    %p268 = scmp.eq.s32.totalorder %s15, 0
    %p269 = por %p267, %p268
    %p270 = scmp.ne.s32.totalorder %s259, %s262
    %p271 = scmp.eq.s32.totalorder %s20, 1
    %p272 = por %p270, %p271
    %p273 = scmp.ne.s32.totalorder %s262, %s263
    %p274 = scmp.eq.s32.totalorder %s20, 0
    %p275 = por %p273, %p274
    %p276 = scmp.ne.s32.totalorder %s262, %s263
    %p277 = scmp.eq.s32.totalorder %s21, 1
    %p278 = por %p276, %p277
    %p280 = scmp.ne.s32.totalorder %s263, %s279
    %p281 = scmp.eq.s32.totalorder %s21, 0
    %p282 = por %p280, %p281
    %p283 = scmp.le.s32.totalorder 1, %s15
    %p284 = scmp.lt.s32.totalorder %s15, 3
    %p285 = pnand %p283, %p284
    %p286 = pneg %p285
    // Predicated region
    $region9: #{lgnn_layer.1} parent=5 // pred_check
      _
    $region10: #{lgnn_layer.1} parent=5 // pred_check_branch
      %288 = sbr.rel (%p285) target = $region12
    $region11: #{lgnn_layer.1} parent=5 // pred_region
      %s289 = ssub.s32 %s15, 1
    $region12: #{lgnn_layer.1} parent=5 // pred_fallthru
      _
    %p290 = scmp.lt.s32.totalorder %s15, 2
    // Predicated region
    $region13: #{lgnn_layer.1} parent=5 // pred_check
      %p291 = pneg %p290
    $region14: #{lgnn_layer.1} parent=5 // pred_check_branch
      %293 = sbr.rel (%p291) target = $region16
    $region15: #{lgnn_layer.1} parent=5 // pred_region
      // Predicated region
      $region17: #{lgnn_layer.1} parent=15 // pred_check
        %p294 = pneg %p35
      $region18: #{lgnn_layer.1} parent=15 // pred_check_branch
        %296 = sbr.rel (%p294) target = $region20
      $region19: #{lgnn_layer.1} parent=15 // pred_region
        %p297 = scmp.lt.s32.totalorder %s15, 1
        %s298 = scalar_select %p297, %s15, 1
        %s299 = smul.addr %s298, 48
        %s300 = smul.addr %s299, 8
        %s301 = scalar_lea.vmem %s0, %s300
      $region20: #{lgnn_layer.1} parent=15 // pred_fallthru
        _
      // Predicated region
      $region21: #{lgnn_layer.1} parent=15 // pred_check
        %p302 = pneg %p61
      $region22: #{lgnn_layer.1} parent=15 // pred_check_branch
        %304 = sbr.rel (%p302) target = $region24
      $region23: #{lgnn_layer.1} parent=15 // pred_region
        %p305 = scmp.lt.s32.totalorder %s15, 1
        %s306 = scalar_select %p305, %s15, 1
        %s307 = smul.addr %s306, 48
        %s308 = smul.addr %s307, 8
        %s309 = scalar_lea.vmem %s1, %s308
      $region24: #{lgnn_layer.1} parent=15 // pred_fallthru
        _
      // Predicated region
      $region25: #{lgnn_layer.1} parent=15 // pred_check
        %p310 = pneg %p87
      $region26: #{lgnn_layer.1} parent=15 // pred_check_branch
        %312 = sbr.rel (%p310) target = $region28
      $region27: #{lgnn_layer.1} parent=15 // pred_region
        %p313 = scmp.lt.s32.totalorder %s15, 1
        %s314 = scalar_select %p313, %s15, 1
        %s315 = smul.addr %s314, 48
        %s316 = smul.addr %s315, 8
        %s317 = scalar_lea.vmem %s2, %s316
      $region28: #{lgnn_layer.1} parent=15 // pred_fallthru
        _
      // Predicated region
      $region29: #{lgnn_layer.1} parent=15 // pred_check
        %p318 = pneg %p113
      $region30: #{lgnn_layer.1} parent=15 // pred_check_branch
        %320 = sbr.rel (%p318) target = $region32
      $region31: #{lgnn_layer.1} parent=15 // pred_region
        %p321 = scmp.lt.s32.totalorder %s15, 1
        %s322 = scalar_select %p321, %s15, 1
        %s323 = smul.addr %s322, 144
        %s324 = smul.addr %s323, 4
        %s325 = scalar_lea.vmem %s3, %s324
      $region32: #{lgnn_layer.1} parent=15 // pred_fallthru
        _
      // Predicated region
      $region33: #{lgnn_layer.1} parent=15 // pred_check
        %p326 = pneg %p139
      $region34: #{lgnn_layer.1} parent=15 // pred_check_branch
        %328 = sbr.rel (%p326) target = $region36
      $region35: #{lgnn_layer.1} parent=15 // pred_region
        %p329 = scmp.lt.s32.totalorder %s15, 1
        %s330 = scalar_select %p329, %s15, 1
        %s331 = smul.addr %s330, 144
        %s332 = smul.addr %s331, 4
        %s333 = scalar_lea.vmem %s4, %s332
      $region36: #{lgnn_layer.1} parent=15 // pred_fallthru
        _
      // Predicated region
      $region37: #{lgnn_layer.1} parent=15 // pred_check
        %p334 = pneg %p165
      $region38: #{lgnn_layer.1} parent=15 // pred_check_branch
        %336 = sbr.rel (%p334) target = $region40
      $region39: #{lgnn_layer.1} parent=15 // pred_region
        %p337 = scmp.lt.s32.totalorder %s15, 1
        %s338 = scalar_select %p337, %s15, 1
        %s339 = smul.addr %s338, 10
        %s340 = smul.addr %s339, 8
        %s341 = scalar_lea.vmem %s5, %s340
      $region40: #{lgnn_layer.1} parent=15 // pred_fallthru
        _
      // Predicated region
      $region41: #{lgnn_layer.1} parent=15 // pred_check
        %p342 = pneg %p191
      $region42: #{lgnn_layer.1} parent=15 // pred_check_branch
        %344 = sbr.rel (%p342) target = $region44
      $region43: #{lgnn_layer.1} parent=15 // pred_region
        %p345 = scmp.lt.s32.totalorder %s15, 1
        %s346 = scalar_select %p345, %s15, 1
        %s347 = scalar_lea.vmem %s6, %s346
      $region44: #{lgnn_layer.1} parent=15 // pred_fallthru
        _
      // Predicated region
      $region45: #{lgnn_layer.1} parent=15 // pred_check
        %p348 = pneg %p217
      $region46: #{lgnn_layer.1} parent=15 // pred_check_branch
        %350 = sbr.rel (%p348) target = $region48
      $region47: #{lgnn_layer.1} parent=15 // pred_region
        %p351 = scmp.lt.s32.totalorder %s15, 1
        %s352 = scalar_select %p351, %s15, 1
        %s353 = scalar_lea.vmem %s7, %s352
      $region48: #{lgnn_layer.1} parent=15 // pred_fallthru
        _
      // Predicated region
      $region49: #{lgnn_layer.1} parent=15 // pred_check
        %p354 = pneg %p243
      $region50: #{lgnn_layer.1} parent=15 // pred_check_branch
        %356 = sbr.rel (%p354) target = $region52
      $region51: #{lgnn_layer.1} parent=15 // pred_region
        %p357 = scmp.lt.s32.totalorder %s15, 1
        %s358 = scalar_select %p357, %s15, 1
        %s359 = scalar_lea.vmem %s8, %s358
      $region52: #{lgnn_layer.1} parent=15 // pred_fallthru
        _
    $region16: #{lgnn_layer.1} parent=5 // pred_fallthru
      _
    %p360 = scmp.le.s32.totalorder 1, %s15
    %p361 = scmp.lt.s32.totalorder %s15, 3
    %p362 = pnand %p360, %p361
    %p363 = pneg %p362
    // Predicated region
    $region53: #{lgnn_layer.1} parent=5 // pred_check
      _
    $region54: #{lgnn_layer.1} parent=5 // pred_check_branch
      %365 = sbr.rel (%p362) target = $region56
    $region55: #{lgnn_layer.1} parent=5 // pred_region
      %s366 = ssub.s32 %s15, 1
      %p367 = scmp.lt.s32.totalorder %s20, 1
      %s368 = scalar_select %p367, %s20, 1
      %s369 = smul.addr %s368, 48
      %s370 = smul.addr %s369, 8
      %s371 = scalar_lea.vmem %s0, %s370
      %p372 = pneg %p41
      %p373 = pneg %p38
      %p374 = scmp.lt.s32.totalorder %s20, 1
      %s375 = scalar_select %p374, %s20, 1
      %s376 = smul.addr %s375, 48
      %s377 = smul.addr %s376, 8
      %s378 = scalar_lea.vmem %s1, %s377
      %p379 = pneg %p67
      %p380 = pneg %p64
      %p381 = scmp.lt.s32.totalorder %s20, 1
      %s382 = scalar_select %p381, %s20, 1
      %s383 = smul.addr %s382, 48
      %s384 = smul.addr %s383, 8
      %s385 = scalar_lea.vmem %s2, %s384
      %p386 = pneg %p93
      %p387 = pneg %p90
      %p388 = scmp.lt.s32.totalorder %s20, 1
      %s389 = scalar_select %p388, %s20, 1
      %s390 = smul.addr %s389, 144
      %s391 = smul.addr %s390, 4
      %s392 = scalar_lea.vmem %s3, %s391
      %p393 = pneg %p119
      %p394 = pneg %p116
      %p395 = scmp.lt.s32.totalorder %s20, 1
      %s396 = scalar_select %p395, %s20, 1
      %s397 = smul.addr %s396, 144
      %s398 = smul.addr %s397, 4
      %s399 = scalar_lea.vmem %s4, %s398
      %p400 = pneg %p145
      %p401 = pneg %p142
      %p402 = scmp.lt.s32.totalorder %s20, 1
      %s403 = scalar_select %p402, %s20, 1
      %s404 = smul.addr %s403, 10
      %s405 = smul.addr %s404, 8
      %s406 = scalar_lea.vmem %s5, %s405
      %p407 = pneg %p171
      %p408 = pneg %p168
      %p409 = scmp.lt.s32.totalorder %s20, 1
      %s410 = scalar_select %p409, %s20, 1
      %s411 = scalar_lea.vmem %s6, %s410
      %p412 = pneg %p197
      %p413 = pneg %p194
      %p414 = scmp.lt.s32.totalorder %s20, 1
      %s415 = scalar_select %p414, %s20, 1
      %s416 = scalar_lea.vmem %s7, %s415
      %p417 = pneg %p223
      %p418 = pneg %p220
      %p419 = scmp.lt.s32.totalorder %s20, 1
      %s420 = scalar_select %p419, %s20, 1
      %s421 = scalar_lea.vmem %s8, %s420
      %p422 = pneg %p249
      %p423 = pneg %p246
      %p424 = pneg %p275
      %p425 = pneg %p272
      %p426 = scmp.lt.s32.totalorder %s20, 1
      %s427 = scalar_select %p426, %s20, 1
      %s428 = smul.addr %s427, 48
      %s429 = smul.addr %s428, 8
      %s430 = scalar_lea.vmem %s9, %s429
      %p431 = scmp.lt.s32.totalorder %s20, 1
      %s432 = scalar_select %p431, %s20, 1
      %s433 = smul.addr %s432, 48
      %s434 = smul.addr %s433, 8
      %s435 = scalar_lea.vmem %s0, %s434
      %p436 = scmp.lt.s32.totalorder %s20, 1
      %s437 = scalar_select %p436, %s20, 1
      %s438 = smul.addr %s437, 48
      %s439 = smul.addr %s438, 8
      %s440 = scalar_lea.vmem %s1, %s439
      %p441 = scmp.lt.s32.totalorder %s20, 1
      %s442 = scalar_select %p441, %s20, 1
      %s443 = smul.addr %s442, 48
      %s444 = smul.addr %s443, 8
      %s445 = scalar_lea.vmem %s2, %s444
      %p446 = scmp.lt.s32.totalorder %s20, 1
      %s447 = scalar_select %p446, %s20, 1
      %s448 = smul.addr %s447, 144
      %s449 = smul.addr %s448, 4
      %s450 = scalar_lea.vmem %s3, %s449
      %p451 = scmp.lt.s32.totalorder %s20, 1
      %s452 = scalar_select %p451, %s20, 1
      %s453 = smul.addr %s452, 144
      %s454 = smul.addr %s453, 4
      %s455 = scalar_lea.vmem %s4, %s454
      %p456 = scmp.lt.s32.totalorder %s20, 1
      %s457 = scalar_select %p456, %s20, 1
      %s458 = smul.addr %s457, 10
      %s459 = smul.addr %s458, 8
      %s460 = scalar_lea.vmem %s5, %s459
      %p461 = scmp.lt.s32.totalorder %s20, 1
      %s462 = scalar_select %p461, %s20, 1
      %s463 = scalar_lea.vmem %s6, %s462
      %p464 = scmp.lt.s32.totalorder %s20, 1
      %s465 = scalar_select %p464, %s20, 1
      %s466 = scalar_lea.vmem %s7, %s465
      %p467 = scmp.lt.s32.totalorder %s20, 1
      %s468 = scalar_select %p467, %s20, 1
      %s469 = scalar_lea.vmem %s8, %s468
      %p470 = scmp.lt.s32.totalorder %s20, 1
      %s471 = scalar_select %p470, %s20, 1
      %s472 = smul.addr %s471, 48
      %s473 = smul.addr %s472, 8
      %s474 = scalar_lea.vmem %s9, %s473
      %p475 = scmp.eq.s32.totalorder %s20, 0
      %s476 = scalar_select %p475, 200, 336
      %s477 = scalar_select %p475, 0.005, 0.0029761905
      %v478 = vld [vmem:[%s435] sm:$0xff]
      %v479 = vld [vmem:[%s435 + $0x8] sm:$0xff]
      %v480 = vld [vmem:[%s435 + $0x10] sm:$0xff]
      %v481 = vld [vmem:[%s435 + $0x18] sm:$0xff]
      %v482 = vld [vmem:[%s435 + $0x20] sm:$0xff]
      %v483 = vld [vmem:[%s435 + $0x28] sm:$0xff]
      %v484 = vld [vmem:[%s435 + $0x30] sm:$0xff]
      %v485 = vld [vmem:[%s435 + $0x38] sm:$0xff]
      %v486 = vld [vmem:[%s435 + $0x40] sm:$0xff]
      %v487 = vld [vmem:[%s435 + $0x48] sm:$0xff]
      %v488 = vld [vmem:[%s435 + $0x50] sm:$0xff]
      %v489 = vld [vmem:[%s435 + $0x58] sm:$0xff]
      %v490 = vld [vmem:[%s435 + $0x60] sm:$0xff]
      %v491 = vld [vmem:[%s435 + $0x68] sm:$0xff]
      %v492 = vld [vmem:[%s435 + $0x70] sm:$0xff]
      %v493 = vld [vmem:[%s435 + $0x78] sm:$0xff]
      %v494 = vld [vmem:[%s435 + $0x80] sm:$0xff]
      %v495 = vld [vmem:[%s435 + $0x88] sm:$0xff]
      %v496 = vld [vmem:[%s435 + $0x90] sm:$0xff]
      %v497 = vld [vmem:[%s435 + $0x98] sm:$0xff]
      %v498 = vld [vmem:[%s435 + $0xa0] sm:$0xff]
      %v499 = vld [vmem:[%s435 + $0xa8] sm:$0xff]
      %v500 = vld [vmem:[%s435 + $0xb0] sm:$0xff]
      %v501 = vld [vmem:[%s435 + $0xb8] sm:$0xff]
      %v502 = vld [vmem:[%s435 + $0xc0] sm:$0xff]
      %v503 = vld [vmem:[%s435 + $0xc8] sm:$0xff]
      %v504 = vld [vmem:[%s435 + $0xd0] sm:$0xff]
      %v505 = vld [vmem:[%s435 + $0xd8] sm:$0xff]
      %v506 = vld [vmem:[%s435 + $0xe0] sm:$0xff]
      %v507 = vld [vmem:[%s435 + $0xe8] sm:$0xff]
      %v508 = vld [vmem:[%s435 + $0xf0] sm:$0xff]
      %v509 = vld [vmem:[%s435 + $0xf8] sm:$0xff]
      %v510 = vld [vmem:[%s435 + $0x100] sm:$0xff]
      %v511 = vld [vmem:[%s435 + $0x108] sm:$0xff]
      %v512 = vld [vmem:[%s435 + $0x110] sm:$0xff]
      %v513 = vld [vmem:[%s435 + $0x118] sm:$0xff]
      %v514 = vld [vmem:[%s435 + $0x120] sm:$0xff]
      %v515 = vld [vmem:[%s435 + $0x128] sm:$0xff]
      %v516 = vld [vmem:[%s435 + $0x130] sm:$0xff]
      %v517 = vld [vmem:[%s435 + $0x138] sm:$0xff]
      %v518 = vld [vmem:[%s435 + $0x140] sm:$0xff]
      %v519 = vld [vmem:[%s435 + $0x148] sm:$0xff]
      %v520 = vld [vmem:[%s435 + $0x150] sm:$0xff]
      %v521 = vld [vmem:[%s435 + $0x158] sm:$0xff]
      %v522 = vld [vmem:[%s435 + $0x160] sm:$0xff]
      %v523 = vld [vmem:[%s435 + $0x168] sm:$0xff]
      %v524 = vld [vmem:[%s435 + $0x170] sm:$0xff]
      %v525 = vld [vmem:[%s435 + $0x178] sm:$0xff]
      %v526 = vld [vmem:[%s440] sm:$0xff]
      %v527 = vld [vmem:[%s440 + $0x8] sm:$0xff]
      %v528 = vld [vmem:[%s440 + $0x10] sm:$0xff]
      %v529 = vld [vmem:[%s440 + $0x18] sm:$0xff]
      %v530 = vld [vmem:[%s440 + $0x20] sm:$0xff]
      %v531 = vld [vmem:[%s440 + $0x28] sm:$0xff]
      %v532 = vld [vmem:[%s440 + $0x30] sm:$0xff]
      %v533 = vld [vmem:[%s440 + $0x38] sm:$0xff]
      %v534 = vld [vmem:[%s440 + $0x40] sm:$0xff]
      %v535 = vld [vmem:[%s440 + $0x48] sm:$0xff]
      %v536 = vld [vmem:[%s440 + $0x50] sm:$0xff]
      %v537 = vld [vmem:[%s440 + $0x58] sm:$0xff]
      %v538 = vld [vmem:[%s440 + $0x60] sm:$0xff]
      %v539 = vld [vmem:[%s440 + $0x68] sm:$0xff]
      %v540 = vld [vmem:[%s440 + $0x70] sm:$0xff]
      %v541 = vld [vmem:[%s440 + $0x78] sm:$0xff]
      %v542 = vld [vmem:[%s440 + $0x80] sm:$0xff]
      %v543 = vld [vmem:[%s440 + $0x88] sm:$0xff]
      %v544 = vld [vmem:[%s440 + $0x90] sm:$0xff]
      %v545 = vld [vmem:[%s440 + $0x98] sm:$0xff]
      %v546 = vld [vmem:[%s440 + $0xa0] sm:$0xff]
      %v547 = vld [vmem:[%s440 + $0xa8] sm:$0xff]
      %v548 = vld [vmem:[%s440 + $0xb0] sm:$0xff]
      %v549 = vld [vmem:[%s440 + $0xb8] sm:$0xff]
      %v550 = vld [vmem:[%s440 + $0xc0] sm:$0xff]
      %v551 = vld [vmem:[%s440 + $0xc8] sm:$0xff]
      %v552 = vld [vmem:[%s440 + $0xd0] sm:$0xff]
      %v553 = vld [vmem:[%s440 + $0xd8] sm:$0xff]
      %v554 = vld [vmem:[%s440 + $0xe0] sm:$0xff]
      %v555 = vld [vmem:[%s440 + $0xe8] sm:$0xff]
      %v556 = vld [vmem:[%s440 + $0xf0] sm:$0xff]
      %v557 = vld [vmem:[%s440 + $0xf8] sm:$0xff]
      %v558 = vld [vmem:[%s440 + $0x100] sm:$0xff]
      %v559 = vld [vmem:[%s440 + $0x108] sm:$0xff]
      %v560 = vld [vmem:[%s440 + $0x110] sm:$0xff]
      %v561 = vld [vmem:[%s440 + $0x118] sm:$0xff]
      %v562 = vld [vmem:[%s440 + $0x120] sm:$0xff]
      %v563 = vld [vmem:[%s440 + $0x128] sm:$0xff]
      %v564 = vld [vmem:[%s440 + $0x130] sm:$0xff]
      %v565 = vld [vmem:[%s440 + $0x138] sm:$0xff]
      %v566 = vld [vmem:[%s440 + $0x140] sm:$0xff]
      %v567 = vld [vmem:[%s440 + $0x148] sm:$0xff]
      %v568 = vld [vmem:[%s440 + $0x150] sm:$0xff]
      %v569 = vld [vmem:[%s440 + $0x158] sm:$0xff]
      %v570 = vld [vmem:[%s440 + $0x160] sm:$0xff]
      %v571 = vld [vmem:[%s440 + $0x168] sm:$0xff]
      %v572 = vld [vmem:[%s440 + $0x170] sm:$0xff]
      %v573 = vld [vmem:[%s440 + $0x178] sm:$0xff]
      %v574 = vld [vmem:[%s445] sm:$0xff]
      %v575 = vld [vmem:[%s445 + $0x8] sm:$0xff]
      %v576 = vld [vmem:[%s445 + $0x10] sm:$0xff]
      %v577 = vld [vmem:[%s445 + $0x18] sm:$0xff]
      %v578 = vld [vmem:[%s445 + $0x20] sm:$0xff]
      %v579 = vld [vmem:[%s445 + $0x28] sm:$0xff]
      %v580 = vld [vmem:[%s445 + $0x30] sm:$0xff]
      %v581 = vld [vmem:[%s445 + $0x38] sm:$0xff]
      %v582 = vld [vmem:[%s445 + $0x40] sm:$0xff]
      %v583 = vld [vmem:[%s445 + $0x48] sm:$0xff]
      %v584 = vld [vmem:[%s445 + $0x50] sm:$0xff]
      %v585 = vld [vmem:[%s445 + $0x58] sm:$0xff]
      %v586 = vld [vmem:[%s445 + $0x60] sm:$0xff]
      %v587 = vld [vmem:[%s445 + $0x68] sm:$0xff]
      %v588 = vld [vmem:[%s445 + $0x70] sm:$0xff]
      %v589 = vld [vmem:[%s445 + $0x78] sm:$0xff]
      %v590 = vld [vmem:[%s445 + $0x80] sm:$0xff]
      %v591 = vld [vmem:[%s445 + $0x88] sm:$0xff]
      %v592 = vld [vmem:[%s445 + $0x90] sm:$0xff]
      %v593 = vld [vmem:[%s445 + $0x98] sm:$0xff]
      %v594 = vld [vmem:[%s445 + $0xa0] sm:$0xff]
      %v595 = vld [vmem:[%s445 + $0xa8] sm:$0xff]
      %v596 = vld [vmem:[%s445 + $0xb0] sm:$0xff]
      %v597 = vld [vmem:[%s445 + $0xb8] sm:$0xff]
      %v598 = vld [vmem:[%s445 + $0xc0] sm:$0xff]
      %v599 = vld [vmem:[%s445 + $0xc8] sm:$0xff]
      %v600 = vld [vmem:[%s445 + $0xd0] sm:$0xff]
      %v601 = vld [vmem:[%s445 + $0xd8] sm:$0xff]
      %v602 = vld [vmem:[%s445 + $0xe0] sm:$0xff]
      %v603 = vld [vmem:[%s445 + $0xe8] sm:$0xff]
      %v604 = vld [vmem:[%s445 + $0xf0] sm:$0xff]
      %v605 = vld [vmem:[%s445 + $0xf8] sm:$0xff]
      %v606 = vld [vmem:[%s445 + $0x100] sm:$0xff]
      %v607 = vld [vmem:[%s445 + $0x108] sm:$0xff]
      %v608 = vld [vmem:[%s445 + $0x110] sm:$0xff]
      %v609 = vld [vmem:[%s445 + $0x118] sm:$0xff]
      %v610 = vld [vmem:[%s445 + $0x120] sm:$0xff]
      %v611 = vld [vmem:[%s445 + $0x128] sm:$0xff]
      %v612 = vld [vmem:[%s445 + $0x130] sm:$0xff]
      %v613 = vld [vmem:[%s445 + $0x138] sm:$0xff]
      %v614 = vld [vmem:[%s445 + $0x140] sm:$0xff]
      %v615 = vld [vmem:[%s445 + $0x148] sm:$0xff]
      %v616 = vld [vmem:[%s445 + $0x150] sm:$0xff]
      %v617 = vld [vmem:[%s445 + $0x158] sm:$0xff]
      %v618 = vld [vmem:[%s445 + $0x160] sm:$0xff]
      %v619 = vld [vmem:[%s445 + $0x168] sm:$0xff]
      %v620 = vld [vmem:[%s445 + $0x170] sm:$0xff]
      %v621 = vld [vmem:[%s445 + $0x178] sm:$0xff]
      %v622 = vld [vmem:[%s450] sm:$0xff]
      %v623 = vld [vmem:[%s450 + $0x8] sm:$0xf]
      %v624 = vld [vmem:[%s450 + $0xc] sm:$0xff]
      %v625 = vld [vmem:[%s450 + $0x14] sm:$0xf]
      %v626 = vld [vmem:[%s450 + $0x18] sm:$0xff]
      %v627 = vld [vmem:[%s450 + $0x20] sm:$0xf]
      %v628 = vld [vmem:[%s450 + $0x24] sm:$0xff]
      %v629 = vld [vmem:[%s450 + $0x2c] sm:$0xf]
      %v630 = vld [vmem:[%s450 + $0x30] sm:$0xff]
      %v631 = vld [vmem:[%s450 + $0x38] sm:$0xf]
      %v632 = vld [vmem:[%s450 + $0x3c] sm:$0xff]
      %v633 = vld [vmem:[%s450 + $0x44] sm:$0xf]
      %v634 = vld [vmem:[%s450 + $0x48] sm:$0xff]
      %v635 = vld [vmem:[%s450 + $0x50] sm:$0xf]
      %v636 = vld [vmem:[%s450 + $0x54] sm:$0xff]
      %v637 = vld [vmem:[%s450 + $0x5c] sm:$0xf]
      %v638 = vld [vmem:[%s450 + $0x60] sm:$0xff]
      %v639 = vld [vmem:[%s450 + $0x68] sm:$0xf]
      %v640 = vld [vmem:[%s450 + $0x6c] sm:$0xff]
      %v641 = vld [vmem:[%s450 + $0x74] sm:$0xf]
      %v642 = vld [vmem:[%s450 + $0x78] sm:$0xff]
      %v643 = vld [vmem:[%s450 + $0x80] sm:$0xf]
      %v644 = vld [vmem:[%s450 + $0x84] sm:$0xff]
      %v645 = vld [vmem:[%s450 + $0x8c] sm:$0xf]
      %v646 = vld [vmem:[%s450 + $0x90] sm:$0xff]
      %v647 = vld [vmem:[%s450 + $0x98] sm:$0xf]
      %v648 = vld [vmem:[%s450 + $0x9c] sm:$0xff]
      %v649 = vld [vmem:[%s450 + $0xa4] sm:$0xf]
      %v650 = vld [vmem:[%s450 + $0xa8] sm:$0xff]
      %v651 = vld [vmem:[%s450 + $0xb0] sm:$0xf]
      %v652 = vld [vmem:[%s450 + $0xb4] sm:$0xff]
      %v653 = vld [vmem:[%s450 + $0xbc] sm:$0xf]
      %v654 = vld [vmem:[%s450 + $0xc0] sm:$0xff]
      %v655 = vld [vmem:[%s450 + $0xc8] sm:$0xf]
      %v656 = vld [vmem:[%s450 + $0xcc] sm:$0xff]
      %v657 = vld [vmem:[%s450 + $0xd4] sm:$0xf]
      %v658 = vld [vmem:[%s450 + $0xd8] sm:$0xff]
      %v659 = vld [vmem:[%s450 + $0xe0] sm:$0xf]
      %v660 = vld [vmem:[%s450 + $0xe4] sm:$0xff]
      %v661 = vld [vmem:[%s450 + $0xec] sm:$0xf]
      %v662 = vld [vmem:[%s450 + $0xf0] sm:$0xff]
      %v663 = vld [vmem:[%s450 + $0xf8] sm:$0xf]
      %v664 = vld [vmem:[%s450 + $0xfc] sm:$0xff]
      %v665 = vld [vmem:[%s450 + $0x104] sm:$0xf]
      %v666 = vld [vmem:[%s450 + $0x108] sm:$0xff]
      %v667 = vld [vmem:[%s450 + $0x110] sm:$0xf]
      %v668 = vld [vmem:[%s450 + $0x114] sm:$0xff]
      %v669 = vld [vmem:[%s450 + $0x11c] sm:$0xf]
      %v670 = vld [vmem:[%s450 + $0x120] sm:$0xff]
      %v671 = vld [vmem:[%s450 + $0x128] sm:$0xf]
      %v672 = vld [vmem:[%s450 + $0x12c] sm:$0xff]
      %v673 = vld [vmem:[%s450 + $0x134] sm:$0xf]
      %v674 = vld [vmem:[%s450 + $0x138] sm:$0xff]
      %v675 = vld [vmem:[%s450 + $0x140] sm:$0xf]
      %v676 = vld [vmem:[%s450 + $0x144] sm:$0xff]
      %v677 = vld [vmem:[%s450 + $0x14c] sm:$0xf]
      %v678 = vld [vmem:[%s450 + $0x150] sm:$0xff]
      %v679 = vld [vmem:[%s450 + $0x158] sm:$0xf]
      %v680 = vld [vmem:[%s450 + $0x15c] sm:$0xff]
      %v681 = vld [vmem:[%s450 + $0x164] sm:$0xf]
      %v682 = vld [vmem:[%s450 + $0x168] sm:$0xff]
      %v683 = vld [vmem:[%s450 + $0x170] sm:$0xf]
      %v684 = vld [vmem:[%s450 + $0x174] sm:$0xff]
      %v685 = vld [vmem:[%s450 + $0x17c] sm:$0xf]
      %v686 = vld [vmem:[%s450 + $0x180] sm:$0xff]
      %v687 = vld [vmem:[%s450 + $0x188] sm:$0xf]
      %v688 = vld [vmem:[%s450 + $0x18c] sm:$0xff]
      %v689 = vld [vmem:[%s450 + $0x194] sm:$0xf]
      %v690 = vld [vmem:[%s450 + $0x198] sm:$0xff]
      %v691 = vld [vmem:[%s450 + $0x1a0] sm:$0xf]
      %v692 = vld [vmem:[%s450 + $0x1a4] sm:$0xff]
      %v693 = vld [vmem:[%s450 + $0x1ac] sm:$0xf]
      %v694 = vld [vmem:[%s450 + $0x1b0] sm:$0xff]
      %v695 = vld [vmem:[%s450 + $0x1b8] sm:$0xf]
      %v696 = vld [vmem:[%s450 + $0x1bc] sm:$0xff]
      %v697 = vld [vmem:[%s450 + $0x1c4] sm:$0xf]
      %v698 = vld [vmem:[%s450 + $0x1c8] sm:$0xff]
      %v699 = vld [vmem:[%s450 + $0x1d0] sm:$0xf]
      %v700 = vld [vmem:[%s450 + $0x1d4] sm:$0xff]
      %v701 = vld [vmem:[%s450 + $0x1dc] sm:$0xf]
      %v702 = vld [vmem:[%s450 + $0x1e0] sm:$0xff]
      %v703 = vld [vmem:[%s450 + $0x1e8] sm:$0xf]
      %v704 = vld [vmem:[%s450 + $0x1ec] sm:$0xff]
      %v705 = vld [vmem:[%s450 + $0x1f4] sm:$0xf]
      %v706 = vld [vmem:[%s450 + $0x1f8] sm:$0xff]
      %v707 = vld [vmem:[%s450 + $0x200] sm:$0xf]
      %v708 = vld [vmem:[%s450 + $0x204] sm:$0xff]
      %v709 = vld [vmem:[%s450 + $0x20c] sm:$0xf]
      %v710 = vld [vmem:[%s450 + $0x210] sm:$0xff]
      %v711 = vld [vmem:[%s450 + $0x218] sm:$0xf]
      %v712 = vld [vmem:[%s450 + $0x21c] sm:$0xff]
      %v713 = vld [vmem:[%s450 + $0x224] sm:$0xf]
      %v714 = vld [vmem:[%s450 + $0x228] sm:$0xff]
      %v715 = vld [vmem:[%s450 + $0x230] sm:$0xf]
      %v716 = vld [vmem:[%s450 + $0x234] sm:$0xff]
      %v717 = vld [vmem:[%s450 + $0x23c] sm:$0xf]
      %v718 = vld [vmem:[%s455] sm:$0xff]
      %v719 = vld [vmem:[%s455 + $0x8] sm:$0xf]
      %v720 = vld [vmem:[%s455 + $0xc] sm:$0xff]
      %v721 = vld [vmem:[%s455 + $0x14] sm:$0xf]
      %v722 = vld [vmem:[%s455 + $0x18] sm:$0xff]
      %v723 = vld [vmem:[%s455 + $0x20] sm:$0xf]
      %v724 = vld [vmem:[%s455 + $0x24] sm:$0xff]
      %v725 = vld [vmem:[%s455 + $0x2c] sm:$0xf]
      %v726 = vld [vmem:[%s455 + $0x30] sm:$0xff]
      %v727 = vld [vmem:[%s455 + $0x38] sm:$0xf]
      %v728 = vld [vmem:[%s455 + $0x3c] sm:$0xff]
      %v729 = vld [vmem:[%s455 + $0x44] sm:$0xf]
      %v730 = vld [vmem:[%s455 + $0x48] sm:$0xff]
      %v731 = vld [vmem:[%s455 + $0x50] sm:$0xf]
      %v732 = vld [vmem:[%s455 + $0x54] sm:$0xff]
      %v733 = vld [vmem:[%s455 + $0x5c] sm:$0xf]
      %v734 = vld [vmem:[%s455 + $0x60] sm:$0xff]
      %v735 = vld [vmem:[%s455 + $0x68] sm:$0xf]
      %v736 = vld [vmem:[%s455 + $0x6c] sm:$0xff]
      %v737 = vld [vmem:[%s455 + $0x74] sm:$0xf]
      %v738 = vld [vmem:[%s455 + $0x78] sm:$0xff]
      %v739 = vld [vmem:[%s455 + $0x80] sm:$0xf]
      %v740 = vld [vmem:[%s455 + $0x84] sm:$0xff]
      %v741 = vld [vmem:[%s455 + $0x8c] sm:$0xf]
      %v742 = vld [vmem:[%s455 + $0x90] sm:$0xff]
      %v743 = vld [vmem:[%s455 + $0x98] sm:$0xf]
      %v744 = vld [vmem:[%s455 + $0x9c] sm:$0xff]
      %v745 = vld [vmem:[%s455 + $0xa4] sm:$0xf]
      %v746 = vld [vmem:[%s455 + $0xa8] sm:$0xff]
      %v747 = vld [vmem:[%s455 + $0xb0] sm:$0xf]
      %v748 = vld [vmem:[%s455 + $0xb4] sm:$0xff]
      %v749 = vld [vmem:[%s455 + $0xbc] sm:$0xf]
      %v750 = vld [vmem:[%s455 + $0xc0] sm:$0xff]
      %v751 = vld [vmem:[%s455 + $0xc8] sm:$0xf]
      %v752 = vld [vmem:[%s455 + $0xcc] sm:$0xff]
      %v753 = vld [vmem:[%s455 + $0xd4] sm:$0xf]
      %v754 = vld [vmem:[%s455 + $0xd8] sm:$0xff]
      %v755 = vld [vmem:[%s455 + $0xe0] sm:$0xf]
      %v756 = vld [vmem:[%s455 + $0xe4] sm:$0xff]
      %v757 = vld [vmem:[%s455 + $0xec] sm:$0xf]
      %v758 = vld [vmem:[%s455 + $0xf0] sm:$0xff]
      %v759 = vld [vmem:[%s455 + $0xf8] sm:$0xf]
      %v760 = vld [vmem:[%s455 + $0xfc] sm:$0xff]
      %v761 = vld [vmem:[%s455 + $0x104] sm:$0xf]
      %v762 = vld [vmem:[%s455 + $0x108] sm:$0xff]
      %v763 = vld [vmem:[%s455 + $0x110] sm:$0xf]
      %v764 = vld [vmem:[%s455 + $0x114] sm:$0xff]
      %v765 = vld [vmem:[%s455 + $0x11c] sm:$0xf]
      %v766 = vld [vmem:[%s455 + $0x120] sm:$0xff]
      %v767 = vld [vmem:[%s455 + $0x128] sm:$0xf]
      %v768 = vld [vmem:[%s455 + $0x12c] sm:$0xff]
      %v769 = vld [vmem:[%s455 + $0x134] sm:$0xf]
      %v770 = vld [vmem:[%s455 + $0x138] sm:$0xff]
      %v771 = vld [vmem:[%s455 + $0x140] sm:$0xf]
      %v772 = vld [vmem:[%s455 + $0x144] sm:$0xff]
      %v773 = vld [vmem:[%s455 + $0x14c] sm:$0xf]
      %v774 = vld [vmem:[%s455 + $0x150] sm:$0xff]
      %v775 = vld [vmem:[%s455 + $0x158] sm:$0xf]
      %v776 = vld [vmem:[%s455 + $0x15c] sm:$0xff]
      %v777 = vld [vmem:[%s455 + $0x164] sm:$0xf]
      %v778 = vld [vmem:[%s455 + $0x168] sm:$0xff]
      %v779 = vld [vmem:[%s455 + $0x170] sm:$0xf]
      %v780 = vld [vmem:[%s455 + $0x174] sm:$0xff]
      %v781 = vld [vmem:[%s455 + $0x17c] sm:$0xf]
      %v782 = vld [vmem:[%s455 + $0x180] sm:$0xff]
      %v783 = vld [vmem:[%s455 + $0x188] sm:$0xf]
      %v784 = vld [vmem:[%s455 + $0x18c] sm:$0xff]
      %v785 = vld [vmem:[%s455 + $0x194] sm:$0xf]
      %v786 = vld [vmem:[%s455 + $0x198] sm:$0xff]
      %v787 = vld [vmem:[%s455 + $0x1a0] sm:$0xf]
      %v788 = vld [vmem:[%s455 + $0x1a4] sm:$0xff]
      %v789 = vld [vmem:[%s455 + $0x1ac] sm:$0xf]
      %v790 = vld [vmem:[%s455 + $0x1b0] sm:$0xff]
      %v791 = vld [vmem:[%s455 + $0x1b8] sm:$0xf]
      %v792 = vld [vmem:[%s455 + $0x1bc] sm:$0xff]
      %v793 = vld [vmem:[%s455 + $0x1c4] sm:$0xf]
      %v794 = vld [vmem:[%s455 + $0x1c8] sm:$0xff]
      %v795 = vld [vmem:[%s455 + $0x1d0] sm:$0xf]
      %v796 = vld [vmem:[%s455 + $0x1d4] sm:$0xff]
      %v797 = vld [vmem:[%s455 + $0x1dc] sm:$0xf]
      %v798 = vld [vmem:[%s455 + $0x1e0] sm:$0xff]
      %v799 = vld [vmem:[%s455 + $0x1e8] sm:$0xf]
      %v800 = vld [vmem:[%s455 + $0x1ec] sm:$0xff]
      %v801 = vld [vmem:[%s455 + $0x1f4] sm:$0xf]
      %v802 = vld [vmem:[%s455 + $0x1f8] sm:$0xff]
      %v803 = vld [vmem:[%s455 + $0x200] sm:$0xf]
      %v804 = vld [vmem:[%s455 + $0x204] sm:$0xff]
      %v805 = vld [vmem:[%s455 + $0x20c] sm:$0xf]
      %v806 = vld [vmem:[%s455 + $0x210] sm:$0xff]
      %v807 = vld [vmem:[%s455 + $0x218] sm:$0xf]
      %v808 = vld [vmem:[%s455 + $0x21c] sm:$0xff]
      %v809 = vld [vmem:[%s455 + $0x224] sm:$0xf]
      %v810 = vld [vmem:[%s455 + $0x228] sm:$0xff]
      %v811 = vld [vmem:[%s455 + $0x230] sm:$0xf]
      %v812 = vld [vmem:[%s455 + $0x234] sm:$0xff]
      %v813 = vld [vmem:[%s455 + $0x23c] sm:$0xf]
      %v814 = vpack.c.bf16 %v479, %v478
      %v815 = vpack.c.bf16 %v481, %v480
      %v816 = vpack.c.bf16 %v483, %v482
      %v817 = vpack.c.bf16 %v485, %v484
      %v818 = vpack.c.bf16 %v487, %v486
      %v819 = vpack.c.bf16 %v489, %v488
      %v820 = vpack.c.bf16 %v491, %v490
      %v821 = vpack.c.bf16 %v493, %v492
      %v822 = vpack.c.bf16 %v495, %v494
      %v823 = vpack.c.bf16 %v497, %v496
      %v824 = vpack.c.bf16 %v499, %v498
      %v825 = vpack.c.bf16 %v501, %v500
      %v826 = vpack.c.bf16 %v503, %v502
      %v827 = vpack.c.bf16 %v505, %v504
      %v828 = vpack.c.bf16 %v507, %v506
      %v829 = vpack.c.bf16 %v509, %v508
      %v830 = vpack.c.bf16 %v511, %v510
      %v831 = vpack.c.bf16 %v513, %v512
      %v832 = vpack.c.bf16 %v515, %v514
      %v833 = vpack.c.bf16 %v517, %v516
      %v834 = vpack.c.bf16 %v519, %v518
      %v835 = vpack.c.bf16 %v521, %v520
      %v836 = vpack.c.bf16 %v523, %v522
      %v837 = vpack.c.bf16 %v525, %v524
      %v934 = vunpack.c.l.b16 %v622
      %v935 = vunpack.c.h.b16 %v622
      %v936 = vunpack.c.l.b16 %v623
      %v937 = vunpack.c.l.b16 %v624
      %v938 = vunpack.c.h.b16 %v624
      %v939 = vunpack.c.l.b16 %v625
      %v940 = vunpack.c.l.b16 %v626
      %v941 = vunpack.c.h.b16 %v626
      %v942 = vunpack.c.l.b16 %v627
      %v943 = vunpack.c.l.b16 %v628
      %v944 = vunpack.c.h.b16 %v628
      %v945 = vunpack.c.l.b16 %v629
      %v946 = vunpack.c.l.b16 %v630
      %v947 = vunpack.c.h.b16 %v630
      %v948 = vunpack.c.l.b16 %v631
      %v949 = vunpack.c.l.b16 %v632
      %v950 = vunpack.c.h.b16 %v632
      %v951 = vunpack.c.l.b16 %v633
      %v952 = vunpack.c.l.b16 %v634
      %v953 = vunpack.c.h.b16 %v634
      %v954 = vunpack.c.l.b16 %v635
      %v955 = vunpack.c.l.b16 %v636
      %v956 = vunpack.c.h.b16 %v636
      %v957 = vunpack.c.l.b16 %v637
      %v958 = vunpack.c.l.b16 %v638
      %v959 = vunpack.c.h.b16 %v638
      %v960 = vunpack.c.l.b16 %v639
      %v961 = vunpack.c.l.b16 %v640
      %v962 = vunpack.c.h.b16 %v640
      %v963 = vunpack.c.l.b16 %v641
      %v964 = vunpack.c.l.b16 %v642
      %v965 = vunpack.c.h.b16 %v642
      %v966 = vunpack.c.l.b16 %v643
      %v967 = vunpack.c.l.b16 %v644
      %v968 = vunpack.c.h.b16 %v644
      %v969 = vunpack.c.l.b16 %v645
      %v970 = vunpack.c.l.b16 %v646
      %v971 = vunpack.c.h.b16 %v646
      %v972 = vunpack.c.l.b16 %v647
      %v973 = vunpack.c.l.b16 %v648
      %v974 = vunpack.c.h.b16 %v648
      %v975 = vunpack.c.l.b16 %v649
      %v976 = vunpack.c.l.b16 %v650
      %v977 = vunpack.c.h.b16 %v650
      %v978 = vunpack.c.l.b16 %v651
      %v979 = vunpack.c.l.b16 %v652
      %v980 = vunpack.c.h.b16 %v652
      %v981 = vunpack.c.l.b16 %v653
      %v982 = vunpack.c.l.b16 %v654
      %v983 = vunpack.c.h.b16 %v654
      %v984 = vunpack.c.l.b16 %v655
      %v985 = vunpack.c.l.b16 %v656
      %v986 = vunpack.c.h.b16 %v656
      %v987 = vunpack.c.l.b16 %v657
      %v988 = vunpack.c.l.b16 %v658
      %v989 = vunpack.c.h.b16 %v658
      %v990 = vunpack.c.l.b16 %v659
      %v991 = vunpack.c.l.b16 %v660
      %v992 = vunpack.c.h.b16 %v660
      %v993 = vunpack.c.l.b16 %v661
      %v994 = vunpack.c.l.b16 %v662
      %v995 = vunpack.c.h.b16 %v662
      %v996 = vunpack.c.l.b16 %v663
      %v997 = vunpack.c.l.b16 %v664
      %v998 = vunpack.c.h.b16 %v664
      %v999 = vunpack.c.l.b16 %v665
      %v1000 = vunpack.c.l.b16 %v666
      %v1001 = vunpack.c.h.b16 %v666
      %v1002 = vunpack.c.l.b16 %v667
      %v1003 = vunpack.c.l.b16 %v668
      %v1004 = vunpack.c.h.b16 %v668
      %v1005 = vunpack.c.l.b16 %v669
      %v1006 = vunpack.c.l.b16 %v670
      %v1007 = vunpack.c.h.b16 %v670
      %v1008 = vunpack.c.l.b16 %v671
      %v1009 = vunpack.c.l.b16 %v672
      %v1010 = vunpack.c.h.b16 %v672
      %v1011 = vunpack.c.l.b16 %v673
      %v1012 = vunpack.c.l.b16 %v674
      %v1013 = vunpack.c.h.b16 %v674
      %v1014 = vunpack.c.l.b16 %v675
      %v1015 = vunpack.c.l.b16 %v676
      %v1016 = vunpack.c.h.b16 %v676
      %v1017 = vunpack.c.l.b16 %v677
      %v1018 = vunpack.c.l.b16 %v678
      %v1019 = vunpack.c.h.b16 %v678
      %v1020 = vunpack.c.l.b16 %v679
      %v1021 = vunpack.c.l.b16 %v680
      %v1022 = vunpack.c.h.b16 %v680
      %v1023 = vunpack.c.l.b16 %v681
      %v1024 = vunpack.c.l.b16 %v682
      %v1025 = vunpack.c.h.b16 %v682
      %v1026 = vunpack.c.l.b16 %v683
      %v1027 = vunpack.c.l.b16 %v684
      %v1028 = vunpack.c.h.b16 %v684
      %v1029 = vunpack.c.l.b16 %v685
      %v1030 = vunpack.c.l.b16 %v686
      %v1031 = vunpack.c.h.b16 %v686
      %v1032 = vunpack.c.l.b16 %v687
      %v1033 = vunpack.c.l.b16 %v688
      %v1034 = vunpack.c.h.b16 %v688
      %v1035 = vunpack.c.l.b16 %v689
      %v1036 = vunpack.c.l.b16 %v690
      %v1037 = vunpack.c.h.b16 %v690
      %v1038 = vunpack.c.l.b16 %v691
      %v1039 = vunpack.c.l.b16 %v692
      %v1040 = vunpack.c.h.b16 %v692
      %v1041 = vunpack.c.l.b16 %v693
      %v1042 = vunpack.c.l.b16 %v694
      %v1043 = vunpack.c.h.b16 %v694
      %v1044 = vunpack.c.l.b16 %v695
      %v1045 = vunpack.c.l.b16 %v696
      %v1046 = vunpack.c.h.b16 %v696
      %v1047 = vunpack.c.l.b16 %v697
      %v1048 = vunpack.c.l.b16 %v698
      %v1049 = vunpack.c.h.b16 %v698
      %v1050 = vunpack.c.l.b16 %v699
      %v1051 = vunpack.c.l.b16 %v700
      %v1052 = vunpack.c.h.b16 %v700
      %v1053 = vunpack.c.l.b16 %v701
      %v1054 = vunpack.c.l.b16 %v702
      %v1055 = vunpack.c.h.b16 %v702
      %v1056 = vunpack.c.l.b16 %v703
      %v1057 = vunpack.c.l.b16 %v704
      %v1058 = vunpack.c.h.b16 %v704
      %v1059 = vunpack.c.l.b16 %v705
      %v1060 = vunpack.c.l.b16 %v706
      %v1061 = vunpack.c.h.b16 %v706
      %v1062 = vunpack.c.l.b16 %v707
      %v1063 = vunpack.c.l.b16 %v708
      %v1064 = vunpack.c.h.b16 %v708
      %v1065 = vunpack.c.l.b16 %v709
      %v1066 = vunpack.c.l.b16 %v710
      %v1067 = vunpack.c.h.b16 %v710
      %v1068 = vunpack.c.l.b16 %v711
      %v1069 = vunpack.c.l.b16 %v712
      %v1070 = vunpack.c.h.b16 %v712
      %v1071 = vunpack.c.l.b16 %v713
      %v1072 = vunpack.c.l.b16 %v714
      %v1073 = vunpack.c.h.b16 %v714
      %v1074 = vunpack.c.l.b16 %v715
      %v1075 = vunpack.c.l.b16 %v716
      %v1076 = vunpack.c.h.b16 %v716
      %v1077 = vunpack.c.l.b16 %v717
      %v1078 = vpack.c.b16 %v937, %v934
      %v1079 = vpack.c.b16 %v938, %v935
      %v1080 = vpack.c.b16 %v939, %v936
      %v1081 = vpack.c.b16 %v943, %v940
      %v1082 = vpack.c.b16 %v944, %v941
      %v1083 = vpack.c.b16 %v945, %v942
      %v1084 = vpack.c.b16 %v949, %v946
      %v1085 = vpack.c.b16 %v950, %v947
      %v1086 = vpack.c.b16 %v951, %v948
      %v1087 = vpack.c.b16 %v955, %v952
      %v1088 = vpack.c.b16 %v956, %v953
      %v1089 = vpack.c.b16 %v957, %v954
      %v1090 = vpack.c.b16 %v961, %v958
      %v1091 = vpack.c.b16 %v962, %v959
      %v1092 = vpack.c.b16 %v963, %v960
      %v1093 = vpack.c.b16 %v967, %v964
      %v1094 = vpack.c.b16 %v968, %v965
      %v1095 = vpack.c.b16 %v969, %v966
      %v1096 = vpack.c.b16 %v973, %v970
      %v1097 = vpack.c.b16 %v974, %v971
      %v1098 = vpack.c.b16 %v975, %v972
      %v1099 = vpack.c.b16 %v979, %v976
      %v1100 = vpack.c.b16 %v980, %v977
      %v1101 = vpack.c.b16 %v981, %v978
      %v1102 = vpack.c.b16 %v985, %v982
      %v1103 = vpack.c.b16 %v986, %v983
      %v1104 = vpack.c.b16 %v987, %v984
      %v1105 = vpack.c.b16 %v991, %v988
      %v1106 = vpack.c.b16 %v992, %v989
      %v1107 = vpack.c.b16 %v993, %v990
      %v1108 = vpack.c.b16 %v997, %v994
      %v1109 = vpack.c.b16 %v998, %v995
      %v1110 = vpack.c.b16 %v999, %v996
      %v1111 = vpack.c.b16 %v1003, %v1000
      %v1112 = vpack.c.b16 %v1004, %v1001
      %v1113 = vpack.c.b16 %v1005, %v1002
      %v1114 = vpack.c.b16 %v1009, %v1006
      %v1115 = vpack.c.b16 %v1010, %v1007
      %v1116 = vpack.c.b16 %v1011, %v1008
      %v1117 = vpack.c.b16 %v1015, %v1012
      %v1118 = vpack.c.b16 %v1016, %v1013
      %v1119 = vpack.c.b16 %v1017, %v1014
      %v1120 = vpack.c.b16 %v1021, %v1018
      %v1121 = vpack.c.b16 %v1022, %v1019
      %v1122 = vpack.c.b16 %v1023, %v1020
      %v1123 = vpack.c.b16 %v1027, %v1024
      %v1124 = vpack.c.b16 %v1028, %v1025
      %v1125 = vpack.c.b16 %v1029, %v1026
      %v1126 = vpack.c.b16 %v1033, %v1030
      %v1127 = vpack.c.b16 %v1034, %v1031
      %v1128 = vpack.c.b16 %v1035, %v1032
      %v1129 = vpack.c.b16 %v1039, %v1036
      %v1130 = vpack.c.b16 %v1040, %v1037
      %v1131 = vpack.c.b16 %v1041, %v1038
      %v1132 = vpack.c.b16 %v1045, %v1042
      %v1133 = vpack.c.b16 %v1046, %v1043
      %v1134 = vpack.c.b16 %v1047, %v1044
      %v1135 = vpack.c.b16 %v1051, %v1048
      %v1136 = vpack.c.b16 %v1052, %v1049
      %v1137 = vpack.c.b16 %v1053, %v1050
      %v1138 = vpack.c.b16 %v1057, %v1054
      %v1139 = vpack.c.b16 %v1058, %v1055
      %v1140 = vpack.c.b16 %v1059, %v1056
      %v1141 = vpack.c.b16 %v1063, %v1060
      %v1142 = vpack.c.b16 %v1064, %v1061
      %v1143 = vpack.c.b16 %v1065, %v1062
      %v1144 = vpack.c.b16 %v1069, %v1066
      %v1145 = vpack.c.b16 %v1070, %v1067
      %v1146 = vpack.c.b16 %v1071, %v1068
      %v1147 = vpack.c.b16 %v1075, %v1072
      %v1148 = vpack.c.b16 %v1076, %v1073
      %v1149 = vpack.c.b16 %v1077, %v1074
      %1222 = vmatpush.bf16.msra.mxu0 %v821
      %1223 = vmatpush.bf16.msra.mxu0 %v820
      %1224 = vmatpush.bf16.msra.mxu0 %v819
      %1225 = vmatpush.bf16.msra.mxu0 %v818
      %1226 = vmatpush.bf16.msra.mxu0 %v817
      %1227 = vmatpush.bf16.msra.mxu0 %v816
      %1228 = vmatpush.bf16.msra.mxu0 %v815
      %1229 = vmatpush.bf16.msra.mxu0 %v814
      %1230 = vmatmul.bf16.gmra.mxu0 %v1078
      %v1231 = vpop.f32.mrf.mxu0
      %v1232 = vadd.f32 0.0, %v1231
      %v1233 = vpop.f32.mrf.mxu0
      %v1234 = vadd.f32 0.0, %v1233
      %1235 = vmatmul.bf16.gmra.mxu0 %v1081
      %v1236 = vpop.f32.mrf.mxu0
      %v1237 = vadd.f32 0.0, %v1236
      %v1238 = vpop.f32.mrf.mxu0
      %v1239 = vadd.f32 0.0, %v1238
      %1240 = vmatmul.bf16.gmra.mxu0 %v1084
      %v1241 = vpop.f32.mrf.mxu0
      %v1242 = vadd.f32 0.0, %v1241
      %v1243 = vpop.f32.mrf.mxu0
      %v1244 = vadd.f32 0.0, %v1243
      %1245 = vmatmul.bf16.gmra.mxu0 %v1087
      %v1246 = vpop.f32.mrf.mxu0
      %v1247 = vadd.f32 0.0, %v1246
      %v1248 = vpop.f32.mrf.mxu0
      %v1249 = vadd.f32 0.0, %v1248
      %1250 = vmatmul.bf16.gmra.mxu0 %v1090
      %v1251 = vpop.f32.mrf.mxu0
      %v1252 = vadd.f32 0.0, %v1251
      %v1253 = vpop.f32.mrf.mxu0
      %v1254 = vadd.f32 0.0, %v1253
      %1255 = vmatmul.bf16.gmra.mxu0 %v1093
      %v1256 = vpop.f32.mrf.mxu0
      %v1257 = vadd.f32 0.0, %v1256
      %v1258 = vpop.f32.mrf.mxu0
      %v1259 = vadd.f32 0.0, %v1258
      %1260 = vmatmul.bf16.gmra.mxu0 %v1096
      %v1261 = vpop.f32.mrf.mxu0
      %v1262 = vadd.f32 0.0, %v1261
      %v1263 = vpop.f32.mrf.mxu0
      %v1264 = vadd.f32 0.0, %v1263
      %1265 = vmatmul.bf16.gmra.mxu0 %v1099
      %v1266 = vpop.f32.mrf.mxu0
      %v1267 = vadd.f32 0.0, %v1266
      %v1268 = vpop.f32.mrf.mxu0
      %v1269 = vadd.f32 0.0, %v1268
      %1270 = vmatmul.bf16.gmra.mxu0 %v1102
      %v1271 = vpop.f32.mrf.mxu0
      %v1272 = vadd.f32 0.0, %v1271
      %v1273 = vpop.f32.mrf.mxu0
      %v1274 = vadd.f32 0.0, %v1273
      %1275 = vmatmul.bf16.gmra.mxu0 %v1105
      %v1276 = vpop.f32.mrf.mxu0
      %v1277 = vadd.f32 0.0, %v1276
      %v1278 = vpop.f32.mrf.mxu0
      %v1279 = vadd.f32 0.0, %v1278
      %1280 = vmatmul.bf16.gmra.mxu0 %v1108
      %v1281 = vpop.f32.mrf.mxu0
      %v1282 = vadd.f32 0.0, %v1281
      %v1283 = vpop.f32.mrf.mxu0
      %v1284 = vadd.f32 0.0, %v1283
      %1285 = vmatmul.bf16.gmra.mxu0 %v1111
      %v1286 = vpop.f32.mrf.mxu0
      %v1287 = vadd.f32 0.0, %v1286
      %v1288 = vpop.f32.mrf.mxu0
      %v1289 = vadd.f32 0.0, %v1288
      %1290 = vmatmul.bf16.gmra.mxu0 %v1114
      %v1291 = vpop.f32.mrf.mxu0
      %v1292 = vadd.f32 0.0, %v1291
      %v1293 = vpop.f32.mrf.mxu0
      %v1294 = vadd.f32 0.0, %v1293
      %1295 = vmatmul.bf16.gmra.mxu0 %v1117
      %v1296 = vpop.f32.mrf.mxu0
      %v1297 = vadd.f32 0.0, %v1296
      %v1298 = vpop.f32.mrf.mxu0
      %v1299 = vadd.f32 0.0, %v1298
      %1300 = vmatmul.bf16.gmra.mxu0 %v1120
      %v1301 = vpop.f32.mrf.mxu0
      %v1302 = vadd.f32 0.0, %v1301
      %v1303 = vpop.f32.mrf.mxu0
      %v1304 = vadd.f32 0.0, %v1303
      %1305 = vmatmul.bf16.gmra.mxu0 %v1123
      %v1306 = vpop.f32.mrf.mxu0
      %v1307 = vadd.f32 0.0, %v1306
      %v1308 = vpop.f32.mrf.mxu0
      %v1309 = vadd.f32 0.0, %v1308
      %1310 = vmatmul.bf16.gmra.mxu0 %v1126
      %v1311 = vpop.f32.mrf.mxu0
      %v1312 = vadd.f32 0.0, %v1311
      %v1313 = vpop.f32.mrf.mxu0
      %v1314 = vadd.f32 0.0, %v1313
      %1315 = vmatmul.bf16.gmra.mxu0 %v1129
      %v1316 = vpop.f32.mrf.mxu0
      %v1317 = vadd.f32 0.0, %v1316
      %v1318 = vpop.f32.mrf.mxu0
      %v1319 = vadd.f32 0.0, %v1318
      %1320 = vmatmul.bf16.gmra.mxu0 %v1132
      %v1321 = vpop.f32.mrf.mxu0
      %v1322 = vadd.f32 0.0, %v1321
      %v1323 = vpop.f32.mrf.mxu0
      %v1324 = vadd.f32 0.0, %v1323
      %1325 = vmatmul.bf16.gmra.mxu0 %v1135
      %v1326 = vpop.f32.mrf.mxu0
      %v1327 = vadd.f32 0.0, %v1326
      %v1328 = vpop.f32.mrf.mxu0
      %v1329 = vadd.f32 0.0, %v1328
      %1330 = vmatmul.bf16.gmra.mxu0 %v1138
      %v1331 = vpop.f32.mrf.mxu0
      %v1332 = vadd.f32 0.0, %v1331
      %v1333 = vpop.f32.mrf.mxu0
      %v1334 = vadd.f32 0.0, %v1333
      %1335 = vmatmul.bf16.gmra.mxu0 %v1141
      %v1336 = vpop.f32.mrf.mxu0
      %v1337 = vadd.f32 0.0, %v1336
      %v1338 = vpop.f32.mrf.mxu0
      %v1339 = vadd.f32 0.0, %v1338
      %1340 = vmatmul.bf16.gmra.mxu0 %v1144
      %v1341 = vpop.f32.mrf.mxu0
      %v1342 = vadd.f32 0.0, %v1341
      %v1343 = vpop.f32.mrf.mxu0
      %v1344 = vadd.f32 0.0, %v1343
      %1345 = vmatmul.bf16.gmra.mxu0 %v1147
      %v1346 = vpop.f32.mrf.mxu0
      %v1347 = vadd.f32 0.0, %v1346
      %v1348 = vpop.f32.mrf.mxu0
      %v1349 = vadd.f32 0.0, %v1348
      %1350 = vdwg.mxu0
      %1351 = vmatpush.bf16.msra.mxu0 %v829
      %1352 = vmatpush.bf16.msra.mxu0 %v828
      %1353 = vmatpush.bf16.msra.mxu0 %v827
      %1354 = vmatpush.bf16.msra.mxu0 %v826
      %1355 = vmatpush.bf16.msra.mxu0 %v825
      %1356 = vmatpush.bf16.msra.mxu0 %v824
      %1357 = vmatpush.bf16.msra.mxu0 %v823
      %1358 = vmatpush.bf16.msra.mxu0 %v822
      %1359 = vmatmul.bf16.gmra.mxu0 %v1079
      %v1360 = vpop.f32.mrf.mxu0
      %v1361 = vadd.f32 %v1232, %v1360
      %v1362 = vpop.f32.mrf.mxu0
      %v1363 = vadd.f32 %v1234, %v1362
      %1364 = vmatmul.bf16.gmra.mxu0 %v1082
      %v1365 = vpop.f32.mrf.mxu0
      %v1366 = vadd.f32 %v1237, %v1365
      %v1367 = vpop.f32.mrf.mxu0
      %v1368 = vadd.f32 %v1239, %v1367
      %1369 = vmatmul.bf16.gmra.mxu0 %v1085
      %v1370 = vpop.f32.mrf.mxu0
      %v1371 = vadd.f32 %v1242, %v1370
      %v1372 = vpop.f32.mrf.mxu0
      %v1373 = vadd.f32 %v1244, %v1372
      %1374 = vmatmul.bf16.gmra.mxu0 %v1088
      %v1375 = vpop.f32.mrf.mxu0
      %v1376 = vadd.f32 %v1247, %v1375
      %v1377 = vpop.f32.mrf.mxu0
      %v1378 = vadd.f32 %v1249, %v1377
      %1379 = vmatmul.bf16.gmra.mxu0 %v1091
      %v1380 = vpop.f32.mrf.mxu0
      %v1381 = vadd.f32 %v1252, %v1380
      %v1382 = vpop.f32.mrf.mxu0
      %v1383 = vadd.f32 %v1254, %v1382
      %1384 = vmatmul.bf16.gmra.mxu0 %v1094
      %v1385 = vpop.f32.mrf.mxu0
      %v1386 = vadd.f32 %v1257, %v1385
      %v1387 = vpop.f32.mrf.mxu0
      %v1388 = vadd.f32 %v1259, %v1387
      %1389 = vmatmul.bf16.gmra.mxu0 %v1097
      %v1390 = vpop.f32.mrf.mxu0
      %v1391 = vadd.f32 %v1262, %v1390
      %v1392 = vpop.f32.mrf.mxu0
      %v1393 = vadd.f32 %v1264, %v1392
      %1394 = vmatmul.bf16.gmra.mxu0 %v1100
      %v1395 = vpop.f32.mrf.mxu0
      %v1396 = vadd.f32 %v1267, %v1395
      %v1397 = vpop.f32.mrf.mxu0
      %v1398 = vadd.f32 %v1269, %v1397
      %1399 = vmatmul.bf16.gmra.mxu0 %v1103
      %v1400 = vpop.f32.mrf.mxu0
      %v1401 = vadd.f32 %v1272, %v1400
      %v1402 = vpop.f32.mrf.mxu0
      %v1403 = vadd.f32 %v1274, %v1402
      %1404 = vmatmul.bf16.gmra.mxu0 %v1106
      %v1405 = vpop.f32.mrf.mxu0
      %v1406 = vadd.f32 %v1277, %v1405
      %v1407 = vpop.f32.mrf.mxu0
      %v1408 = vadd.f32 %v1279, %v1407
      %1409 = vmatmul.bf16.gmra.mxu0 %v1109
      %v1410 = vpop.f32.mrf.mxu0
      %v1411 = vadd.f32 %v1282, %v1410
      %v1412 = vpop.f32.mrf.mxu0
      %v1413 = vadd.f32 %v1284, %v1412
      %1414 = vmatmul.bf16.gmra.mxu0 %v1112
      %v1415 = vpop.f32.mrf.mxu0
      %v1416 = vadd.f32 %v1287, %v1415
      %v1417 = vpop.f32.mrf.mxu0
      %v1418 = vadd.f32 %v1289, %v1417
      %1419 = vmatmul.bf16.gmra.mxu0 %v1115
      %v1420 = vpop.f32.mrf.mxu0
      %v1421 = vadd.f32 %v1292, %v1420
      %v1422 = vpop.f32.mrf.mxu0
      %v1423 = vadd.f32 %v1294, %v1422
      %1424 = vmatmul.bf16.gmra.mxu0 %v1118
      %v1425 = vpop.f32.mrf.mxu0
      %v1426 = vadd.f32 %v1297, %v1425
      %v1427 = vpop.f32.mrf.mxu0
      %v1428 = vadd.f32 %v1299, %v1427
      %1429 = vmatmul.bf16.gmra.mxu0 %v1121
      %v1430 = vpop.f32.mrf.mxu0
      %v1431 = vadd.f32 %v1302, %v1430
      %v1432 = vpop.f32.mrf.mxu0
      %v1433 = vadd.f32 %v1304, %v1432
      %1434 = vmatmul.bf16.gmra.mxu0 %v1124
      %v1435 = vpop.f32.mrf.mxu0
      %v1436 = vadd.f32 %v1307, %v1435
      %v1437 = vpop.f32.mrf.mxu0
      %v1438 = vadd.f32 %v1309, %v1437
      %1439 = vmatmul.bf16.gmra.mxu0 %v1127
      %v1440 = vpop.f32.mrf.mxu0
      %v1441 = vadd.f32 %v1312, %v1440
      %v1442 = vpop.f32.mrf.mxu0
      %v1443 = vadd.f32 %v1314, %v1442
      %1444 = vmatmul.bf16.gmra.mxu0 %v1130
      %v1445 = vpop.f32.mrf.mxu0
      %v1446 = vadd.f32 %v1317, %v1445
      %v1447 = vpop.f32.mrf.mxu0
      %v1448 = vadd.f32 %v1319, %v1447
      %1449 = vmatmul.bf16.gmra.mxu0 %v1133
      %v1450 = vpop.f32.mrf.mxu0
      %v1451 = vadd.f32 %v1322, %v1450
      %v1452 = vpop.f32.mrf.mxu0
      %v1453 = vadd.f32 %v1324, %v1452
      %1454 = vmatmul.bf16.gmra.mxu0 %v1136
      %v1455 = vpop.f32.mrf.mxu0
      %v1456 = vadd.f32 %v1327, %v1455
      %v1457 = vpop.f32.mrf.mxu0
      %v1458 = vadd.f32 %v1329, %v1457
      %1459 = vmatmul.bf16.gmra.mxu0 %v1139
      %v1460 = vpop.f32.mrf.mxu0
      %v1461 = vadd.f32 %v1332, %v1460
      %v1462 = vpop.f32.mrf.mxu0
      %v1463 = vadd.f32 %v1334, %v1462
      %1464 = vmatmul.bf16.gmra.mxu0 %v1142
      %v1465 = vpop.f32.mrf.mxu0
      %v1466 = vadd.f32 %v1337, %v1465
      %v1467 = vpop.f32.mrf.mxu0
      %v1468 = vadd.f32 %v1339, %v1467
      %1469 = vmatmul.bf16.gmra.mxu0 %v1145
      %v1470 = vpop.f32.mrf.mxu0
      %v1471 = vadd.f32 %v1342, %v1470
      %v1472 = vpop.f32.mrf.mxu0
      %v1473 = vadd.f32 %v1344, %v1472
      %1474 = vmatmul.bf16.gmra.mxu0 %v1148
      %v1475 = vpop.f32.mrf.mxu0
      %v1476 = vadd.f32 %v1347, %v1475
      %v1477 = vpop.f32.mrf.mxu0
      %v1478 = vadd.f32 %v1349, %v1477
      %1479 = vdwg.mxu0
      %1480 = vmatpush.bf16.msra.mxu0 %v837
      %1481 = vmatpush.bf16.msra.mxu0 %v836
      %1482 = vmatpush.bf16.msra.mxu0 %v835
      %1483 = vmatpush.bf16.msra.mxu0 %v834
      %1484 = vmatpush.bf16.msra.mxu0 %v833
      %1485 = vmatpush.bf16.msra.mxu0 %v832
      %1486 = vmatpush.bf16.msra.mxu0 %v831
      %1487 = vmatpush.bf16.msra.mxu0 %v830
      %1488 = vmatmul.bf16.gmra.mxu0 %v1080
      %v1489 = vpop.f32.mrf.mxu0
      %v1490 = vadd.f32 %v1361, %v1489
      %v1491 = vpop.f32.mrf.mxu0
      %v1492 = vadd.f32 %v1363, %v1491
      %1493 = vmatmul.bf16.gmra.mxu0 %v1083
      %v1494 = vpop.f32.mrf.mxu0
      %v1495 = vadd.f32 %v1366, %v1494
      %v1496 = vpop.f32.mrf.mxu0
      %v1497 = vadd.f32 %v1368, %v1496
      %1498 = vmatmul.bf16.gmra.mxu0 %v1086
      %v1499 = vpop.f32.mrf.mxu0
      %v1500 = vadd.f32 %v1371, %v1499
      %v1501 = vpop.f32.mrf.mxu0
      %v1502 = vadd.f32 %v1373, %v1501
      %1503 = vmatmul.bf16.gmra.mxu0 %v1089
      %v1504 = vpop.f32.mrf.mxu0
      %v1505 = vadd.f32 %v1376, %v1504
      %v1506 = vpop.f32.mrf.mxu0
      %v1507 = vadd.f32 %v1378, %v1506
      %1508 = vmatmul.bf16.gmra.mxu0 %v1092
      %v1509 = vpop.f32.mrf.mxu0
      %v1510 = vadd.f32 %v1381, %v1509
      %v1511 = vpop.f32.mrf.mxu0
      %v1512 = vadd.f32 %v1383, %v1511
      %1513 = vmatmul.bf16.gmra.mxu0 %v1095
      %v1514 = vpop.f32.mrf.mxu0
      %v1515 = vadd.f32 %v1386, %v1514
      %v1516 = vpop.f32.mrf.mxu0
      %v1517 = vadd.f32 %v1388, %v1516
      %1518 = vmatmul.bf16.gmra.mxu0 %v1098
      %v1519 = vpop.f32.mrf.mxu0
      %v1520 = vadd.f32 %v1391, %v1519
      %v1521 = vpop.f32.mrf.mxu0
      %v1522 = vadd.f32 %v1393, %v1521
      %1523 = vmatmul.bf16.gmra.mxu0 %v1101
      %v1524 = vpop.f32.mrf.mxu0
      %v1525 = vadd.f32 %v1396, %v1524
      %v1526 = vpop.f32.mrf.mxu0
      %v1527 = vadd.f32 %v1398, %v1526
      %1528 = vmatmul.bf16.gmra.mxu0 %v1104
      %v1529 = vpop.f32.mrf.mxu0
      %v1530 = vadd.f32 %v1401, %v1529
      %v1531 = vpop.f32.mrf.mxu0
      %v1532 = vadd.f32 %v1403, %v1531
      %1533 = vmatmul.bf16.gmra.mxu0 %v1107
      %v1534 = vpop.f32.mrf.mxu0
      %v1535 = vadd.f32 %v1406, %v1534
      %v1536 = vpop.f32.mrf.mxu0
      %v1537 = vadd.f32 %v1408, %v1536
      %1538 = vmatmul.bf16.gmra.mxu0 %v1110
      %v1539 = vpop.f32.mrf.mxu0
      %v1540 = vadd.f32 %v1411, %v1539
      %v1541 = vpop.f32.mrf.mxu0
      %v1542 = vadd.f32 %v1413, %v1541
      %1543 = vmatmul.bf16.gmra.mxu0 %v1113
      %v1544 = vpop.f32.mrf.mxu0
      %v1545 = vadd.f32 %v1416, %v1544
      %v1546 = vpop.f32.mrf.mxu0
      %v1547 = vadd.f32 %v1418, %v1546
      %1548 = vmatmul.bf16.gmra.mxu0 %v1116
      %v1549 = vpop.f32.mrf.mxu0
      %v1550 = vadd.f32 %v1421, %v1549
      %v1551 = vpop.f32.mrf.mxu0
      %v1552 = vadd.f32 %v1423, %v1551
      %1553 = vmatmul.bf16.gmra.mxu0 %v1119
      %v1554 = vpop.f32.mrf.mxu0
      %v1555 = vadd.f32 %v1426, %v1554
      %v1556 = vpop.f32.mrf.mxu0
      %v1557 = vadd.f32 %v1428, %v1556
      %1558 = vmatmul.bf16.gmra.mxu0 %v1122
      %v1559 = vpop.f32.mrf.mxu0
      %v1560 = vadd.f32 %v1431, %v1559
      %v1561 = vpop.f32.mrf.mxu0
      %v1562 = vadd.f32 %v1433, %v1561
      %1563 = vmatmul.bf16.gmra.mxu0 %v1125
      %v1564 = vpop.f32.mrf.mxu0
      %v1565 = vadd.f32 %v1436, %v1564
      %v1566 = vpop.f32.mrf.mxu0
      %v1567 = vadd.f32 %v1438, %v1566
      %1568 = vmatmul.bf16.gmra.mxu0 %v1128
      %v1569 = vpop.f32.mrf.mxu0
      %v1570 = vadd.f32 %v1441, %v1569
      %v1571 = vpop.f32.mrf.mxu0
      %v1572 = vadd.f32 %v1443, %v1571
      %1573 = vmatmul.bf16.gmra.mxu0 %v1131
      %v1574 = vpop.f32.mrf.mxu0
      %v1575 = vadd.f32 %v1446, %v1574
      %v1576 = vpop.f32.mrf.mxu0
      %v1577 = vadd.f32 %v1448, %v1576
      %1578 = vmatmul.bf16.gmra.mxu0 %v1134
      %v1579 = vpop.f32.mrf.mxu0
      %v1580 = vadd.f32 %v1451, %v1579
      %v1581 = vpop.f32.mrf.mxu0
      %v1582 = vadd.f32 %v1453, %v1581
      %1583 = vmatmul.bf16.gmra.mxu0 %v1137
      %v1584 = vpop.f32.mrf.mxu0
      %v1585 = vadd.f32 %v1456, %v1584
      %v1586 = vpop.f32.mrf.mxu0
      %v1587 = vadd.f32 %v1458, %v1586
      %1588 = vmatmul.bf16.gmra.mxu0 %v1140
      %v1589 = vpop.f32.mrf.mxu0
      %v1590 = vadd.f32 %v1461, %v1589
      %v1591 = vpop.f32.mrf.mxu0
      %v1592 = vadd.f32 %v1463, %v1591
      %1593 = vmatmul.bf16.gmra.mxu0 %v1143
      %v1594 = vpop.f32.mrf.mxu0
      %v1595 = vadd.f32 %v1466, %v1594
      %v1596 = vpop.f32.mrf.mxu0
      %v1597 = vadd.f32 %v1468, %v1596
      %1598 = vmatmul.bf16.gmra.mxu0 %v1146
      %v1599 = vpop.f32.mrf.mxu0
      %v1600 = vadd.f32 %v1471, %v1599
      %v1601 = vpop.f32.mrf.mxu0
      %v1602 = vadd.f32 %v1473, %v1601
      %1603 = vmatmul.bf16.gmra.mxu0 %v1149
      %v1604 = vpop.f32.mrf.mxu0
      %v1605 = vadd.f32 %v1476, %v1604
      %v1606 = vpop.f32.mrf.mxu0
      %v1607 = vadd.f32 %v1478, %v1606
      %1608 = vdwg.mxu0
      %v1609 = vpack.c.bf16 %v1492, %v1490
      %v1610 = vpack.c.bf16 %v1497, %v1495
      %v1611 = vpack.c.bf16 %v1502, %v1500
      %v1612 = vpack.c.bf16 %v1507, %v1505
      %v1613 = vpack.c.bf16 %v1512, %v1510
      %v1614 = vpack.c.bf16 %v1517, %v1515
      %v1615 = vpack.c.bf16 %v1522, %v1520
      %v1616 = vpack.c.bf16 %v1527, %v1525
      %v1617 = vpack.c.bf16 %v1532, %v1530
      %v1618 = vpack.c.bf16 %v1537, %v1535
      %v1619 = vpack.c.bf16 %v1542, %v1540
      %v1620 = vpack.c.bf16 %v1547, %v1545
      %v1621 = vpack.c.bf16 %v1552, %v1550
      %v1622 = vpack.c.bf16 %v1557, %v1555
      %v1623 = vpack.c.bf16 %v1562, %v1560
      %v1624 = vpack.c.bf16 %v1567, %v1565
      %v1625 = vpack.c.bf16 %v1572, %v1570
      %v1626 = vpack.c.bf16 %v1577, %v1575
      %v1627 = vpack.c.bf16 %v1582, %v1580
      %v1628 = vpack.c.bf16 %v1587, %v1585
      %v1629 = vpack.c.bf16 %v1592, %v1590
      %v1630 = vpack.c.bf16 %v1597, %v1595
      %v1631 = vpack.c.bf16 %v1602, %v1600
      %v1632 = vpack.c.bf16 %v1607, %v1605
      %1633 = vmatpush.bf16.msra.mxu0 %v1616
      %1634 = vmatpush.bf16.msra.mxu0 %v1615
      %1635 = vmatpush.bf16.msra.mxu0 %v1614
      %1636 = vmatpush.bf16.msra.mxu0 %v1613
      %1637 = vmatpush.bf16.msra.mxu0 %v1612
      %1638 = vmatpush.bf16.msra.mxu0 %v1611
      %1639 = vmatpush.bf16.msra.mxu0 %v1610
      %1640 = vmatpush.bf16.msra.mxu0 %v1609
      %1641 = vmatmul.bf16.gmra.mxu0 %v1078
      %v1642 = vpop.f32.mrf.mxu0
      %v1643 = vadd.f32 0.0, %v1642
      %v1644 = vpop.f32.mrf.mxu0
      %v1645 = vadd.f32 0.0, %v1644
      %1646 = vmatmul.bf16.gmra.mxu0 %v1081
      %v1647 = vpop.f32.mrf.mxu0
      %v1648 = vadd.f32 0.0, %v1647
      %v1649 = vpop.f32.mrf.mxu0
      %v1650 = vadd.f32 0.0, %v1649
      %1651 = vmatmul.bf16.gmra.mxu0 %v1084
      %v1652 = vpop.f32.mrf.mxu0
      %v1653 = vadd.f32 0.0, %v1652
      %v1654 = vpop.f32.mrf.mxu0
      %v1655 = vadd.f32 0.0, %v1654
      %1656 = vmatmul.bf16.gmra.mxu0 %v1087
      %v1657 = vpop.f32.mrf.mxu0
      %v1658 = vadd.f32 0.0, %v1657
      %v1659 = vpop.f32.mrf.mxu0
      %v1660 = vadd.f32 0.0, %v1659
      %1661 = vmatmul.bf16.gmra.mxu0 %v1090
      %v1662 = vpop.f32.mrf.mxu0
      %v1663 = vadd.f32 0.0, %v1662
      %v1664 = vpop.f32.mrf.mxu0
      %v1665 = vadd.f32 0.0, %v1664
      %1666 = vmatmul.bf16.gmra.mxu0 %v1093
      %v1667 = vpop.f32.mrf.mxu0
      %v1668 = vadd.f32 0.0, %v1667
      %v1669 = vpop.f32.mrf.mxu0
      %v1670 = vadd.f32 0.0, %v1669
      %1671 = vmatmul.bf16.gmra.mxu0 %v1096
      %v1672 = vpop.f32.mrf.mxu0
      %v1673 = vadd.f32 0.0, %v1672
      %v1674 = vpop.f32.mrf.mxu0
      %v1675 = vadd.f32 0.0, %v1674
      %1676 = vmatmul.bf16.gmra.mxu0 %v1099
      %v1677 = vpop.f32.mrf.mxu0
      %v1678 = vadd.f32 0.0, %v1677
      %v1679 = vpop.f32.mrf.mxu0
      %v1680 = vadd.f32 0.0, %v1679
      %1681 = vmatmul.bf16.gmra.mxu0 %v1102
      %v1682 = vpop.f32.mrf.mxu0
      %v1683 = vadd.f32 0.0, %v1682
      %v1684 = vpop.f32.mrf.mxu0
      %v1685 = vadd.f32 0.0, %v1684
      %1686 = vmatmul.bf16.gmra.mxu0 %v1105
      %v1687 = vpop.f32.mrf.mxu0
      %v1688 = vadd.f32 0.0, %v1687
      %v1689 = vpop.f32.mrf.mxu0
      %v1690 = vadd.f32 0.0, %v1689
      %1691 = vmatmul.bf16.gmra.mxu0 %v1108
      %v1692 = vpop.f32.mrf.mxu0
      %v1693 = vadd.f32 0.0, %v1692
      %v1694 = vpop.f32.mrf.mxu0
      %v1695 = vadd.f32 0.0, %v1694
      %1696 = vmatmul.bf16.gmra.mxu0 %v1111
      %v1697 = vpop.f32.mrf.mxu0
      %v1698 = vadd.f32 0.0, %v1697
      %v1699 = vpop.f32.mrf.mxu0
      %v1700 = vadd.f32 0.0, %v1699
      %1701 = vmatmul.bf16.gmra.mxu0 %v1114
      %v1702 = vpop.f32.mrf.mxu0
      %v1703 = vadd.f32 0.0, %v1702
      %v1704 = vpop.f32.mrf.mxu0
      %v1705 = vadd.f32 0.0, %v1704
      %1706 = vmatmul.bf16.gmra.mxu0 %v1117
      %v1707 = vpop.f32.mrf.mxu0
      %v1708 = vadd.f32 0.0, %v1707
      %v1709 = vpop.f32.mrf.mxu0
      %v1710 = vadd.f32 0.0, %v1709
      %1711 = vmatmul.bf16.gmra.mxu0 %v1120
      %v1712 = vpop.f32.mrf.mxu0
      %v1713 = vadd.f32 0.0, %v1712
      %v1714 = vpop.f32.mrf.mxu0
      %v1715 = vadd.f32 0.0, %v1714
      %1716 = vmatmul.bf16.gmra.mxu0 %v1123
      %v1717 = vpop.f32.mrf.mxu0
      %v1718 = vadd.f32 0.0, %v1717
      %v1719 = vpop.f32.mrf.mxu0
      %v1720 = vadd.f32 0.0, %v1719
      %1721 = vmatmul.bf16.gmra.mxu0 %v1126
      %v1722 = vpop.f32.mrf.mxu0
      %v1723 = vadd.f32 0.0, %v1722
      %v1724 = vpop.f32.mrf.mxu0
      %v1725 = vadd.f32 0.0, %v1724
      %1726 = vmatmul.bf16.gmra.mxu0 %v1129
      %v1727 = vpop.f32.mrf.mxu0
      %v1728 = vadd.f32 0.0, %v1727
      %v1729 = vpop.f32.mrf.mxu0
      %v1730 = vadd.f32 0.0, %v1729
      %1731 = vmatmul.bf16.gmra.mxu0 %v1132
      %v1732 = vpop.f32.mrf.mxu0
      %v1733 = vadd.f32 0.0, %v1732
      %v1734 = vpop.f32.mrf.mxu0
      %v1735 = vadd.f32 0.0, %v1734
      %1736 = vmatmul.bf16.gmra.mxu0 %v1135
      %v1737 = vpop.f32.mrf.mxu0
      %v1738 = vadd.f32 0.0, %v1737
      %v1739 = vpop.f32.mrf.mxu0
      %v1740 = vadd.f32 0.0, %v1739
      %1741 = vmatmul.bf16.gmra.mxu0 %v1138
      %v1742 = vpop.f32.mrf.mxu0
      %v1743 = vadd.f32 0.0, %v1742
      %v1744 = vpop.f32.mrf.mxu0
      %v1745 = vadd.f32 0.0, %v1744
      %1746 = vmatmul.bf16.gmra.mxu0 %v1141
      %v1747 = vpop.f32.mrf.mxu0
      %v1748 = vadd.f32 0.0, %v1747
      %v1749 = vpop.f32.mrf.mxu0
      %v1750 = vadd.f32 0.0, %v1749
      %1751 = vmatmul.bf16.gmra.mxu0 %v1144
      %v1752 = vpop.f32.mrf.mxu0
      %v1753 = vadd.f32 0.0, %v1752
      %v1754 = vpop.f32.mrf.mxu0
      %v1755 = vadd.f32 0.0, %v1754
      %1756 = vmatmul.bf16.gmra.mxu0 %v1147
      %v1757 = vpop.f32.mrf.mxu0
      %v1758 = vadd.f32 0.0, %v1757
      %v1759 = vpop.f32.mrf.mxu0
      %v1760 = vadd.f32 0.0, %v1759
      %1761 = vdwg.mxu0
      %1762 = vmatpush.bf16.msra.mxu0 %v1624
      %1763 = vmatpush.bf16.msra.mxu0 %v1623
      %1764 = vmatpush.bf16.msra.mxu0 %v1622
      %1765 = vmatpush.bf16.msra.mxu0 %v1621
      %1766 = vmatpush.bf16.msra.mxu0 %v1620
      %1767 = vmatpush.bf16.msra.mxu0 %v1619
      %1768 = vmatpush.bf16.msra.mxu0 %v1618
      %1769 = vmatpush.bf16.msra.mxu0 %v1617
      %1770 = vmatmul.bf16.gmra.mxu0 %v1079
      %v1771 = vpop.f32.mrf.mxu0
      %v1772 = vadd.f32 %v1643, %v1771
      %v1773 = vpop.f32.mrf.mxu0
      %v1774 = vadd.f32 %v1645, %v1773
      %1775 = vmatmul.bf16.gmra.mxu0 %v1082
      %v1776 = vpop.f32.mrf.mxu0
      %v1777 = vadd.f32 %v1648, %v1776
      %v1778 = vpop.f32.mrf.mxu0
      %v1779 = vadd.f32 %v1650, %v1778
      %1780 = vmatmul.bf16.gmra.mxu0 %v1085
      %v1781 = vpop.f32.mrf.mxu0
      %v1782 = vadd.f32 %v1653, %v1781
      %v1783 = vpop.f32.mrf.mxu0
      %v1784 = vadd.f32 %v1655, %v1783
      %1785 = vmatmul.bf16.gmra.mxu0 %v1088
      %v1786 = vpop.f32.mrf.mxu0
      %v1787 = vadd.f32 %v1658, %v1786
      %v1788 = vpop.f32.mrf.mxu0
      %v1789 = vadd.f32 %v1660, %v1788
      %1790 = vmatmul.bf16.gmra.mxu0 %v1091
      %v1791 = vpop.f32.mrf.mxu0
      %v1792 = vadd.f32 %v1663, %v1791
      %v1793 = vpop.f32.mrf.mxu0
      %v1794 = vadd.f32 %v1665, %v1793
      %1795 = vmatmul.bf16.gmra.mxu0 %v1094
      %v1796 = vpop.f32.mrf.mxu0
      %v1797 = vadd.f32 %v1668, %v1796
      %v1798 = vpop.f32.mrf.mxu0
      %v1799 = vadd.f32 %v1670, %v1798
      %1800 = vmatmul.bf16.gmra.mxu0 %v1097
      %v1801 = vpop.f32.mrf.mxu0
      %v1802 = vadd.f32 %v1673, %v1801
      %v1803 = vpop.f32.mrf.mxu0
      %v1804 = vadd.f32 %v1675, %v1803
      %1805 = vmatmul.bf16.gmra.mxu0 %v1100
      %v1806 = vpop.f32.mrf.mxu0
      %v1807 = vadd.f32 %v1678, %v1806
      %v1808 = vpop.f32.mrf.mxu0
      %v1809 = vadd.f32 %v1680, %v1808
      %1810 = vmatmul.bf16.gmra.mxu0 %v1103
      %v1811 = vpop.f32.mrf.mxu0
      %v1812 = vadd.f32 %v1683, %v1811
      %v1813 = vpop.f32.mrf.mxu0
      %v1814 = vadd.f32 %v1685, %v1813
      %1815 = vmatmul.bf16.gmra.mxu0 %v1106
      %v1816 = vpop.f32.mrf.mxu0
      %v1817 = vadd.f32 %v1688, %v1816
      %v1818 = vpop.f32.mrf.mxu0
      %v1819 = vadd.f32 %v1690, %v1818
      %1820 = vmatmul.bf16.gmra.mxu0 %v1109
      %v1821 = vpop.f32.mrf.mxu0
      %v1822 = vadd.f32 %v1693, %v1821
      %v1823 = vpop.f32.mrf.mxu0
      %v1824 = vadd.f32 %v1695, %v1823
      %1825 = vmatmul.bf16.gmra.mxu0 %v1112
      %v1826 = vpop.f32.mrf.mxu0
      %v1827 = vadd.f32 %v1698, %v1826
      %v1828 = vpop.f32.mrf.mxu0
      %v1829 = vadd.f32 %v1700, %v1828
      %1830 = vmatmul.bf16.gmra.mxu0 %v1115
      %v1831 = vpop.f32.mrf.mxu0
      %v1832 = vadd.f32 %v1703, %v1831
      %v1833 = vpop.f32.mrf.mxu0
      %v1834 = vadd.f32 %v1705, %v1833
      %1835 = vmatmul.bf16.gmra.mxu0 %v1118
      %v1836 = vpop.f32.mrf.mxu0
      %v1837 = vadd.f32 %v1708, %v1836
      %v1838 = vpop.f32.mrf.mxu0
      %v1839 = vadd.f32 %v1710, %v1838
      %1840 = vmatmul.bf16.gmra.mxu0 %v1121
      %v1841 = vpop.f32.mrf.mxu0
      %v1842 = vadd.f32 %v1713, %v1841
      %v1843 = vpop.f32.mrf.mxu0
      %v1844 = vadd.f32 %v1715, %v1843
      %1845 = vmatmul.bf16.gmra.mxu0 %v1124
      %v1846 = vpop.f32.mrf.mxu0
      %v1847 = vadd.f32 %v1718, %v1846
      %v1848 = vpop.f32.mrf.mxu0
      %v1849 = vadd.f32 %v1720, %v1848
      %1850 = vmatmul.bf16.gmra.mxu0 %v1127
      %v1851 = vpop.f32.mrf.mxu0
      %v1852 = vadd.f32 %v1723, %v1851
      %v1853 = vpop.f32.mrf.mxu0
      %v1854 = vadd.f32 %v1725, %v1853
      %1855 = vmatmul.bf16.gmra.mxu0 %v1130
      %v1856 = vpop.f32.mrf.mxu0
      %v1857 = vadd.f32 %v1728, %v1856
      %v1858 = vpop.f32.mrf.mxu0
      %v1859 = vadd.f32 %v1730, %v1858
      %1860 = vmatmul.bf16.gmra.mxu0 %v1133
      %v1861 = vpop.f32.mrf.mxu0
      %v1862 = vadd.f32 %v1733, %v1861
      %v1863 = vpop.f32.mrf.mxu0
      %v1864 = vadd.f32 %v1735, %v1863
      %1865 = vmatmul.bf16.gmra.mxu0 %v1136
      %v1866 = vpop.f32.mrf.mxu0
      %v1867 = vadd.f32 %v1738, %v1866
      %v1868 = vpop.f32.mrf.mxu0
      %v1869 = vadd.f32 %v1740, %v1868
      %1870 = vmatmul.bf16.gmra.mxu0 %v1139
      %v1871 = vpop.f32.mrf.mxu0
      %v1872 = vadd.f32 %v1743, %v1871
      %v1873 = vpop.f32.mrf.mxu0
      %v1874 = vadd.f32 %v1745, %v1873
      %1875 = vmatmul.bf16.gmra.mxu0 %v1142
      %v1876 = vpop.f32.mrf.mxu0
      %v1877 = vadd.f32 %v1748, %v1876
      %v1878 = vpop.f32.mrf.mxu0
      %v1879 = vadd.f32 %v1750, %v1878
      %1880 = vmatmul.bf16.gmra.mxu0 %v1145
      %v1881 = vpop.f32.mrf.mxu0
      %v1882 = vadd.f32 %v1753, %v1881
      %v1883 = vpop.f32.mrf.mxu0
      %v1884 = vadd.f32 %v1755, %v1883
      %1885 = vmatmul.bf16.gmra.mxu0 %v1148
      %v1886 = vpop.f32.mrf.mxu0
      %v1887 = vadd.f32 %v1758, %v1886
      %v1888 = vpop.f32.mrf.mxu0
      %v1889 = vadd.f32 %v1760, %v1888
      %1890 = vdwg.mxu0
      %1891 = vmatpush.bf16.msra.mxu0 %v1632
      %1892 = vmatpush.bf16.msra.mxu0 %v1631
      %1893 = vmatpush.bf16.msra.mxu0 %v1630
      %1894 = vmatpush.bf16.msra.mxu0 %v1629
      %1895 = vmatpush.bf16.msra.mxu0 %v1628
      %1896 = vmatpush.bf16.msra.mxu0 %v1627
      %1897 = vmatpush.bf16.msra.mxu0 %v1626
      %1898 = vmatpush.bf16.msra.mxu0 %v1625
      %1899 = vmatmul.bf16.gmra.mxu0 %v1080
      %v1900 = vpop.f32.mrf.mxu0
      %v1901 = vadd.f32 %v1772, %v1900
      %v1902 = vpop.f32.mrf.mxu0
      %v1903 = vadd.f32 %v1774, %v1902
      %1904 = vmatmul.bf16.gmra.mxu0 %v1083
      %v1905 = vpop.f32.mrf.mxu0
      %v1906 = vadd.f32 %v1777, %v1905
      %v1907 = vpop.f32.mrf.mxu0
      %v1908 = vadd.f32 %v1779, %v1907
      %1909 = vmatmul.bf16.gmra.mxu0 %v1086
      %v1910 = vpop.f32.mrf.mxu0
      %v1911 = vadd.f32 %v1782, %v1910
      %v1912 = vpop.f32.mrf.mxu0
      %v1913 = vadd.f32 %v1784, %v1912
      %1914 = vmatmul.bf16.gmra.mxu0 %v1089
      %v1915 = vpop.f32.mrf.mxu0
      %v1916 = vadd.f32 %v1787, %v1915
      %v1917 = vpop.f32.mrf.mxu0
      %v1918 = vadd.f32 %v1789, %v1917
      %1919 = vmatmul.bf16.gmra.mxu0 %v1092
      %v1920 = vpop.f32.mrf.mxu0
      %v1921 = vadd.f32 %v1792, %v1920
      %v1922 = vpop.f32.mrf.mxu0
      %v1923 = vadd.f32 %v1794, %v1922
      %1924 = vmatmul.bf16.gmra.mxu0 %v1095
      %v1925 = vpop.f32.mrf.mxu0
      %v1926 = vadd.f32 %v1797, %v1925
      %v1927 = vpop.f32.mrf.mxu0
      %v1928 = vadd.f32 %v1799, %v1927
      %1929 = vmatmul.bf16.gmra.mxu0 %v1098
      %v1930 = vpop.f32.mrf.mxu0
      %v1931 = vadd.f32 %v1802, %v1930
      %v1932 = vpop.f32.mrf.mxu0
      %v1933 = vadd.f32 %v1804, %v1932
      %1934 = vmatmul.bf16.gmra.mxu0 %v1101
      %v1935 = vpop.f32.mrf.mxu0
      %v1936 = vadd.f32 %v1807, %v1935
      %v1937 = vpop.f32.mrf.mxu0
      %v1938 = vadd.f32 %v1809, %v1937
      %1939 = vmatmul.bf16.gmra.mxu0 %v1104
      %v1940 = vpop.f32.mrf.mxu0
      %v1941 = vadd.f32 %v1812, %v1940
      %v1942 = vpop.f32.mrf.mxu0
      %v1943 = vadd.f32 %v1814, %v1942
      %1944 = vmatmul.bf16.gmra.mxu0 %v1107
      %v1945 = vpop.f32.mrf.mxu0
      %v1946 = vadd.f32 %v1817, %v1945
      %v1947 = vpop.f32.mrf.mxu0
      %v1948 = vadd.f32 %v1819, %v1947
      %1949 = vmatmul.bf16.gmra.mxu0 %v1110
      %v1950 = vpop.f32.mrf.mxu0
      %v1951 = vadd.f32 %v1822, %v1950
      %v1952 = vpop.f32.mrf.mxu0
      %v1953 = vadd.f32 %v1824, %v1952
      %1954 = vmatmul.bf16.gmra.mxu0 %v1113
      %v1955 = vpop.f32.mrf.mxu0
      %v1956 = vadd.f32 %v1827, %v1955
      %v1957 = vpop.f32.mrf.mxu0
      %v1958 = vadd.f32 %v1829, %v1957
      %1959 = vmatmul.bf16.gmra.mxu0 %v1116
      %v1960 = vpop.f32.mrf.mxu0
      %v1961 = vadd.f32 %v1832, %v1960
      %v1962 = vpop.f32.mrf.mxu0
      %v1963 = vadd.f32 %v1834, %v1962
      %1964 = vmatmul.bf16.gmra.mxu0 %v1119
      %v1965 = vpop.f32.mrf.mxu0
      %v1966 = vadd.f32 %v1837, %v1965
      %v1967 = vpop.f32.mrf.mxu0
      %v1968 = vadd.f32 %v1839, %v1967
      %1969 = vmatmul.bf16.gmra.mxu0 %v1122
      %v1970 = vpop.f32.mrf.mxu0
      %v1971 = vadd.f32 %v1842, %v1970
      %v1972 = vpop.f32.mrf.mxu0
      %v1973 = vadd.f32 %v1844, %v1972
      %1974 = vmatmul.bf16.gmra.mxu0 %v1125
      %v1975 = vpop.f32.mrf.mxu0
      %v1976 = vadd.f32 %v1847, %v1975
      %v1977 = vpop.f32.mrf.mxu0
      %v1978 = vadd.f32 %v1849, %v1977
      %1979 = vmatmul.bf16.gmra.mxu0 %v1128
      %v1980 = vpop.f32.mrf.mxu0
      %v1981 = vadd.f32 %v1852, %v1980
      %v1982 = vpop.f32.mrf.mxu0
      %v1983 = vadd.f32 %v1854, %v1982
      %1984 = vmatmul.bf16.gmra.mxu0 %v1131
      %v1985 = vpop.f32.mrf.mxu0
      %v1986 = vadd.f32 %v1857, %v1985
      %v1987 = vpop.f32.mrf.mxu0
      %v1988 = vadd.f32 %v1859, %v1987
      %1989 = vmatmul.bf16.gmra.mxu0 %v1134
      %v1990 = vpop.f32.mrf.mxu0
      %v1991 = vadd.f32 %v1862, %v1990
      %v1992 = vpop.f32.mrf.mxu0
      %v1993 = vadd.f32 %v1864, %v1992
      %1994 = vmatmul.bf16.gmra.mxu0 %v1137
      %v1995 = vpop.f32.mrf.mxu0
      %v1996 = vadd.f32 %v1867, %v1995
      %v1997 = vpop.f32.mrf.mxu0
      %v1998 = vadd.f32 %v1869, %v1997
      %1999 = vmatmul.bf16.gmra.mxu0 %v1140
      %v2000 = vpop.f32.mrf.mxu0
      %v2001 = vadd.f32 %v1872, %v2000
      %v2002 = vpop.f32.mrf.mxu0
      %v2003 = vadd.f32 %v1874, %v2002
      %2004 = vmatmul.bf16.gmra.mxu0 %v1143
      %v2005 = vpop.f32.mrf.mxu0
      %v2006 = vadd.f32 %v1877, %v2005
      %v2007 = vpop.f32.mrf.mxu0
      %v2008 = vadd.f32 %v1879, %v2007
      %2009 = vmatmul.bf16.gmra.mxu0 %v1146
      %v2010 = vpop.f32.mrf.mxu0
      %v2011 = vadd.f32 %v1882, %v2010
      %v2012 = vpop.f32.mrf.mxu0
      %v2013 = vadd.f32 %v1884, %v2012
      %2014 = vmatmul.bf16.gmra.mxu0 %v1149
      %v2015 = vpop.f32.mrf.mxu0
      %v2016 = vadd.f32 %v1887, %v2015
      %v2017 = vpop.f32.mrf.mxu0
      %v2018 = vadd.f32 %v1889, %v2017
      %2019 = vdwg.mxu0
      %v2020 = vpack.c.bf16 %v527, %v526
      %v2021 = vpack.c.bf16 %v529, %v528
      %v2022 = vpack.c.bf16 %v531, %v530
      %v2023 = vpack.c.bf16 %v533, %v532
      %v2024 = vpack.c.bf16 %v535, %v534
      %v2025 = vpack.c.bf16 %v537, %v536
      %v2026 = vpack.c.bf16 %v539, %v538
      %v2027 = vpack.c.bf16 %v541, %v540
      %v2028 = vpack.c.bf16 %v543, %v542
      %v2029 = vpack.c.bf16 %v545, %v544
      %v2030 = vpack.c.bf16 %v547, %v546
      %v2031 = vpack.c.bf16 %v549, %v548
      %v2032 = vpack.c.bf16 %v551, %v550
      %v2033 = vpack.c.bf16 %v553, %v552
      %v2034 = vpack.c.bf16 %v555, %v554
      %v2035 = vpack.c.bf16 %v557, %v556
      %v2036 = vpack.c.bf16 %v559, %v558
      %v2037 = vpack.c.bf16 %v561, %v560
      %v2038 = vpack.c.bf16 %v563, %v562
      %v2039 = vpack.c.bf16 %v565, %v564
      %v2040 = vpack.c.bf16 %v567, %v566
      %v2041 = vpack.c.bf16 %v569, %v568
      %v2042 = vpack.c.bf16 %v571, %v570
      %v2043 = vpack.c.bf16 %v573, %v572
      %v2140 = vunpack.c.l.b16 %v718
      %v2141 = vunpack.c.h.b16 %v718
      %v2142 = vunpack.c.l.b16 %v719
      %v2143 = vunpack.c.l.b16 %v720
      %v2144 = vunpack.c.h.b16 %v720
      %v2145 = vunpack.c.l.b16 %v721
      %v2146 = vunpack.c.l.b16 %v722
      %v2147 = vunpack.c.h.b16 %v722
      %v2148 = vunpack.c.l.b16 %v723
      %v2149 = vunpack.c.l.b16 %v724
      %v2150 = vunpack.c.h.b16 %v724
      %v2151 = vunpack.c.l.b16 %v725
      %v2152 = vunpack.c.l.b16 %v726
      %v2153 = vunpack.c.h.b16 %v726
      %v2154 = vunpack.c.l.b16 %v727
      %v2155 = vunpack.c.l.b16 %v728
      %v2156 = vunpack.c.h.b16 %v728
      %v2157 = vunpack.c.l.b16 %v729
      %v2158 = vunpack.c.l.b16 %v730
      %v2159 = vunpack.c.h.b16 %v730
      %v2160 = vunpack.c.l.b16 %v731
      %v2161 = vunpack.c.l.b16 %v732
      %v2162 = vunpack.c.h.b16 %v732
      %v2163 = vunpack.c.l.b16 %v733
      %v2164 = vunpack.c.l.b16 %v734
      %v2165 = vunpack.c.h.b16 %v734
      %v2166 = vunpack.c.l.b16 %v735
      %v2167 = vunpack.c.l.b16 %v736
      %v2168 = vunpack.c.h.b16 %v736
      %v2169 = vunpack.c.l.b16 %v737
      %v2170 = vunpack.c.l.b16 %v738
      %v2171 = vunpack.c.h.b16 %v738
      %v2172 = vunpack.c.l.b16 %v739
      %v2173 = vunpack.c.l.b16 %v740
      %v2174 = vunpack.c.h.b16 %v740
      %v2175 = vunpack.c.l.b16 %v741
      %v2176 = vunpack.c.l.b16 %v742
      %v2177 = vunpack.c.h.b16 %v742
      %v2178 = vunpack.c.l.b16 %v743
      %v2179 = vunpack.c.l.b16 %v744
      %v2180 = vunpack.c.h.b16 %v744
      %v2181 = vunpack.c.l.b16 %v745
      %v2182 = vunpack.c.l.b16 %v746
      %v2183 = vunpack.c.h.b16 %v746
      %v2184 = vunpack.c.l.b16 %v747
      %v2185 = vunpack.c.l.b16 %v748
      %v2186 = vunpack.c.h.b16 %v748
      %v2187 = vunpack.c.l.b16 %v749
      %v2188 = vunpack.c.l.b16 %v750
      %v2189 = vunpack.c.h.b16 %v750
      %v2190 = vunpack.c.l.b16 %v751
      %v2191 = vunpack.c.l.b16 %v752
      %v2192 = vunpack.c.h.b16 %v752
      %v2193 = vunpack.c.l.b16 %v753
      %v2194 = vunpack.c.l.b16 %v754
      %v2195 = vunpack.c.h.b16 %v754
      %v2196 = vunpack.c.l.b16 %v755
      %v2197 = vunpack.c.l.b16 %v756
      %v2198 = vunpack.c.h.b16 %v756
      %v2199 = vunpack.c.l.b16 %v757
      %v2200 = vunpack.c.l.b16 %v758
      %v2201 = vunpack.c.h.b16 %v758
      %v2202 = vunpack.c.l.b16 %v759
      %v2203 = vunpack.c.l.b16 %v760
      %v2204 = vunpack.c.h.b16 %v760
      %v2205 = vunpack.c.l.b16 %v761
      %v2206 = vunpack.c.l.b16 %v762
      %v2207 = vunpack.c.h.b16 %v762
      %v2208 = vunpack.c.l.b16 %v763
      %v2209 = vunpack.c.l.b16 %v764
      %v2210 = vunpack.c.h.b16 %v764
      %v2211 = vunpack.c.l.b16 %v765
      %v2212 = vunpack.c.l.b16 %v766
      %v2213 = vunpack.c.h.b16 %v766
      %v2214 = vunpack.c.l.b16 %v767
      %v2215 = vunpack.c.l.b16 %v768
      %v2216 = vunpack.c.h.b16 %v768
      %v2217 = vunpack.c.l.b16 %v769
      %v2218 = vunpack.c.l.b16 %v770
      %v2219 = vunpack.c.h.b16 %v770
      %v2220 = vunpack.c.l.b16 %v771
      %v2221 = vunpack.c.l.b16 %v772
      %v2222 = vunpack.c.h.b16 %v772
      %v2223 = vunpack.c.l.b16 %v773
      %v2224 = vunpack.c.l.b16 %v774
      %v2225 = vunpack.c.h.b16 %v774
      %v2226 = vunpack.c.l.b16 %v775
      %v2227 = vunpack.c.l.b16 %v776
      %v2228 = vunpack.c.h.b16 %v776
      %v2229 = vunpack.c.l.b16 %v777
      %v2230 = vunpack.c.l.b16 %v778
      %v2231 = vunpack.c.h.b16 %v778
      %v2232 = vunpack.c.l.b16 %v779
      %v2233 = vunpack.c.l.b16 %v780
      %v2234 = vunpack.c.h.b16 %v780
      %v2235 = vunpack.c.l.b16 %v781
      %v2236 = vunpack.c.l.b16 %v782
      %v2237 = vunpack.c.h.b16 %v782
      %v2238 = vunpack.c.l.b16 %v783
      %v2239 = vunpack.c.l.b16 %v784
      %v2240 = vunpack.c.h.b16 %v784
      %v2241 = vunpack.c.l.b16 %v785
      %v2242 = vunpack.c.l.b16 %v786
      %v2243 = vunpack.c.h.b16 %v786
      %v2244 = vunpack.c.l.b16 %v787
      %v2245 = vunpack.c.l.b16 %v788
      %v2246 = vunpack.c.h.b16 %v788
      %v2247 = vunpack.c.l.b16 %v789
      %v2248 = vunpack.c.l.b16 %v790
      %v2249 = vunpack.c.h.b16 %v790
      %v2250 = vunpack.c.l.b16 %v791
      %v2251 = vunpack.c.l.b16 %v792
      %v2252 = vunpack.c.h.b16 %v792
      %v2253 = vunpack.c.l.b16 %v793
      %v2254 = vunpack.c.l.b16 %v794
      %v2255 = vunpack.c.h.b16 %v794
      %v2256 = vunpack.c.l.b16 %v795
      %v2257 = vunpack.c.l.b16 %v796
      %v2258 = vunpack.c.h.b16 %v796
      %v2259 = vunpack.c.l.b16 %v797
      %v2260 = vunpack.c.l.b16 %v798
      %v2261 = vunpack.c.h.b16 %v798
      %v2262 = vunpack.c.l.b16 %v799
      %v2263 = vunpack.c.l.b16 %v800
      %v2264 = vunpack.c.h.b16 %v800
      %v2265 = vunpack.c.l.b16 %v801
      %v2266 = vunpack.c.l.b16 %v802
      %v2267 = vunpack.c.h.b16 %v802
      %v2268 = vunpack.c.l.b16 %v803
      %v2269 = vunpack.c.l.b16 %v804
      %v2270 = vunpack.c.h.b16 %v804
      %v2271 = vunpack.c.l.b16 %v805
      %v2272 = vunpack.c.l.b16 %v806
      %v2273 = vunpack.c.h.b16 %v806
      %v2274 = vunpack.c.l.b16 %v807
      %v2275 = vunpack.c.l.b16 %v808
      %v2276 = vunpack.c.h.b16 %v808
      %v2277 = vunpack.c.l.b16 %v809
      %v2278 = vunpack.c.l.b16 %v810
      %v2279 = vunpack.c.h.b16 %v810
      %v2280 = vunpack.c.l.b16 %v811
      %v2281 = vunpack.c.l.b16 %v812
      %v2282 = vunpack.c.h.b16 %v812
      %v2283 = vunpack.c.l.b16 %v813
      %v2284 = vpack.c.b16 %v2143, %v2140
      %v2285 = vpack.c.b16 %v2144, %v2141
      %v2286 = vpack.c.b16 %v2145, %v2142
      %v2287 = vpack.c.b16 %v2149, %v2146
      %v2288 = vpack.c.b16 %v2150, %v2147
      %v2289 = vpack.c.b16 %v2151, %v2148
      %v2290 = vpack.c.b16 %v2155, %v2152
      %v2291 = vpack.c.b16 %v2156, %v2153
      %v2292 = vpack.c.b16 %v2157, %v2154
      %v2293 = vpack.c.b16 %v2161, %v2158
      %v2294 = vpack.c.b16 %v2162, %v2159
      %v2295 = vpack.c.b16 %v2163, %v2160
      %v2296 = vpack.c.b16 %v2167, %v2164
      %v2297 = vpack.c.b16 %v2168, %v2165
      %v2298 = vpack.c.b16 %v2169, %v2166
      %v2299 = vpack.c.b16 %v2173, %v2170
      %v2300 = vpack.c.b16 %v2174, %v2171
      %v2301 = vpack.c.b16 %v2175, %v2172
      %v2302 = vpack.c.b16 %v2179, %v2176
      %v2303 = vpack.c.b16 %v2180, %v2177
      %v2304 = vpack.c.b16 %v2181, %v2178
      %v2305 = vpack.c.b16 %v2185, %v2182
      %v2306 = vpack.c.b16 %v2186, %v2183
      %v2307 = vpack.c.b16 %v2187, %v2184
      %v2308 = vpack.c.b16 %v2191, %v2188
      %v2309 = vpack.c.b16 %v2192, %v2189
      %v2310 = vpack.c.b16 %v2193, %v2190
      %v2311 = vpack.c.b16 %v2197, %v2194
      %v2312 = vpack.c.b16 %v2198, %v2195
      %v2313 = vpack.c.b16 %v2199, %v2196
      %v2314 = vpack.c.b16 %v2203, %v2200
      %v2315 = vpack.c.b16 %v2204, %v2201
      %v2316 = vpack.c.b16 %v2205, %v2202
      %v2317 = vpack.c.b16 %v2209, %v2206
      %v2318 = vpack.c.b16 %v2210, %v2207
      %v2319 = vpack.c.b16 %v2211, %v2208
      %v2320 = vpack.c.b16 %v2215, %v2212
      %v2321 = vpack.c.b16 %v2216, %v2213
      %v2322 = vpack.c.b16 %v2217, %v2214
      %v2323 = vpack.c.b16 %v2221, %v2218
      %v2324 = vpack.c.b16 %v2222, %v2219
      %v2325 = vpack.c.b16 %v2223, %v2220
      %v2326 = vpack.c.b16 %v2227, %v2224
      %v2327 = vpack.c.b16 %v2228, %v2225
      %v2328 = vpack.c.b16 %v2229, %v2226
      %v2329 = vpack.c.b16 %v2233, %v2230
      %v2330 = vpack.c.b16 %v2234, %v2231
      %v2331 = vpack.c.b16 %v2235, %v2232
      %v2332 = vpack.c.b16 %v2239, %v2236
      %v2333 = vpack.c.b16 %v2240, %v2237
      %v2334 = vpack.c.b16 %v2241, %v2238
      %v2335 = vpack.c.b16 %v2245, %v2242
      %v2336 = vpack.c.b16 %v2246, %v2243
      %v2337 = vpack.c.b16 %v2247, %v2244
      %v2338 = vpack.c.b16 %v2251, %v2248
      %v2339 = vpack.c.b16 %v2252, %v2249
      %v2340 = vpack.c.b16 %v2253, %v2250
      %v2341 = vpack.c.b16 %v2257, %v2254
      %v2342 = vpack.c.b16 %v2258, %v2255
      %v2343 = vpack.c.b16 %v2259, %v2256
      %v2344 = vpack.c.b16 %v2263, %v2260
      %v2345 = vpack.c.b16 %v2264, %v2261
      %v2346 = vpack.c.b16 %v2265, %v2262
      %v2347 = vpack.c.b16 %v2269, %v2266
      %v2348 = vpack.c.b16 %v2270, %v2267
      %v2349 = vpack.c.b16 %v2271, %v2268
      %v2350 = vpack.c.b16 %v2275, %v2272
      %v2351 = vpack.c.b16 %v2276, %v2273
      %v2352 = vpack.c.b16 %v2277, %v2274
      %v2353 = vpack.c.b16 %v2281, %v2278
      %v2354 = vpack.c.b16 %v2282, %v2279
      %v2355 = vpack.c.b16 %v2283, %v2280
      %2428 = vmatpush.bf16.msra.mxu0 %v2027
      %2429 = vmatpush.bf16.msra.mxu0 %v2026
      %2430 = vmatpush.bf16.msra.mxu0 %v2025
      %2431 = vmatpush.bf16.msra.mxu0 %v2024
      %2432 = vmatpush.bf16.msra.mxu0 %v2023
      %2433 = vmatpush.bf16.msra.mxu0 %v2022
      %2434 = vmatpush.bf16.msra.mxu0 %v2021
      %2435 = vmatpush.bf16.msra.mxu0 %v2020
      %2436 = vmatmul.bf16.gmra.mxu0 %v2284
      %v2437 = vpop.f32.mrf.mxu0
      %v2438 = vadd.f32 0.0, %v2437
      %v2439 = vpop.f32.mrf.mxu0
      %v2440 = vadd.f32 0.0, %v2439
      %2441 = vmatmul.bf16.gmra.mxu0 %v2287
      %v2442 = vpop.f32.mrf.mxu0
      %v2443 = vadd.f32 0.0, %v2442
      %v2444 = vpop.f32.mrf.mxu0
      %v2445 = vadd.f32 0.0, %v2444
      %2446 = vmatmul.bf16.gmra.mxu0 %v2290
      %v2447 = vpop.f32.mrf.mxu0
      %v2448 = vadd.f32 0.0, %v2447
      %v2449 = vpop.f32.mrf.mxu0
      %v2450 = vadd.f32 0.0, %v2449
      %2451 = vmatmul.bf16.gmra.mxu0 %v2293
      %v2452 = vpop.f32.mrf.mxu0
      %v2453 = vadd.f32 0.0, %v2452
      %v2454 = vpop.f32.mrf.mxu0
      %v2455 = vadd.f32 0.0, %v2454
      %2456 = vmatmul.bf16.gmra.mxu0 %v2296
      %v2457 = vpop.f32.mrf.mxu0
      %v2458 = vadd.f32 0.0, %v2457
      %v2459 = vpop.f32.mrf.mxu0
      %v2460 = vadd.f32 0.0, %v2459
      %2461 = vmatmul.bf16.gmra.mxu0 %v2299
      %v2462 = vpop.f32.mrf.mxu0
      %v2463 = vadd.f32 0.0, %v2462
      %v2464 = vpop.f32.mrf.mxu0
      %v2465 = vadd.f32 0.0, %v2464
      %2466 = vmatmul.bf16.gmra.mxu0 %v2302
      %v2467 = vpop.f32.mrf.mxu0
      %v2468 = vadd.f32 0.0, %v2467
      %v2469 = vpop.f32.mrf.mxu0
      %v2470 = vadd.f32 0.0, %v2469
      %2471 = vmatmul.bf16.gmra.mxu0 %v2305
      %v2472 = vpop.f32.mrf.mxu0
      %v2473 = vadd.f32 0.0, %v2472
      %v2474 = vpop.f32.mrf.mxu0
      %v2475 = vadd.f32 0.0, %v2474
      %2476 = vmatmul.bf16.gmra.mxu0 %v2308
      %v2477 = vpop.f32.mrf.mxu0
      %v2478 = vadd.f32 0.0, %v2477
      %v2479 = vpop.f32.mrf.mxu0
      %v2480 = vadd.f32 0.0, %v2479
      %2481 = vmatmul.bf16.gmra.mxu0 %v2311
      %v2482 = vpop.f32.mrf.mxu0
      %v2483 = vadd.f32 0.0, %v2482
      %v2484 = vpop.f32.mrf.mxu0
      %v2485 = vadd.f32 0.0, %v2484
      %2486 = vmatmul.bf16.gmra.mxu0 %v2314
      %v2487 = vpop.f32.mrf.mxu0
      %v2488 = vadd.f32 0.0, %v2487
      %v2489 = vpop.f32.mrf.mxu0
      %v2490 = vadd.f32 0.0, %v2489
      %2491 = vmatmul.bf16.gmra.mxu0 %v2317
      %v2492 = vpop.f32.mrf.mxu0
      %v2493 = vadd.f32 0.0, %v2492
      %v2494 = vpop.f32.mrf.mxu0
      %v2495 = vadd.f32 0.0, %v2494
      %2496 = vmatmul.bf16.gmra.mxu0 %v2320
      %v2497 = vpop.f32.mrf.mxu0
      %v2498 = vadd.f32 0.0, %v2497
      %v2499 = vpop.f32.mrf.mxu0
      %v2500 = vadd.f32 0.0, %v2499
      %2501 = vmatmul.bf16.gmra.mxu0 %v2323
      %v2502 = vpop.f32.mrf.mxu0
      %v2503 = vadd.f32 0.0, %v2502
      %v2504 = vpop.f32.mrf.mxu0
      %v2505 = vadd.f32 0.0, %v2504
      %2506 = vmatmul.bf16.gmra.mxu0 %v2326
      %v2507 = vpop.f32.mrf.mxu0
      %v2508 = vadd.f32 0.0, %v2507
      %v2509 = vpop.f32.mrf.mxu0
      %v2510 = vadd.f32 0.0, %v2509
      %2511 = vmatmul.bf16.gmra.mxu0 %v2329
      %v2512 = vpop.f32.mrf.mxu0
      %v2513 = vadd.f32 0.0, %v2512
      %v2514 = vpop.f32.mrf.mxu0
      %v2515 = vadd.f32 0.0, %v2514
      %2516 = vmatmul.bf16.gmra.mxu0 %v2332
      %v2517 = vpop.f32.mrf.mxu0
      %v2518 = vadd.f32 0.0, %v2517
      %v2519 = vpop.f32.mrf.mxu0
      %v2520 = vadd.f32 0.0, %v2519
      %2521 = vmatmul.bf16.gmra.mxu0 %v2335
      %v2522 = vpop.f32.mrf.mxu0
      %v2523 = vadd.f32 0.0, %v2522
      %v2524 = vpop.f32.mrf.mxu0
      %v2525 = vadd.f32 0.0, %v2524
      %2526 = vmatmul.bf16.gmra.mxu0 %v2338
      %v2527 = vpop.f32.mrf.mxu0
      %v2528 = vadd.f32 0.0, %v2527
      %v2529 = vpop.f32.mrf.mxu0
      %v2530 = vadd.f32 0.0, %v2529
      %2531 = vmatmul.bf16.gmra.mxu0 %v2341
      %v2532 = vpop.f32.mrf.mxu0
      %v2533 = vadd.f32 0.0, %v2532
      %v2534 = vpop.f32.mrf.mxu0
      %v2535 = vadd.f32 0.0, %v2534
      %2536 = vmatmul.bf16.gmra.mxu0 %v2344
      %v2537 = vpop.f32.mrf.mxu0
      %v2538 = vadd.f32 0.0, %v2537
      %v2539 = vpop.f32.mrf.mxu0
      %v2540 = vadd.f32 0.0, %v2539
      %2541 = vmatmul.bf16.gmra.mxu0 %v2347
      %v2542 = vpop.f32.mrf.mxu0
      %v2543 = vadd.f32 0.0, %v2542
      %v2544 = vpop.f32.mrf.mxu0
      %v2545 = vadd.f32 0.0, %v2544
      %2546 = vmatmul.bf16.gmra.mxu0 %v2350
      %v2547 = vpop.f32.mrf.mxu0
      %v2548 = vadd.f32 0.0, %v2547
      %v2549 = vpop.f32.mrf.mxu0
      %v2550 = vadd.f32 0.0, %v2549
      %2551 = vmatmul.bf16.gmra.mxu0 %v2353
      %v2552 = vpop.f32.mrf.mxu0
      %v2553 = vadd.f32 0.0, %v2552
      %v2554 = vpop.f32.mrf.mxu0
      %v2555 = vadd.f32 0.0, %v2554
      %2556 = vdwg.mxu0
      %2557 = vmatpush.bf16.msra.mxu0 %v2035
      %2558 = vmatpush.bf16.msra.mxu0 %v2034
      %2559 = vmatpush.bf16.msra.mxu0 %v2033
      %2560 = vmatpush.bf16.msra.mxu0 %v2032
      %2561 = vmatpush.bf16.msra.mxu0 %v2031
      %2562 = vmatpush.bf16.msra.mxu0 %v2030
      %2563 = vmatpush.bf16.msra.mxu0 %v2029
      %2564 = vmatpush.bf16.msra.mxu0 %v2028
      %2565 = vmatmul.bf16.gmra.mxu0 %v2285
      %v2566 = vpop.f32.mrf.mxu0
      %v2567 = vadd.f32 %v2438, %v2566
      %v2568 = vpop.f32.mrf.mxu0
      %v2569 = vadd.f32 %v2440, %v2568
      %2570 = vmatmul.bf16.gmra.mxu0 %v2288
      %v2571 = vpop.f32.mrf.mxu0
      %v2572 = vadd.f32 %v2443, %v2571
      %v2573 = vpop.f32.mrf.mxu0
      %v2574 = vadd.f32 %v2445, %v2573
      %2575 = vmatmul.bf16.gmra.mxu0 %v2291
      %v2576 = vpop.f32.mrf.mxu0
      %v2577 = vadd.f32 %v2448, %v2576
      %v2578 = vpop.f32.mrf.mxu0
      %v2579 = vadd.f32 %v2450, %v2578
      %2580 = vmatmul.bf16.gmra.mxu0 %v2294
      %v2581 = vpop.f32.mrf.mxu0
      %v2582 = vadd.f32 %v2453, %v2581
      %v2583 = vpop.f32.mrf.mxu0
      %v2584 = vadd.f32 %v2455, %v2583
      %2585 = vmatmul.bf16.gmra.mxu0 %v2297
      %v2586 = vpop.f32.mrf.mxu0
      %v2587 = vadd.f32 %v2458, %v2586
      %v2588 = vpop.f32.mrf.mxu0
      %v2589 = vadd.f32 %v2460, %v2588
      %2590 = vmatmul.bf16.gmra.mxu0 %v2300
      %v2591 = vpop.f32.mrf.mxu0
      %v2592 = vadd.f32 %v2463, %v2591
      %v2593 = vpop.f32.mrf.mxu0
      %v2594 = vadd.f32 %v2465, %v2593
      %2595 = vmatmul.bf16.gmra.mxu0 %v2303
      %v2596 = vpop.f32.mrf.mxu0
      %v2597 = vadd.f32 %v2468, %v2596
      %v2598 = vpop.f32.mrf.mxu0
      %v2599 = vadd.f32 %v2470, %v2598
      %2600 = vmatmul.bf16.gmra.mxu0 %v2306
      %v2601 = vpop.f32.mrf.mxu0
      %v2602 = vadd.f32 %v2473, %v2601
      %v2603 = vpop.f32.mrf.mxu0
      %v2604 = vadd.f32 %v2475, %v2603
      %2605 = vmatmul.bf16.gmra.mxu0 %v2309
      %v2606 = vpop.f32.mrf.mxu0
      %v2607 = vadd.f32 %v2478, %v2606
      %v2608 = vpop.f32.mrf.mxu0
      %v2609 = vadd.f32 %v2480, %v2608
      %2610 = vmatmul.bf16.gmra.mxu0 %v2312
      %v2611 = vpop.f32.mrf.mxu0
      %v2612 = vadd.f32 %v2483, %v2611
      %v2613 = vpop.f32.mrf.mxu0
      %v2614 = vadd.f32 %v2485, %v2613
      %2615 = vmatmul.bf16.gmra.mxu0 %v2315
      %v2616 = vpop.f32.mrf.mxu0
      %v2617 = vadd.f32 %v2488, %v2616
      %v2618 = vpop.f32.mrf.mxu0
      %v2619 = vadd.f32 %v2490, %v2618
      %2620 = vmatmul.bf16.gmra.mxu0 %v2318
      %v2621 = vpop.f32.mrf.mxu0
      %v2622 = vadd.f32 %v2493, %v2621
      %v2623 = vpop.f32.mrf.mxu0
      %v2624 = vadd.f32 %v2495, %v2623
      %2625 = vmatmul.bf16.gmra.mxu0 %v2321
      %v2626 = vpop.f32.mrf.mxu0
      %v2627 = vadd.f32 %v2498, %v2626
      %v2628 = vpop.f32.mrf.mxu0
      %v2629 = vadd.f32 %v2500, %v2628
      %2630 = vmatmul.bf16.gmra.mxu0 %v2324
      %v2631 = vpop.f32.mrf.mxu0
      %v2632 = vadd.f32 %v2503, %v2631
      %v2633 = vpop.f32.mrf.mxu0
      %v2634 = vadd.f32 %v2505, %v2633
      %2635 = vmatmul.bf16.gmra.mxu0 %v2327
      %v2636 = vpop.f32.mrf.mxu0
      %v2637 = vadd.f32 %v2508, %v2636
      %v2638 = vpop.f32.mrf.mxu0
      %v2639 = vadd.f32 %v2510, %v2638
      %2640 = vmatmul.bf16.gmra.mxu0 %v2330
      %v2641 = vpop.f32.mrf.mxu0
      %v2642 = vadd.f32 %v2513, %v2641
      %v2643 = vpop.f32.mrf.mxu0
      %v2644 = vadd.f32 %v2515, %v2643
      %2645 = vmatmul.bf16.gmra.mxu0 %v2333
      %v2646 = vpop.f32.mrf.mxu0
      %v2647 = vadd.f32 %v2518, %v2646
      %v2648 = vpop.f32.mrf.mxu0
      %v2649 = vadd.f32 %v2520, %v2648
      %2650 = vmatmul.bf16.gmra.mxu0 %v2336
      %v2651 = vpop.f32.mrf.mxu0
      %v2652 = vadd.f32 %v2523, %v2651
      %v2653 = vpop.f32.mrf.mxu0
      %v2654 = vadd.f32 %v2525, %v2653
      %2655 = vmatmul.bf16.gmra.mxu0 %v2339
      %v2656 = vpop.f32.mrf.mxu0
      %v2657 = vadd.f32 %v2528, %v2656
      %v2658 = vpop.f32.mrf.mxu0
      %v2659 = vadd.f32 %v2530, %v2658
      %2660 = vmatmul.bf16.gmra.mxu0 %v2342
      %v2661 = vpop.f32.mrf.mxu0
      %v2662 = vadd.f32 %v2533, %v2661
      %v2663 = vpop.f32.mrf.mxu0
      %v2664 = vadd.f32 %v2535, %v2663
      %2665 = vmatmul.bf16.gmra.mxu0 %v2345
      %v2666 = vpop.f32.mrf.mxu0
      %v2667 = vadd.f32 %v2538, %v2666
      %v2668 = vpop.f32.mrf.mxu0
      %v2669 = vadd.f32 %v2540, %v2668
      %2670 = vmatmul.bf16.gmra.mxu0 %v2348
      %v2671 = vpop.f32.mrf.mxu0
      %v2672 = vadd.f32 %v2543, %v2671
      %v2673 = vpop.f32.mrf.mxu0
      %v2674 = vadd.f32 %v2545, %v2673
      %2675 = vmatmul.bf16.gmra.mxu0 %v2351
      %v2676 = vpop.f32.mrf.mxu0
      %v2677 = vadd.f32 %v2548, %v2676
      %v2678 = vpop.f32.mrf.mxu0
      %v2679 = vadd.f32 %v2550, %v2678
      %2680 = vmatmul.bf16.gmra.mxu0 %v2354
      %v2681 = vpop.f32.mrf.mxu0
      %v2682 = vadd.f32 %v2553, %v2681
      %v2683 = vpop.f32.mrf.mxu0
      %v2684 = vadd.f32 %v2555, %v2683
      %2685 = vdwg.mxu0
      %2686 = vmatpush.bf16.msra.mxu0 %v2043
      %2687 = vmatpush.bf16.msra.mxu0 %v2042
      %2688 = vmatpush.bf16.msra.mxu0 %v2041
      %2689 = vmatpush.bf16.msra.mxu0 %v2040
      %2690 = vmatpush.bf16.msra.mxu0 %v2039
      %2691 = vmatpush.bf16.msra.mxu0 %v2038
      %2692 = vmatpush.bf16.msra.mxu0 %v2037
      %2693 = vmatpush.bf16.msra.mxu0 %v2036
      %2694 = vmatmul.bf16.gmra.mxu0 %v2286
      %v2695 = vpop.f32.mrf.mxu0
      %v2696 = vadd.f32 %v2567, %v2695
      %v2697 = vpop.f32.mrf.mxu0
      %v2698 = vadd.f32 %v2569, %v2697
      %2699 = vmatmul.bf16.gmra.mxu0 %v2289
      %v2700 = vpop.f32.mrf.mxu0
      %v2701 = vadd.f32 %v2572, %v2700
      %v2702 = vpop.f32.mrf.mxu0
      %v2703 = vadd.f32 %v2574, %v2702
      %2704 = vmatmul.bf16.gmra.mxu0 %v2292
      %v2705 = vpop.f32.mrf.mxu0
      %v2706 = vadd.f32 %v2577, %v2705
      %v2707 = vpop.f32.mrf.mxu0
      %v2708 = vadd.f32 %v2579, %v2707
      %2709 = vmatmul.bf16.gmra.mxu0 %v2295
      %v2710 = vpop.f32.mrf.mxu0
      %v2711 = vadd.f32 %v2582, %v2710
      %v2712 = vpop.f32.mrf.mxu0
      %v2713 = vadd.f32 %v2584, %v2712
      %2714 = vmatmul.bf16.gmra.mxu0 %v2298
      %v2715 = vpop.f32.mrf.mxu0
      %v2716 = vadd.f32 %v2587, %v2715
      %v2717 = vpop.f32.mrf.mxu0
      %v2718 = vadd.f32 %v2589, %v2717
      %2719 = vmatmul.bf16.gmra.mxu0 %v2301
      %v2720 = vpop.f32.mrf.mxu0
      %v2721 = vadd.f32 %v2592, %v2720
      %v2722 = vpop.f32.mrf.mxu0
      %v2723 = vadd.f32 %v2594, %v2722
      %2724 = vmatmul.bf16.gmra.mxu0 %v2304
      %v2725 = vpop.f32.mrf.mxu0
      %v2726 = vadd.f32 %v2597, %v2725
      %v2727 = vpop.f32.mrf.mxu0
      %v2728 = vadd.f32 %v2599, %v2727
      %2729 = vmatmul.bf16.gmra.mxu0 %v2307
      %v2730 = vpop.f32.mrf.mxu0
      %v2731 = vadd.f32 %v2602, %v2730
      %v2732 = vpop.f32.mrf.mxu0
      %v2733 = vadd.f32 %v2604, %v2732
      %2734 = vmatmul.bf16.gmra.mxu0 %v2310
      %v2735 = vpop.f32.mrf.mxu0
      %v2736 = vadd.f32 %v2607, %v2735
      %v2737 = vpop.f32.mrf.mxu0
      %v2738 = vadd.f32 %v2609, %v2737
      %2739 = vmatmul.bf16.gmra.mxu0 %v2313
      %v2740 = vpop.f32.mrf.mxu0
      %v2741 = vadd.f32 %v2612, %v2740
      %v2742 = vpop.f32.mrf.mxu0
      %v2743 = vadd.f32 %v2614, %v2742
      %2744 = vmatmul.bf16.gmra.mxu0 %v2316
      %v2745 = vpop.f32.mrf.mxu0
      %v2746 = vadd.f32 %v2617, %v2745
      %v2747 = vpop.f32.mrf.mxu0
      %v2748 = vadd.f32 %v2619, %v2747
      %2749 = vmatmul.bf16.gmra.mxu0 %v2319
      %v2750 = vpop.f32.mrf.mxu0
      %v2751 = vadd.f32 %v2622, %v2750
      %v2752 = vpop.f32.mrf.mxu0
      %v2753 = vadd.f32 %v2624, %v2752
      %2754 = vmatmul.bf16.gmra.mxu0 %v2322
      %v2755 = vpop.f32.mrf.mxu0
      %v2756 = vadd.f32 %v2627, %v2755
      %v2757 = vpop.f32.mrf.mxu0
      %v2758 = vadd.f32 %v2629, %v2757
      %2759 = vmatmul.bf16.gmra.mxu0 %v2325
      %v2760 = vpop.f32.mrf.mxu0
      %v2761 = vadd.f32 %v2632, %v2760
      %v2762 = vpop.f32.mrf.mxu0
      %v2763 = vadd.f32 %v2634, %v2762
      %2764 = vmatmul.bf16.gmra.mxu0 %v2328
      %v2765 = vpop.f32.mrf.mxu0
      %v2766 = vadd.f32 %v2637, %v2765
      %v2767 = vpop.f32.mrf.mxu0
      %v2768 = vadd.f32 %v2639, %v2767
      %2769 = vmatmul.bf16.gmra.mxu0 %v2331
      %v2770 = vpop.f32.mrf.mxu0
      %v2771 = vadd.f32 %v2642, %v2770
      %v2772 = vpop.f32.mrf.mxu0
      %v2773 = vadd.f32 %v2644, %v2772
      %2774 = vmatmul.bf16.gmra.mxu0 %v2334
      %v2775 = vpop.f32.mrf.mxu0
      %v2776 = vadd.f32 %v2647, %v2775
      %v2777 = vpop.f32.mrf.mxu0
      %v2778 = vadd.f32 %v2649, %v2777
      %2779 = vmatmul.bf16.gmra.mxu0 %v2337
      %v2780 = vpop.f32.mrf.mxu0
      %v2781 = vadd.f32 %v2652, %v2780
      %v2782 = vpop.f32.mrf.mxu0
      %v2783 = vadd.f32 %v2654, %v2782
      %2784 = vmatmul.bf16.gmra.mxu0 %v2340
      %v2785 = vpop.f32.mrf.mxu0
      %v2786 = vadd.f32 %v2657, %v2785
      %v2787 = vpop.f32.mrf.mxu0
      %v2788 = vadd.f32 %v2659, %v2787
      %2789 = vmatmul.bf16.gmra.mxu0 %v2343
      %v2790 = vpop.f32.mrf.mxu0
      %v2791 = vadd.f32 %v2662, %v2790
      %v2792 = vpop.f32.mrf.mxu0
      %v2793 = vadd.f32 %v2664, %v2792
      %2794 = vmatmul.bf16.gmra.mxu0 %v2346
      %v2795 = vpop.f32.mrf.mxu0
      %v2796 = vadd.f32 %v2667, %v2795
      %v2797 = vpop.f32.mrf.mxu0
      %v2798 = vadd.f32 %v2669, %v2797
      %2799 = vmatmul.bf16.gmra.mxu0 %v2349
      %v2800 = vpop.f32.mrf.mxu0
      %v2801 = vadd.f32 %v2672, %v2800
      %v2802 = vpop.f32.mrf.mxu0
      %v2803 = vadd.f32 %v2674, %v2802
      %2804 = vmatmul.bf16.gmra.mxu0 %v2352
      %v2805 = vpop.f32.mrf.mxu0
      %v2806 = vadd.f32 %v2677, %v2805
      %v2807 = vpop.f32.mrf.mxu0
      %v2808 = vadd.f32 %v2679, %v2807
      %2809 = vmatmul.bf16.gmra.mxu0 %v2355
      %v2810 = vpop.f32.mrf.mxu0
      %v2811 = vadd.f32 %v2682, %v2810
      %v2812 = vpop.f32.mrf.mxu0
      %v2813 = vadd.f32 %v2684, %v2812
      %2814 = vdwg.mxu0
      %2816 = vset.pattern.permute.xlu0 0
      %2817 = vperm.xlu0 %2816, %v574
      %v2818 = vpop.permute.xlu0 %2817
      %2821 = vset.pattern.permute.xlu0 0
      %2822 = vperm.xlu0 %2821, %v575
      %v2823 = vpop.permute.xlu0 %2822
      %2826 = vset.pattern.permute.xlu0 0
      %2827 = vperm.xlu0 %2826, %v576
      %v2828 = vpop.permute.xlu0 %2827
      %2831 = vset.pattern.permute.xlu0 0
      %2832 = vperm.xlu0 %2831, %v577
      %v2833 = vpop.permute.xlu0 %2832
      %2836 = vset.pattern.permute.xlu0 0
      %2837 = vperm.xlu0 %2836, %v578
      %v2838 = vpop.permute.xlu0 %2837
      %2841 = vset.pattern.permute.xlu0 0
      %2842 = vperm.xlu0 %2841, %v579
      %v2843 = vpop.permute.xlu0 %2842
      %2846 = vset.pattern.permute.xlu0 0
      %2847 = vperm.xlu0 %2846, %v580
      %v2848 = vpop.permute.xlu0 %2847
      %2851 = vset.pattern.permute.xlu0 0
      %2852 = vperm.xlu0 %2851, %v581
      %v2853 = vpop.permute.xlu0 %2852
      %2856 = vset.pattern.permute.xlu0 0
      %2857 = vperm.xlu0 %2856, %v582
      %v2858 = vpop.permute.xlu0 %2857
      %2861 = vset.pattern.permute.xlu0 0
      %2862 = vperm.xlu0 %2861, %v583
      %v2863 = vpop.permute.xlu0 %2862
      %2866 = vset.pattern.permute.xlu0 0
      %2867 = vperm.xlu0 %2866, %v584
      %v2868 = vpop.permute.xlu0 %2867
      %2871 = vset.pattern.permute.xlu0 0
      %2872 = vperm.xlu0 %2871, %v585
      %v2873 = vpop.permute.xlu0 %2872
      %2876 = vset.pattern.permute.xlu0 0
      %2877 = vperm.xlu0 %2876, %v586
      %v2878 = vpop.permute.xlu0 %2877
      %2881 = vset.pattern.permute.xlu0 0
      %2882 = vperm.xlu0 %2881, %v587
      %v2883 = vpop.permute.xlu0 %2882
      %2886 = vset.pattern.permute.xlu0 0
      %2887 = vperm.xlu0 %2886, %v588
      %v2888 = vpop.permute.xlu0 %2887
      %2891 = vset.pattern.permute.xlu0 0
      %2892 = vperm.xlu0 %2891, %v589
      %v2893 = vpop.permute.xlu0 %2892
      %2896 = vset.pattern.permute.xlu0 0
      %2897 = vperm.xlu0 %2896, %v590
      %v2898 = vpop.permute.xlu0 %2897
      %2901 = vset.pattern.permute.xlu0 0
      %2902 = vperm.xlu0 %2901, %v591
      %v2903 = vpop.permute.xlu0 %2902
      %2906 = vset.pattern.permute.xlu0 0
      %2907 = vperm.xlu0 %2906, %v592
      %v2908 = vpop.permute.xlu0 %2907
      %2911 = vset.pattern.permute.xlu0 0
      %2912 = vperm.xlu0 %2911, %v593
      %v2913 = vpop.permute.xlu0 %2912
      %2916 = vset.pattern.permute.xlu0 0
      %2917 = vperm.xlu0 %2916, %v594
      %v2918 = vpop.permute.xlu0 %2917
      %2921 = vset.pattern.permute.xlu0 0
      %2922 = vperm.xlu0 %2921, %v595
      %v2923 = vpop.permute.xlu0 %2922
      %2926 = vset.pattern.permute.xlu0 0
      %2927 = vperm.xlu0 %2926, %v596
      %v2928 = vpop.permute.xlu0 %2927
      %2931 = vset.pattern.permute.xlu0 0
      %2932 = vperm.xlu0 %2931, %v597
      %v2933 = vpop.permute.xlu0 %2932
      %2936 = vset.pattern.permute.xlu0 0
      %2937 = vperm.xlu0 %2936, %v598
      %v2938 = vpop.permute.xlu0 %2937
      %2941 = vset.pattern.permute.xlu0 0
      %2942 = vperm.xlu0 %2941, %v599
      %v2943 = vpop.permute.xlu0 %2942
      %2946 = vset.pattern.permute.xlu0 0
      %2947 = vperm.xlu0 %2946, %v600
      %v2948 = vpop.permute.xlu0 %2947
      %2951 = vset.pattern.permute.xlu0 0
      %2952 = vperm.xlu0 %2951, %v601
      %v2953 = vpop.permute.xlu0 %2952
      %2956 = vset.pattern.permute.xlu0 0
      %2957 = vperm.xlu0 %2956, %v602
      %v2958 = vpop.permute.xlu0 %2957
      %2961 = vset.pattern.permute.xlu0 0
      %2962 = vperm.xlu0 %2961, %v603
      %v2963 = vpop.permute.xlu0 %2962
      %2966 = vset.pattern.permute.xlu0 0
      %2967 = vperm.xlu0 %2966, %v604
      %v2968 = vpop.permute.xlu0 %2967
      %2971 = vset.pattern.permute.xlu0 0
      %2972 = vperm.xlu0 %2971, %v605
      %v2973 = vpop.permute.xlu0 %2972
      %2976 = vset.pattern.permute.xlu0 0
      %2977 = vperm.xlu0 %2976, %v606
      %v2978 = vpop.permute.xlu0 %2977
      %2981 = vset.pattern.permute.xlu0 0
      %2982 = vperm.xlu0 %2981, %v607
      %v2983 = vpop.permute.xlu0 %2982
      %2986 = vset.pattern.permute.xlu0 0
      %2987 = vperm.xlu0 %2986, %v608
      %v2988 = vpop.permute.xlu0 %2987
      %2991 = vset.pattern.permute.xlu0 0
      %2992 = vperm.xlu0 %2991, %v609
      %v2993 = vpop.permute.xlu0 %2992
      %2996 = vset.pattern.permute.xlu0 0
      %2997 = vperm.xlu0 %2996, %v610
      %v2998 = vpop.permute.xlu0 %2997
      %3001 = vset.pattern.permute.xlu0 0
      %3002 = vperm.xlu0 %3001, %v611
      %v3003 = vpop.permute.xlu0 %3002
      %3006 = vset.pattern.permute.xlu0 0
      %3007 = vperm.xlu0 %3006, %v612
      %v3008 = vpop.permute.xlu0 %3007
      %3011 = vset.pattern.permute.xlu0 0
      %3012 = vperm.xlu0 %3011, %v613
      %v3013 = vpop.permute.xlu0 %3012
      %3016 = vset.pattern.permute.xlu0 0
      %3017 = vperm.xlu0 %3016, %v614
      %v3018 = vpop.permute.xlu0 %3017
      %3021 = vset.pattern.permute.xlu0 0
      %3022 = vperm.xlu0 %3021, %v615
      %v3023 = vpop.permute.xlu0 %3022
      %3026 = vset.pattern.permute.xlu0 0
      %3027 = vperm.xlu0 %3026, %v616
      %v3028 = vpop.permute.xlu0 %3027
      %3031 = vset.pattern.permute.xlu0 0
      %3032 = vperm.xlu0 %3031, %v617
      %v3033 = vpop.permute.xlu0 %3032
      %3036 = vset.pattern.permute.xlu0 0
      %3037 = vperm.xlu0 %3036, %v618
      %v3038 = vpop.permute.xlu0 %3037
      %3041 = vset.pattern.permute.xlu0 0
      %3042 = vperm.xlu0 %3041, %v619
      %v3043 = vpop.permute.xlu0 %3042
      %3046 = vset.pattern.permute.xlu0 0
      %3047 = vperm.xlu0 %3046, %v620
      %v3048 = vpop.permute.xlu0 %3047
      %3051 = vset.pattern.permute.xlu0 0
      %3052 = vperm.xlu0 %3051, %v621
      %v3053 = vpop.permute.xlu0 %3052
      %v3055 = vmul.f32 %v2818, %v478
      %v3056 = vmul.f32 %v2823, %v479
      %v3057 = vmul.f32 %v2828, %v480
      %v3058 = vmul.f32 %v2833, %v481
      %v3059 = vmul.f32 %v2838, %v482
      %v3060 = vmul.f32 %v2843, %v483
      %v3061 = vmul.f32 %v2848, %v484
      %v3062 = vmul.f32 %v2853, %v485
      %v3063 = vmul.f32 %v2858, %v486
      %v3064 = vmul.f32 %v2863, %v487
      %v3065 = vmul.f32 %v2868, %v488
      %v3066 = vmul.f32 %v2873, %v489
      %v3067 = vmul.f32 %v2878, %v490
      %v3068 = vmul.f32 %v2883, %v491
      %v3069 = vmul.f32 %v2888, %v492
      %v3070 = vmul.f32 %v2893, %v493
      %v3071 = vmul.f32 %v2898, %v494
      %v3072 = vmul.f32 %v2903, %v495
      %v3073 = vmul.f32 %v2908, %v496
      %v3074 = vmul.f32 %v2913, %v497
      %v3075 = vmul.f32 %v2918, %v498
      %v3076 = vmul.f32 %v2923, %v499
      %v3077 = vmul.f32 %v2928, %v500
      %v3078 = vmul.f32 %v2933, %v501
      %v3079 = vmul.f32 %v2938, %v502
      %v3080 = vmul.f32 %v2943, %v503
      %v3081 = vmul.f32 %v2948, %v504
      %v3082 = vmul.f32 %v2953, %v505
      %v3083 = vmul.f32 %v2958, %v506
      %v3084 = vmul.f32 %v2963, %v507
      %v3085 = vmul.f32 %v2968, %v508
      %v3086 = vmul.f32 %v2973, %v509
      %v3087 = vmul.f32 %v2978, %v510
      %v3088 = vmul.f32 %v2983, %v511
      %v3089 = vmul.f32 %v2988, %v512
      %v3090 = vmul.f32 %v2993, %v513
      %v3091 = vmul.f32 %v2998, %v514
      %v3092 = vmul.f32 %v3003, %v515
      %v3093 = vmul.f32 %v3008, %v516
      %v3094 = vmul.f32 %v3013, %v517
      %v3095 = vmul.f32 %v3018, %v518
      %v3096 = vmul.f32 %v3023, %v519
      %v3097 = vmul.f32 %v3028, %v520
      %v3098 = vmul.f32 %v3033, %v521
      %v3099 = vmul.f32 %v3038, %v522
      %v3100 = vmul.f32 %v3043, %v523
      %v3101 = vmul.f32 %v3048, %v524
      %v3102 = vmul.f32 %v3053, %v525
      %v3103 = vld [vmem:[%s460] sm:$0xff]
      %v3104 = vld [vmem:[%s460 + $0x8] sm:$0xff]
      %v3105 = vld [vmem:[%s460 + $0x10] sm:$0xff]
      %v3106 = vld [vmem:[%s460 + $0x18] sm:$0xff]
      %vm3107 = vcmask 130048
      %v3109 = vsel %vm3107, %v3055, 0
      %v3112 = vsel %vm3107, %v3056, 0
      %v3115 = vsel %vm3107, %v3057, 0
      %v3118 = vsel %vm3107, %v3058, 0
      %v3121 = vsel %vm3107, %v3059, 0
      %v3124 = vsel %vm3107, %v3060, 0
      %v3127 = vsel %vm3107, %v3061, 0
      %v3130 = vsel %vm3107, %v3062, 0
      %v3133 = vsel %vm3107, %v3063, 0
      %v3136 = vsel %vm3107, %v3064, 0
      %v3139 = vsel %vm3107, %v3065, 0
      %v3142 = vsel %vm3107, %v3066, 0
      %v3145 = vsel %vm3107, %v3067, 0
      %v3148 = vsel %vm3107, %v3068, 0
      %v3151 = vsel %vm3107, %v3069, 0
      %v3154 = vsel %vm3107, %v3070, 0
      %v3157 = vsel %vm3107, %v3071, 0
      %v3160 = vsel %vm3107, %v3072, 0
      %v3163 = vsel %vm3107, %v3073, 0
      %v3166 = vsel %vm3107, %v3074, 0
      %v3169 = vsel %vm3107, %v3075, 0
      %v3172 = vsel %vm3107, %v3076, 0
      %v3175 = vsel %vm3107, %v3077, 0
      %v3178 = vsel %vm3107, %v3078, 0
      %v3181 = vsel %vm3107, %v3079, 0
      %v3184 = vsel %vm3107, %v3080, 0
      %v3187 = vsel %vm3107, %v3081, 0
      %v3190 = vsel %vm3107, %v3082, 0
      %v3193 = vsel %vm3107, %v3083, 0
      %v3196 = vsel %vm3107, %v3084, 0
      %v3199 = vsel %vm3107, %v3085, 0
      %v3202 = vsel %vm3107, %v3086, 0
      %v3205 = vsel %vm3107, %v3087, 0
      %v3208 = vsel %vm3107, %v3088, 0
      %v3211 = vsel %vm3107, %v3089, 0
      %v3214 = vsel %vm3107, %v3090, 0
      %v3217 = vsel %vm3107, %v3091, 0
      %v3220 = vsel %vm3107, %v3092, 0
      %v3223 = vsel %vm3107, %v3093, 0
      %v3226 = vsel %vm3107, %v3094, 0
      %v3229 = vsel %vm3107, %v3095, 0
      %v3232 = vsel %vm3107, %v3096, 0
      %v3235 = vsel %vm3107, %v3097, 0
      %v3238 = vsel %vm3107, %v3098, 0
      %v3241 = vsel %vm3107, %v3099, 0
      %v3244 = vsel %vm3107, %v3100, 0
      %v3247 = vsel %vm3107, %v3101, 0
      %v3250 = vsel %vm3107, %v3102, 0
      %3252 = vmatpush.msra.mxu0 0.0
      %3253 = vmatpush.msra.mxu0 0.0
      %3254 = vmatpush.msra.mxu0 0.0
      %3255 = vmatpush.msra.mxu0 0.0
      %3256 = vmatpush.msra.mxu0 0.0
      %3257 = vmatpush.msra.mxu0 0.0
      %3258 = vmatpush.msra.mxu0 0.0
      %3259 = vmatpush.msra.mxu0 0.0
      %3260 = vmatpush.msra.mxu0 0.0
      %3261 = vmatpush.msra.mxu0 0.0
      %3262 = vmatpush.msra.mxu0 0.0
      %3263 = vmatpush.msra.mxu0 0.0
      %3264 = vmatpush.msra.mxu0 0.0
      %3265 = vmatpush.msra.mxu0 0.0
      %3266 = vmatpush.msra.mxu0 %v3106
      %3267 = vmatpush.msra.mxu0 %v3105
      %3268 = vmatmul.f32.gmra.mxu0 %v3109
      %v3269 = vpop.f32.mrf.mxu0
      %v3270 = vadd.f32 0.0, %v3269
      %3271 = vmatmul.f32.gmra.mxu0 %v3112
      %v3272 = vpop.f32.mrf.mxu0
      %v3273 = vadd.f32 0.0, %v3272
      %3274 = vmatmul.f32.gmra.mxu0 %v3115
      %v3275 = vpop.f32.mrf.mxu0
      %v3276 = vadd.f32 0.0, %v3275
      %3277 = vmatmul.f32.gmra.mxu0 %v3118
      %v3278 = vpop.f32.mrf.mxu0
      %v3279 = vadd.f32 0.0, %v3278
      %3280 = vmatmul.f32.gmra.mxu0 %v3121
      %v3281 = vpop.f32.mrf.mxu0
      %v3282 = vadd.f32 0.0, %v3281
      %3283 = vmatmul.f32.gmra.mxu0 %v3124
      %v3284 = vpop.f32.mrf.mxu0
      %v3285 = vadd.f32 0.0, %v3284
      %3286 = vmatmul.f32.gmra.mxu0 %v3127
      %v3287 = vpop.f32.mrf.mxu0
      %v3288 = vadd.f32 0.0, %v3287
      %3289 = vmatmul.f32.gmra.mxu0 %v3130
      %v3290 = vpop.f32.mrf.mxu0
      %v3291 = vadd.f32 0.0, %v3290
      %3292 = vmatmul.f32.gmra.mxu0 %v3133
      %v3293 = vpop.f32.mrf.mxu0
      %v3294 = vadd.f32 0.0, %v3293
      %3295 = vmatmul.f32.gmra.mxu0 %v3136
      %v3296 = vpop.f32.mrf.mxu0
      %v3297 = vadd.f32 0.0, %v3296
      %3298 = vmatmul.f32.gmra.mxu0 %v3139
      %v3299 = vpop.f32.mrf.mxu0
      %v3300 = vadd.f32 0.0, %v3299
      %3301 = vmatmul.f32.gmra.mxu0 %v3142
      %v3302 = vpop.f32.mrf.mxu0
      %v3303 = vadd.f32 0.0, %v3302
      %3304 = vmatmul.f32.gmra.mxu0 %v3145
      %v3305 = vpop.f32.mrf.mxu0
      %v3306 = vadd.f32 0.0, %v3305
      %3307 = vmatmul.f32.gmra.mxu0 %v3148
      %v3308 = vpop.f32.mrf.mxu0
      %v3309 = vadd.f32 0.0, %v3308
      %3310 = vmatmul.f32.gmra.mxu0 %v3151
      %v3311 = vpop.f32.mrf.mxu0
      %v3312 = vadd.f32 0.0, %v3311
      %3313 = vmatmul.f32.gmra.mxu0 %v3154
      %v3314 = vpop.f32.mrf.mxu0
      %v3315 = vadd.f32 0.0, %v3314
      %3316 = vmatmul.f32.gmra.mxu0 %v3157
      %v3317 = vpop.f32.mrf.mxu0
      %v3318 = vadd.f32 0.0, %v3317
      %3319 = vmatmul.f32.gmra.mxu0 %v3160
      %v3320 = vpop.f32.mrf.mxu0
      %v3321 = vadd.f32 0.0, %v3320
      %3322 = vmatmul.f32.gmra.mxu0 %v3163
      %v3323 = vpop.f32.mrf.mxu0
      %v3324 = vadd.f32 0.0, %v3323
      %3325 = vmatmul.f32.gmra.mxu0 %v3166
      %v3326 = vpop.f32.mrf.mxu0
      %v3327 = vadd.f32 0.0, %v3326
      %3328 = vmatmul.f32.gmra.mxu0 %v3169
      %v3329 = vpop.f32.mrf.mxu0
      %v3330 = vadd.f32 0.0, %v3329
      %3331 = vmatmul.f32.gmra.mxu0 %v3172
      %v3332 = vpop.f32.mrf.mxu0
      %v3333 = vadd.f32 0.0, %v3332
      %3334 = vmatmul.f32.gmra.mxu0 %v3175
      %v3335 = vpop.f32.mrf.mxu0
      %v3336 = vadd.f32 0.0, %v3335
      %3337 = vmatmul.f32.gmra.mxu0 %v3178
      %v3338 = vpop.f32.mrf.mxu0
      %v3339 = vadd.f32 0.0, %v3338
      %3340 = vmatmul.f32.gmra.mxu0 %v3181
      %v3341 = vpop.f32.mrf.mxu0
      %v3342 = vadd.f32 0.0, %v3341
      %3343 = vmatmul.f32.gmra.mxu0 %v3184
      %v3344 = vpop.f32.mrf.mxu0
      %v3345 = vadd.f32 0.0, %v3344
      %3346 = vmatmul.f32.gmra.mxu0 %v3187
      %v3347 = vpop.f32.mrf.mxu0
      %v3348 = vadd.f32 0.0, %v3347
      %3349 = vmatmul.f32.gmra.mxu0 %v3190
      %v3350 = vpop.f32.mrf.mxu0
      %v3351 = vadd.f32 0.0, %v3350
      %3352 = vmatmul.f32.gmra.mxu0 %v3193
      %v3353 = vpop.f32.mrf.mxu0
      %v3354 = vadd.f32 0.0, %v3353
      %3355 = vmatmul.f32.gmra.mxu0 %v3196
      %v3356 = vpop.f32.mrf.mxu0
      %v3357 = vadd.f32 0.0, %v3356
      %3358 = vmatmul.f32.gmra.mxu0 %v3199
      %v3359 = vpop.f32.mrf.mxu0
      %v3360 = vadd.f32 0.0, %v3359
      %3361 = vmatmul.f32.gmra.mxu0 %v3202
      %v3362 = vpop.f32.mrf.mxu0
      %v3363 = vadd.f32 0.0, %v3362
      %3364 = vmatmul.f32.gmra.mxu0 %v3205
      %v3365 = vpop.f32.mrf.mxu0
      %v3366 = vadd.f32 0.0, %v3365
      %3367 = vmatmul.f32.gmra.mxu0 %v3208
      %v3368 = vpop.f32.mrf.mxu0
      %v3369 = vadd.f32 0.0, %v3368
      %3370 = vmatmul.f32.gmra.mxu0 %v3211
      %v3371 = vpop.f32.mrf.mxu0
      %v3372 = vadd.f32 0.0, %v3371
      %3373 = vmatmul.f32.gmra.mxu0 %v3214
      %v3374 = vpop.f32.mrf.mxu0
      %v3375 = vadd.f32 0.0, %v3374
      %3376 = vmatmul.f32.gmra.mxu0 %v3217
      %v3377 = vpop.f32.mrf.mxu0
      %v3378 = vadd.f32 0.0, %v3377
      %3379 = vmatmul.f32.gmra.mxu0 %v3220
      %v3380 = vpop.f32.mrf.mxu0
      %v3381 = vadd.f32 0.0, %v3380
      %3382 = vmatmul.f32.gmra.mxu0 %v3223
      %v3383 = vpop.f32.mrf.mxu0
      %v3384 = vadd.f32 0.0, %v3383
      %3385 = vmatmul.f32.gmra.mxu0 %v3226
      %v3386 = vpop.f32.mrf.mxu0
      %v3387 = vadd.f32 0.0, %v3386
      %3388 = vmatmul.f32.gmra.mxu0 %v3229
      %v3389 = vpop.f32.mrf.mxu0
      %v3390 = vadd.f32 0.0, %v3389
      %3391 = vmatmul.f32.gmra.mxu0 %v3232
      %v3392 = vpop.f32.mrf.mxu0
      %v3393 = vadd.f32 0.0, %v3392
      %3394 = vmatmul.f32.gmra.mxu0 %v3235
      %v3395 = vpop.f32.mrf.mxu0
      %v3396 = vadd.f32 0.0, %v3395
      %3397 = vmatmul.f32.gmra.mxu0 %v3238
      %v3398 = vpop.f32.mrf.mxu0
      %v3399 = vadd.f32 0.0, %v3398
      %3400 = vmatmul.f32.gmra.mxu0 %v3241
      %v3401 = vpop.f32.mrf.mxu0
      %v3402 = vadd.f32 0.0, %v3401
      %3403 = vmatmul.f32.gmra.mxu0 %v3244
      %v3404 = vpop.f32.mrf.mxu0
      %v3405 = vadd.f32 0.0, %v3404
      %3406 = vmatmul.f32.gmra.mxu0 %v3247
      %v3407 = vpop.f32.mrf.mxu0
      %v3408 = vadd.f32 0.0, %v3407
      %3409 = vmatmul.f32.gmra.mxu0 %v3250
      %v3410 = vpop.f32.mrf.mxu0
      %v3411 = vadd.f32 0.0, %v3410
      %3412 = vdwg.mxu0
      %v3414 = vsel %vm3107, %v478, 0
      %v3417 = vsel %vm3107, %v479, 0
      %v3420 = vsel %vm3107, %v480, 0
      %v3423 = vsel %vm3107, %v481, 0
      %v3426 = vsel %vm3107, %v482, 0
      %v3429 = vsel %vm3107, %v483, 0
      %v3432 = vsel %vm3107, %v484, 0
      %v3435 = vsel %vm3107, %v485, 0
      %v3438 = vsel %vm3107, %v486, 0
      %v3441 = vsel %vm3107, %v487, 0
      %v3444 = vsel %vm3107, %v488, 0
      %v3447 = vsel %vm3107, %v489, 0
      %v3450 = vsel %vm3107, %v490, 0
      %v3453 = vsel %vm3107, %v491, 0
      %v3456 = vsel %vm3107, %v492, 0
      %v3459 = vsel %vm3107, %v493, 0
      %v3462 = vsel %vm3107, %v494, 0
      %v3465 = vsel %vm3107, %v495, 0
      %v3468 = vsel %vm3107, %v496, 0
      %v3471 = vsel %vm3107, %v497, 0
      %v3474 = vsel %vm3107, %v498, 0
      %v3477 = vsel %vm3107, %v499, 0
      %v3480 = vsel %vm3107, %v500, 0
      %v3483 = vsel %vm3107, %v501, 0
      %v3486 = vsel %vm3107, %v502, 0
      %v3489 = vsel %vm3107, %v503, 0
      %v3492 = vsel %vm3107, %v504, 0
      %v3495 = vsel %vm3107, %v505, 0
      %v3498 = vsel %vm3107, %v506, 0
      %v3501 = vsel %vm3107, %v507, 0
      %v3504 = vsel %vm3107, %v508, 0
      %v3507 = vsel %vm3107, %v509, 0
      %v3510 = vsel %vm3107, %v510, 0
      %v3513 = vsel %vm3107, %v511, 0
      %v3516 = vsel %vm3107, %v512, 0
      %v3519 = vsel %vm3107, %v513, 0
      %v3522 = vsel %vm3107, %v514, 0
      %v3525 = vsel %vm3107, %v515, 0
      %v3528 = vsel %vm3107, %v516, 0
      %v3531 = vsel %vm3107, %v517, 0
      %v3534 = vsel %vm3107, %v518, 0
      %v3537 = vsel %vm3107, %v519, 0
      %v3540 = vsel %vm3107, %v520, 0
      %v3543 = vsel %vm3107, %v521, 0
      %v3546 = vsel %vm3107, %v522, 0
      %v3549 = vsel %vm3107, %v523, 0
      %v3552 = vsel %vm3107, %v524, 0
      %v3555 = vsel %vm3107, %v525, 0
      %3557 = vmatpush.msra.mxu0 0.0
      %3558 = vmatpush.msra.mxu0 0.0
      %3559 = vmatpush.msra.mxu0 0.0
      %3560 = vmatpush.msra.mxu0 0.0
      %3561 = vmatpush.msra.mxu0 0.0
      %3562 = vmatpush.msra.mxu0 0.0
      %3563 = vmatpush.msra.mxu0 0.0
      %3564 = vmatpush.msra.mxu0 0.0
      %3565 = vmatpush.msra.mxu0 0.0
      %3566 = vmatpush.msra.mxu0 0.0
      %3567 = vmatpush.msra.mxu0 0.0
      %3568 = vmatpush.msra.mxu0 0.0
      %3569 = vmatpush.msra.mxu0 0.0
      %3570 = vmatpush.msra.mxu0 0.0
      %3571 = vmatpush.msra.mxu0 %v3104
      %3572 = vmatpush.msra.mxu0 %v3103
      %3573 = vmatmul.f32.gmra.mxu0 %v3414
      %v3574 = vpop.f32.mrf.mxu0
      %v3575 = vadd.f32 %v3270, %v3574
      %3576 = vmatmul.f32.gmra.mxu0 %v3417
      %v3577 = vpop.f32.mrf.mxu0
      %v3578 = vadd.f32 %v3273, %v3577
      %3579 = vmatmul.f32.gmra.mxu0 %v3420
      %v3580 = vpop.f32.mrf.mxu0
      %v3581 = vadd.f32 %v3276, %v3580
      %3582 = vmatmul.f32.gmra.mxu0 %v3423
      %v3583 = vpop.f32.mrf.mxu0
      %v3584 = vadd.f32 %v3279, %v3583
      %3585 = vmatmul.f32.gmra.mxu0 %v3426
      %v3586 = vpop.f32.mrf.mxu0
      %v3587 = vadd.f32 %v3282, %v3586
      %3588 = vmatmul.f32.gmra.mxu0 %v3429
      %v3589 = vpop.f32.mrf.mxu0
      %v3590 = vadd.f32 %v3285, %v3589
      %3591 = vmatmul.f32.gmra.mxu0 %v3432
      %v3592 = vpop.f32.mrf.mxu0
      %v3593 = vadd.f32 %v3288, %v3592
      %3594 = vmatmul.f32.gmra.mxu0 %v3435
      %v3595 = vpop.f32.mrf.mxu0
      %v3596 = vadd.f32 %v3291, %v3595
      %3597 = vmatmul.f32.gmra.mxu0 %v3438
      %v3598 = vpop.f32.mrf.mxu0
      %v3599 = vadd.f32 %v3294, %v3598
      %3600 = vmatmul.f32.gmra.mxu0 %v3441
      %v3601 = vpop.f32.mrf.mxu0
      %v3602 = vadd.f32 %v3297, %v3601
      %3603 = vmatmul.f32.gmra.mxu0 %v3444
      %v3604 = vpop.f32.mrf.mxu0
      %v3605 = vadd.f32 %v3300, %v3604
      %3606 = vmatmul.f32.gmra.mxu0 %v3447
      %v3607 = vpop.f32.mrf.mxu0
      %v3608 = vadd.f32 %v3303, %v3607
      %3609 = vmatmul.f32.gmra.mxu0 %v3450
      %v3610 = vpop.f32.mrf.mxu0
      %v3611 = vadd.f32 %v3306, %v3610
      %3612 = vmatmul.f32.gmra.mxu0 %v3453
      %v3613 = vpop.f32.mrf.mxu0
      %v3614 = vadd.f32 %v3309, %v3613
      %3615 = vmatmul.f32.gmra.mxu0 %v3456
      %v3616 = vpop.f32.mrf.mxu0
      %v3617 = vadd.f32 %v3312, %v3616
      %3618 = vmatmul.f32.gmra.mxu0 %v3459
      %v3619 = vpop.f32.mrf.mxu0
      %v3620 = vadd.f32 %v3315, %v3619
      %3621 = vmatmul.f32.gmra.mxu0 %v3462
      %v3622 = vpop.f32.mrf.mxu0
      %v3623 = vadd.f32 %v3318, %v3622
      %3624 = vmatmul.f32.gmra.mxu0 %v3465
      %v3625 = vpop.f32.mrf.mxu0
      %v3626 = vadd.f32 %v3321, %v3625
      %3627 = vmatmul.f32.gmra.mxu0 %v3468
      %v3628 = vpop.f32.mrf.mxu0
      %v3629 = vadd.f32 %v3324, %v3628
      %3630 = vmatmul.f32.gmra.mxu0 %v3471
      %v3631 = vpop.f32.mrf.mxu0
      %v3632 = vadd.f32 %v3327, %v3631
      %3633 = vmatmul.f32.gmra.mxu0 %v3474
      %v3634 = vpop.f32.mrf.mxu0
      %v3635 = vadd.f32 %v3330, %v3634
      %3636 = vmatmul.f32.gmra.mxu0 %v3477
      %v3637 = vpop.f32.mrf.mxu0
      %v3638 = vadd.f32 %v3333, %v3637
      %3639 = vmatmul.f32.gmra.mxu0 %v3480
      %v3640 = vpop.f32.mrf.mxu0
      %v3641 = vadd.f32 %v3336, %v3640
      %3642 = vmatmul.f32.gmra.mxu0 %v3483
      %v3643 = vpop.f32.mrf.mxu0
      %v3644 = vadd.f32 %v3339, %v3643
      %3645 = vmatmul.f32.gmra.mxu0 %v3486
      %v3646 = vpop.f32.mrf.mxu0
      %v3647 = vadd.f32 %v3342, %v3646
      %3648 = vmatmul.f32.gmra.mxu0 %v3489
      %v3649 = vpop.f32.mrf.mxu0
      %v3650 = vadd.f32 %v3345, %v3649
      %3651 = vmatmul.f32.gmra.mxu0 %v3492
      %v3652 = vpop.f32.mrf.mxu0
      %v3653 = vadd.f32 %v3348, %v3652
      %3654 = vmatmul.f32.gmra.mxu0 %v3495
      %v3655 = vpop.f32.mrf.mxu0
      %v3656 = vadd.f32 %v3351, %v3655
      %3657 = vmatmul.f32.gmra.mxu0 %v3498
      %v3658 = vpop.f32.mrf.mxu0
      %v3659 = vadd.f32 %v3354, %v3658
      %3660 = vmatmul.f32.gmra.mxu0 %v3501
      %v3661 = vpop.f32.mrf.mxu0
      %v3662 = vadd.f32 %v3357, %v3661
      %3663 = vmatmul.f32.gmra.mxu0 %v3504
      %v3664 = vpop.f32.mrf.mxu0
      %v3665 = vadd.f32 %v3360, %v3664
      %3666 = vmatmul.f32.gmra.mxu0 %v3507
      %v3667 = vpop.f32.mrf.mxu0
      %v3668 = vadd.f32 %v3363, %v3667
      %3669 = vmatmul.f32.gmra.mxu0 %v3510
      %v3670 = vpop.f32.mrf.mxu0
      %v3671 = vadd.f32 %v3366, %v3670
      %3672 = vmatmul.f32.gmra.mxu0 %v3513
      %v3673 = vpop.f32.mrf.mxu0
      %v3674 = vadd.f32 %v3369, %v3673
      %3675 = vmatmul.f32.gmra.mxu0 %v3516
      %v3676 = vpop.f32.mrf.mxu0
      %v3677 = vadd.f32 %v3372, %v3676
      %3678 = vmatmul.f32.gmra.mxu0 %v3519
      %v3679 = vpop.f32.mrf.mxu0
      %v3680 = vadd.f32 %v3375, %v3679
      %3681 = vmatmul.f32.gmra.mxu0 %v3522
      %v3682 = vpop.f32.mrf.mxu0
      %v3683 = vadd.f32 %v3378, %v3682
      %3684 = vmatmul.f32.gmra.mxu0 %v3525
      %v3685 = vpop.f32.mrf.mxu0
      %v3686 = vadd.f32 %v3381, %v3685
      %3687 = vmatmul.f32.gmra.mxu0 %v3528
      %v3688 = vpop.f32.mrf.mxu0
      %v3689 = vadd.f32 %v3384, %v3688
      %3690 = vmatmul.f32.gmra.mxu0 %v3531
      %v3691 = vpop.f32.mrf.mxu0
      %v3692 = vadd.f32 %v3387, %v3691
      %3693 = vmatmul.f32.gmra.mxu0 %v3534
      %v3694 = vpop.f32.mrf.mxu0
      %v3695 = vadd.f32 %v3390, %v3694
      %3696 = vmatmul.f32.gmra.mxu0 %v3537
      %v3697 = vpop.f32.mrf.mxu0
      %v3698 = vadd.f32 %v3393, %v3697
      %3699 = vmatmul.f32.gmra.mxu0 %v3540
      %v3700 = vpop.f32.mrf.mxu0
      %v3701 = vadd.f32 %v3396, %v3700
      %3702 = vmatmul.f32.gmra.mxu0 %v3543
      %v3703 = vpop.f32.mrf.mxu0
      %v3704 = vadd.f32 %v3399, %v3703
      %3705 = vmatmul.f32.gmra.mxu0 %v3546
      %v3706 = vpop.f32.mrf.mxu0
      %v3707 = vadd.f32 %v3402, %v3706
      %3708 = vmatmul.f32.gmra.mxu0 %v3549
      %v3709 = vpop.f32.mrf.mxu0
      %v3710 = vadd.f32 %v3405, %v3709
      %3711 = vmatmul.f32.gmra.mxu0 %v3552
      %v3712 = vpop.f32.mrf.mxu0
      %v3713 = vadd.f32 %v3408, %v3712
      %3714 = vmatmul.f32.gmra.mxu0 %v3555
      %v3715 = vpop.f32.mrf.mxu0
      %v3716 = vadd.f32 %v3411, %v3715
      %3717 = vdwg.mxu0
      %v3718 = vld [vmem:[%s460 + $0x20] sm:$0xff]
      %v3719 = vld [vmem:[%s460 + $0x28] sm:$0xff]
      %v3721 = vsel %vm3107, %v2696, 0
      %v3724 = vsel %vm3107, %v2698, 0
      %v3727 = vsel %vm3107, %v2701, 0
      %v3730 = vsel %vm3107, %v2703, 0
      %v3733 = vsel %vm3107, %v2706, 0
      %v3736 = vsel %vm3107, %v2708, 0
      %v3739 = vsel %vm3107, %v2711, 0
      %v3742 = vsel %vm3107, %v2713, 0
      %v3745 = vsel %vm3107, %v2716, 0
      %v3748 = vsel %vm3107, %v2718, 0
      %v3751 = vsel %vm3107, %v2721, 0
      %v3754 = vsel %vm3107, %v2723, 0
      %v3757 = vsel %vm3107, %v2726, 0
      %v3760 = vsel %vm3107, %v2728, 0
      %v3763 = vsel %vm3107, %v2731, 0
      %v3766 = vsel %vm3107, %v2733, 0
      %v3769 = vsel %vm3107, %v2736, 0
      %v3772 = vsel %vm3107, %v2738, 0
      %v3775 = vsel %vm3107, %v2741, 0
      %v3778 = vsel %vm3107, %v2743, 0
      %v3781 = vsel %vm3107, %v2746, 0
      %v3784 = vsel %vm3107, %v2748, 0
      %v3787 = vsel %vm3107, %v2751, 0
      %v3790 = vsel %vm3107, %v2753, 0
      %v3793 = vsel %vm3107, %v2756, 0
      %v3796 = vsel %vm3107, %v2758, 0
      %v3799 = vsel %vm3107, %v2761, 0
      %v3802 = vsel %vm3107, %v2763, 0
      %v3805 = vsel %vm3107, %v2766, 0
      %v3808 = vsel %vm3107, %v2768, 0
      %v3811 = vsel %vm3107, %v2771, 0
      %v3814 = vsel %vm3107, %v2773, 0
      %v3817 = vsel %vm3107, %v2776, 0
      %v3820 = vsel %vm3107, %v2778, 0
      %v3823 = vsel %vm3107, %v2781, 0
      %v3826 = vsel %vm3107, %v2783, 0
      %v3829 = vsel %vm3107, %v2786, 0
      %v3832 = vsel %vm3107, %v2788, 0
      %v3835 = vsel %vm3107, %v2791, 0
      %v3838 = vsel %vm3107, %v2793, 0
      %v3841 = vsel %vm3107, %v2796, 0
      %v3844 = vsel %vm3107, %v2798, 0
      %v3847 = vsel %vm3107, %v2801, 0
      %v3850 = vsel %vm3107, %v2803, 0
      %v3853 = vsel %vm3107, %v2806, 0
      %v3856 = vsel %vm3107, %v2808, 0
      %v3859 = vsel %vm3107, %v2811, 0
      %v3862 = vsel %vm3107, %v2813, 0
      %3864 = vmatpush.msra.mxu0 0.0
      %3865 = vmatpush.msra.mxu0 0.0
      %3866 = vmatpush.msra.mxu0 0.0
      %3867 = vmatpush.msra.mxu0 0.0
      %3868 = vmatpush.msra.mxu0 0.0
      %3869 = vmatpush.msra.mxu0 0.0
      %3870 = vmatpush.msra.mxu0 0.0
      %3871 = vmatpush.msra.mxu0 0.0
      %3872 = vmatpush.msra.mxu0 0.0
      %3873 = vmatpush.msra.mxu0 0.0
      %3874 = vmatpush.msra.mxu0 0.0
      %3875 = vmatpush.msra.mxu0 0.0
      %3876 = vmatpush.msra.mxu0 0.0
      %3877 = vmatpush.msra.mxu0 0.0
      %3878 = vmatpush.msra.mxu0 %v3719
      %3879 = vmatpush.msra.mxu0 %v3718
      %3880 = vmatmul.f32.gmra.mxu0 %v3721
      %v3881 = vpop.f32.mrf.mxu0
      %v3882 = vadd.f32 0.0, %v3881
      %3883 = vmatmul.f32.gmra.mxu0 %v3724
      %v3884 = vpop.f32.mrf.mxu0
      %v3885 = vadd.f32 0.0, %v3884
      %3886 = vmatmul.f32.gmra.mxu0 %v3727
      %v3887 = vpop.f32.mrf.mxu0
      %v3888 = vadd.f32 0.0, %v3887
      %3889 = vmatmul.f32.gmra.mxu0 %v3730
      %v3890 = vpop.f32.mrf.mxu0
      %v3891 = vadd.f32 0.0, %v3890
      %3892 = vmatmul.f32.gmra.mxu0 %v3733
      %v3893 = vpop.f32.mrf.mxu0
      %v3894 = vadd.f32 0.0, %v3893
      %3895 = vmatmul.f32.gmra.mxu0 %v3736
      %v3896 = vpop.f32.mrf.mxu0
      %v3897 = vadd.f32 0.0, %v3896
      %3898 = vmatmul.f32.gmra.mxu0 %v3739
      %v3899 = vpop.f32.mrf.mxu0
      %v3900 = vadd.f32 0.0, %v3899
      %3901 = vmatmul.f32.gmra.mxu0 %v3742
      %v3902 = vpop.f32.mrf.mxu0
      %v3903 = vadd.f32 0.0, %v3902
      %3904 = vmatmul.f32.gmra.mxu0 %v3745
      %v3905 = vpop.f32.mrf.mxu0
      %v3906 = vadd.f32 0.0, %v3905
      %3907 = vmatmul.f32.gmra.mxu0 %v3748
      %v3908 = vpop.f32.mrf.mxu0
      %v3909 = vadd.f32 0.0, %v3908
      %3910 = vmatmul.f32.gmra.mxu0 %v3751
      %v3911 = vpop.f32.mrf.mxu0
      %v3912 = vadd.f32 0.0, %v3911
      %3913 = vmatmul.f32.gmra.mxu0 %v3754
      %v3914 = vpop.f32.mrf.mxu0
      %v3915 = vadd.f32 0.0, %v3914
      %3916 = vmatmul.f32.gmra.mxu0 %v3757
      %v3917 = vpop.f32.mrf.mxu0
      %v3918 = vadd.f32 0.0, %v3917
      %3919 = vmatmul.f32.gmra.mxu0 %v3760
      %v3920 = vpop.f32.mrf.mxu0
      %v3921 = vadd.f32 0.0, %v3920
      %3922 = vmatmul.f32.gmra.mxu0 %v3763
      %v3923 = vpop.f32.mrf.mxu0
      %v3924 = vadd.f32 0.0, %v3923
      %3925 = vmatmul.f32.gmra.mxu0 %v3766
      %v3926 = vpop.f32.mrf.mxu0
      %v3927 = vadd.f32 0.0, %v3926
      %3928 = vmatmul.f32.gmra.mxu0 %v3769
      %v3929 = vpop.f32.mrf.mxu0
      %v3930 = vadd.f32 0.0, %v3929
      %3931 = vmatmul.f32.gmra.mxu0 %v3772
      %v3932 = vpop.f32.mrf.mxu0
      %v3933 = vadd.f32 0.0, %v3932
      %3934 = vmatmul.f32.gmra.mxu0 %v3775
      %v3935 = vpop.f32.mrf.mxu0
      %v3936 = vadd.f32 0.0, %v3935
      %3937 = vmatmul.f32.gmra.mxu0 %v3778
      %v3938 = vpop.f32.mrf.mxu0
      %v3939 = vadd.f32 0.0, %v3938
      %3940 = vmatmul.f32.gmra.mxu0 %v3781
      %v3941 = vpop.f32.mrf.mxu0
      %v3942 = vadd.f32 0.0, %v3941
      %3943 = vmatmul.f32.gmra.mxu0 %v3784
      %v3944 = vpop.f32.mrf.mxu0
      %v3945 = vadd.f32 0.0, %v3944
      %3946 = vmatmul.f32.gmra.mxu0 %v3787
      %v3947 = vpop.f32.mrf.mxu0
      %v3948 = vadd.f32 0.0, %v3947
      %3949 = vmatmul.f32.gmra.mxu0 %v3790
      %v3950 = vpop.f32.mrf.mxu0
      %v3951 = vadd.f32 0.0, %v3950
      %3952 = vmatmul.f32.gmra.mxu0 %v3793
      %v3953 = vpop.f32.mrf.mxu0
      %v3954 = vadd.f32 0.0, %v3953
      %3955 = vmatmul.f32.gmra.mxu0 %v3796
      %v3956 = vpop.f32.mrf.mxu0
      %v3957 = vadd.f32 0.0, %v3956
      %3958 = vmatmul.f32.gmra.mxu0 %v3799
      %v3959 = vpop.f32.mrf.mxu0
      %v3960 = vadd.f32 0.0, %v3959
      %3961 = vmatmul.f32.gmra.mxu0 %v3802
      %v3962 = vpop.f32.mrf.mxu0
      %v3963 = vadd.f32 0.0, %v3962
      %3964 = vmatmul.f32.gmra.mxu0 %v3805
      %v3965 = vpop.f32.mrf.mxu0
      %v3966 = vadd.f32 0.0, %v3965
      %3967 = vmatmul.f32.gmra.mxu0 %v3808
      %v3968 = vpop.f32.mrf.mxu0
      %v3969 = vadd.f32 0.0, %v3968
      %3970 = vmatmul.f32.gmra.mxu0 %v3811
      %v3971 = vpop.f32.mrf.mxu0
      %v3972 = vadd.f32 0.0, %v3971
      %3973 = vmatmul.f32.gmra.mxu0 %v3814
      %v3974 = vpop.f32.mrf.mxu0
      %v3975 = vadd.f32 0.0, %v3974
      %3976 = vmatmul.f32.gmra.mxu0 %v3817
      %v3977 = vpop.f32.mrf.mxu0
      %v3978 = vadd.f32 0.0, %v3977
      %3979 = vmatmul.f32.gmra.mxu0 %v3820
      %v3980 = vpop.f32.mrf.mxu0
      %v3981 = vadd.f32 0.0, %v3980
      %3982 = vmatmul.f32.gmra.mxu0 %v3823
      %v3983 = vpop.f32.mrf.mxu0
      %v3984 = vadd.f32 0.0, %v3983
      %3985 = vmatmul.f32.gmra.mxu0 %v3826
      %v3986 = vpop.f32.mrf.mxu0
      %v3987 = vadd.f32 0.0, %v3986
      %3988 = vmatmul.f32.gmra.mxu0 %v3829
      %v3989 = vpop.f32.mrf.mxu0
      %v3990 = vadd.f32 0.0, %v3989
      %3991 = vmatmul.f32.gmra.mxu0 %v3832
      %v3992 = vpop.f32.mrf.mxu0
      %v3993 = vadd.f32 0.0, %v3992
      %3994 = vmatmul.f32.gmra.mxu0 %v3835
      %v3995 = vpop.f32.mrf.mxu0
      %v3996 = vadd.f32 0.0, %v3995
      %3997 = vmatmul.f32.gmra.mxu0 %v3838
      %v3998 = vpop.f32.mrf.mxu0
      %v3999 = vadd.f32 0.0, %v3998
      %4000 = vmatmul.f32.gmra.mxu0 %v3841
      %v4001 = vpop.f32.mrf.mxu0
      %v4002 = vadd.f32 0.0, %v4001
      %4003 = vmatmul.f32.gmra.mxu0 %v3844
      %v4004 = vpop.f32.mrf.mxu0
      %v4005 = vadd.f32 0.0, %v4004
      %4006 = vmatmul.f32.gmra.mxu0 %v3847
      %v4007 = vpop.f32.mrf.mxu0
      %v4008 = vadd.f32 0.0, %v4007
      %4009 = vmatmul.f32.gmra.mxu0 %v3850
      %v4010 = vpop.f32.mrf.mxu0
      %v4011 = vadd.f32 0.0, %v4010
      %4012 = vmatmul.f32.gmra.mxu0 %v3853
      %v4013 = vpop.f32.mrf.mxu0
      %v4014 = vadd.f32 0.0, %v4013
      %4015 = vmatmul.f32.gmra.mxu0 %v3856
      %v4016 = vpop.f32.mrf.mxu0
      %v4017 = vadd.f32 0.0, %v4016
      %4018 = vmatmul.f32.gmra.mxu0 %v3859
      %v4019 = vpop.f32.mrf.mxu0
      %v4020 = vadd.f32 0.0, %v4019
      %4021 = vmatmul.f32.gmra.mxu0 %v3862
      %v4022 = vpop.f32.mrf.mxu0
      %v4023 = vadd.f32 0.0, %v4022
      %4024 = vdwg.mxu0
      %v4025 = vadd.f32 %v3575, %v3882
      %v4026 = vadd.f32 %v3578, %v3885
      %v4027 = vadd.f32 %v3581, %v3888
      %v4028 = vadd.f32 %v3584, %v3891
      %v4029 = vadd.f32 %v3587, %v3894
      %v4030 = vadd.f32 %v3590, %v3897
      %v4031 = vadd.f32 %v3593, %v3900
      %v4032 = vadd.f32 %v3596, %v3903
      %v4033 = vadd.f32 %v3599, %v3906
      %v4034 = vadd.f32 %v3602, %v3909
      %v4035 = vadd.f32 %v3605, %v3912
      %v4036 = vadd.f32 %v3608, %v3915
      %v4037 = vadd.f32 %v3611, %v3918
      %v4038 = vadd.f32 %v3614, %v3921
      %v4039 = vadd.f32 %v3617, %v3924
      %v4040 = vadd.f32 %v3620, %v3927
      %v4041 = vadd.f32 %v3623, %v3930
      %v4042 = vadd.f32 %v3626, %v3933
      %v4043 = vadd.f32 %v3629, %v3936
      %v4044 = vadd.f32 %v3632, %v3939
      %v4045 = vadd.f32 %v3635, %v3942
      %v4046 = vadd.f32 %v3638, %v3945
      %v4047 = vadd.f32 %v3641, %v3948
      %v4048 = vadd.f32 %v3644, %v3951
      %v4049 = vadd.f32 %v3647, %v3954
      %v4050 = vadd.f32 %v3650, %v3957
      %v4051 = vadd.f32 %v3653, %v3960
      %v4052 = vadd.f32 %v3656, %v3963
      %v4053 = vadd.f32 %v3659, %v3966
      %v4054 = vadd.f32 %v3662, %v3969
      %v4055 = vadd.f32 %v3665, %v3972
      %v4056 = vadd.f32 %v3668, %v3975
      %v4057 = vadd.f32 %v3671, %v3978
      %v4058 = vadd.f32 %v3674, %v3981
      %v4059 = vadd.f32 %v3677, %v3984
      %v4060 = vadd.f32 %v3680, %v3987
      %v4061 = vadd.f32 %v3683, %v3990
      %v4062 = vadd.f32 %v3686, %v3993
      %v4063 = vadd.f32 %v3689, %v3996
      %v4064 = vadd.f32 %v3692, %v3999
      %v4065 = vadd.f32 %v3695, %v4002
      %v4066 = vadd.f32 %v3698, %v4005
      %v4067 = vadd.f32 %v3701, %v4008
      %v4068 = vadd.f32 %v3704, %v4011
      %v4069 = vadd.f32 %v3707, %v4014
      %v4070 = vadd.f32 %v3710, %v4017
      %v4071 = vadd.f32 %v3713, %v4020
      %v4072 = vadd.f32 %v3716, %v4023
      %v4073 = vld [vmem:[%s460 + $0x30] sm:$0xff]
      %v4074 = vld [vmem:[%s460 + $0x38] sm:$0xff]
      %v4076 = vsel %vm3107, %v1490, 0
      %v4079 = vsel %vm3107, %v1492, 0
      %v4082 = vsel %vm3107, %v1495, 0
      %v4085 = vsel %vm3107, %v1497, 0
      %v4088 = vsel %vm3107, %v1500, 0
      %v4091 = vsel %vm3107, %v1502, 0
      %v4094 = vsel %vm3107, %v1505, 0
      %v4097 = vsel %vm3107, %v1507, 0
      %v4100 = vsel %vm3107, %v1510, 0
      %v4103 = vsel %vm3107, %v1512, 0
      %v4106 = vsel %vm3107, %v1515, 0
      %v4109 = vsel %vm3107, %v1517, 0
      %v4112 = vsel %vm3107, %v1520, 0
      %v4115 = vsel %vm3107, %v1522, 0
      %v4118 = vsel %vm3107, %v1525, 0
      %v4121 = vsel %vm3107, %v1527, 0
      %v4124 = vsel %vm3107, %v1530, 0
      %v4127 = vsel %vm3107, %v1532, 0
      %v4130 = vsel %vm3107, %v1535, 0
      %v4133 = vsel %vm3107, %v1537, 0
      %v4136 = vsel %vm3107, %v1540, 0
      %v4139 = vsel %vm3107, %v1542, 0
      %v4142 = vsel %vm3107, %v1545, 0
      %v4145 = vsel %vm3107, %v1547, 0
      %v4148 = vsel %vm3107, %v1550, 0
      %v4151 = vsel %vm3107, %v1552, 0
      %v4154 = vsel %vm3107, %v1555, 0
      %v4157 = vsel %vm3107, %v1557, 0
      %v4160 = vsel %vm3107, %v1560, 0
      %v4163 = vsel %vm3107, %v1562, 0
      %v4166 = vsel %vm3107, %v1565, 0
      %v4169 = vsel %vm3107, %v1567, 0
      %v4172 = vsel %vm3107, %v1570, 0
      %v4175 = vsel %vm3107, %v1572, 0
      %v4178 = vsel %vm3107, %v1575, 0
      %v4181 = vsel %vm3107, %v1577, 0
      %v4184 = vsel %vm3107, %v1580, 0
      %v4187 = vsel %vm3107, %v1582, 0
      %v4190 = vsel %vm3107, %v1585, 0
      %v4193 = vsel %vm3107, %v1587, 0
      %v4196 = vsel %vm3107, %v1590, 0
      %v4199 = vsel %vm3107, %v1592, 0
      %v4202 = vsel %vm3107, %v1595, 0
      %v4205 = vsel %vm3107, %v1597, 0
      %v4208 = vsel %vm3107, %v1600, 0
      %v4211 = vsel %vm3107, %v1602, 0
      %v4214 = vsel %vm3107, %v1605, 0
      %v4217 = vsel %vm3107, %v1607, 0
      %4219 = vmatpush.msra.mxu0 0.0
      %4220 = vmatpush.msra.mxu0 0.0
      %4221 = vmatpush.msra.mxu0 0.0
      %4222 = vmatpush.msra.mxu0 0.0
      %4223 = vmatpush.msra.mxu0 0.0
      %4224 = vmatpush.msra.mxu0 0.0
      %4225 = vmatpush.msra.mxu0 0.0
      %4226 = vmatpush.msra.mxu0 0.0
      %4227 = vmatpush.msra.mxu0 0.0
      %4228 = vmatpush.msra.mxu0 0.0
      %4229 = vmatpush.msra.mxu0 0.0
      %4230 = vmatpush.msra.mxu0 0.0
      %4231 = vmatpush.msra.mxu0 0.0
      %4232 = vmatpush.msra.mxu0 0.0
      %4233 = vmatpush.msra.mxu0 %v4074
      %4234 = vmatpush.msra.mxu0 %v4073
      %4235 = vmatmul.f32.gmra.mxu0 %v4076
      %v4236 = vpop.f32.mrf.mxu0
      %v4237 = vadd.f32 0.0, %v4236
      %4238 = vmatmul.f32.gmra.mxu0 %v4079
      %v4239 = vpop.f32.mrf.mxu0
      %v4240 = vadd.f32 0.0, %v4239
      %4241 = vmatmul.f32.gmra.mxu0 %v4082
      %v4242 = vpop.f32.mrf.mxu0
      %v4243 = vadd.f32 0.0, %v4242
      %4244 = vmatmul.f32.gmra.mxu0 %v4085
      %v4245 = vpop.f32.mrf.mxu0
      %v4246 = vadd.f32 0.0, %v4245
      %4247 = vmatmul.f32.gmra.mxu0 %v4088
      %v4248 = vpop.f32.mrf.mxu0
      %v4249 = vadd.f32 0.0, %v4248
      %4250 = vmatmul.f32.gmra.mxu0 %v4091
      %v4251 = vpop.f32.mrf.mxu0
      %v4252 = vadd.f32 0.0, %v4251
      %4253 = vmatmul.f32.gmra.mxu0 %v4094
      %v4254 = vpop.f32.mrf.mxu0
      %v4255 = vadd.f32 0.0, %v4254
      %4256 = vmatmul.f32.gmra.mxu0 %v4097
      %v4257 = vpop.f32.mrf.mxu0
      %v4258 = vadd.f32 0.0, %v4257
      %4259 = vmatmul.f32.gmra.mxu0 %v4100
      %v4260 = vpop.f32.mrf.mxu0
      %v4261 = vadd.f32 0.0, %v4260
      %4262 = vmatmul.f32.gmra.mxu0 %v4103
      %v4263 = vpop.f32.mrf.mxu0
      %v4264 = vadd.f32 0.0, %v4263
      %4265 = vmatmul.f32.gmra.mxu0 %v4106
      %v4266 = vpop.f32.mrf.mxu0
      %v4267 = vadd.f32 0.0, %v4266
      %4268 = vmatmul.f32.gmra.mxu0 %v4109
      %v4269 = vpop.f32.mrf.mxu0
      %v4270 = vadd.f32 0.0, %v4269
      %4271 = vmatmul.f32.gmra.mxu0 %v4112
      %v4272 = vpop.f32.mrf.mxu0
      %v4273 = vadd.f32 0.0, %v4272
      %4274 = vmatmul.f32.gmra.mxu0 %v4115
      %v4275 = vpop.f32.mrf.mxu0
      %v4276 = vadd.f32 0.0, %v4275
      %4277 = vmatmul.f32.gmra.mxu0 %v4118
      %v4278 = vpop.f32.mrf.mxu0
      %v4279 = vadd.f32 0.0, %v4278
      %4280 = vmatmul.f32.gmra.mxu0 %v4121
      %v4281 = vpop.f32.mrf.mxu0
      %v4282 = vadd.f32 0.0, %v4281
      %4283 = vmatmul.f32.gmra.mxu0 %v4124
      %v4284 = vpop.f32.mrf.mxu0
      %v4285 = vadd.f32 0.0, %v4284
      %4286 = vmatmul.f32.gmra.mxu0 %v4127
      %v4287 = vpop.f32.mrf.mxu0
      %v4288 = vadd.f32 0.0, %v4287
      %4289 = vmatmul.f32.gmra.mxu0 %v4130
      %v4290 = vpop.f32.mrf.mxu0
      %v4291 = vadd.f32 0.0, %v4290
      %4292 = vmatmul.f32.gmra.mxu0 %v4133
      %v4293 = vpop.f32.mrf.mxu0
      %v4294 = vadd.f32 0.0, %v4293
      %4295 = vmatmul.f32.gmra.mxu0 %v4136
      %v4296 = vpop.f32.mrf.mxu0
      %v4297 = vadd.f32 0.0, %v4296
      %4298 = vmatmul.f32.gmra.mxu0 %v4139
      %v4299 = vpop.f32.mrf.mxu0
      %v4300 = vadd.f32 0.0, %v4299
      %4301 = vmatmul.f32.gmra.mxu0 %v4142
      %v4302 = vpop.f32.mrf.mxu0
      %v4303 = vadd.f32 0.0, %v4302
      %4304 = vmatmul.f32.gmra.mxu0 %v4145
      %v4305 = vpop.f32.mrf.mxu0
      %v4306 = vadd.f32 0.0, %v4305
      %4307 = vmatmul.f32.gmra.mxu0 %v4148
      %v4308 = vpop.f32.mrf.mxu0
      %v4309 = vadd.f32 0.0, %v4308
      %4310 = vmatmul.f32.gmra.mxu0 %v4151
      %v4311 = vpop.f32.mrf.mxu0
      %v4312 = vadd.f32 0.0, %v4311
      %4313 = vmatmul.f32.gmra.mxu0 %v4154
      %v4314 = vpop.f32.mrf.mxu0
      %v4315 = vadd.f32 0.0, %v4314
      %4316 = vmatmul.f32.gmra.mxu0 %v4157
      %v4317 = vpop.f32.mrf.mxu0
      %v4318 = vadd.f32 0.0, %v4317
      %4319 = vmatmul.f32.gmra.mxu0 %v4160
      %v4320 = vpop.f32.mrf.mxu0
      %v4321 = vadd.f32 0.0, %v4320
      %4322 = vmatmul.f32.gmra.mxu0 %v4163
      %v4323 = vpop.f32.mrf.mxu0
      %v4324 = vadd.f32 0.0, %v4323
      %4325 = vmatmul.f32.gmra.mxu0 %v4166
      %v4326 = vpop.f32.mrf.mxu0
      %v4327 = vadd.f32 0.0, %v4326
      %4328 = vmatmul.f32.gmra.mxu0 %v4169
      %v4329 = vpop.f32.mrf.mxu0
      %v4330 = vadd.f32 0.0, %v4329
      %4331 = vmatmul.f32.gmra.mxu0 %v4172
      %v4332 = vpop.f32.mrf.mxu0
      %v4333 = vadd.f32 0.0, %v4332
      %4334 = vmatmul.f32.gmra.mxu0 %v4175
      %v4335 = vpop.f32.mrf.mxu0
      %v4336 = vadd.f32 0.0, %v4335
      %4337 = vmatmul.f32.gmra.mxu0 %v4178
      %v4338 = vpop.f32.mrf.mxu0
      %v4339 = vadd.f32 0.0, %v4338
      %4340 = vmatmul.f32.gmra.mxu0 %v4181
      %v4341 = vpop.f32.mrf.mxu0
      %v4342 = vadd.f32 0.0, %v4341
      %4343 = vmatmul.f32.gmra.mxu0 %v4184
      %v4344 = vpop.f32.mrf.mxu0
      %v4345 = vadd.f32 0.0, %v4344
      %4346 = vmatmul.f32.gmra.mxu0 %v4187
      %v4347 = vpop.f32.mrf.mxu0
      %v4348 = vadd.f32 0.0, %v4347
      %4349 = vmatmul.f32.gmra.mxu0 %v4190
      %v4350 = vpop.f32.mrf.mxu0
      %v4351 = vadd.f32 0.0, %v4350
      %4352 = vmatmul.f32.gmra.mxu0 %v4193
      %v4353 = vpop.f32.mrf.mxu0
      %v4354 = vadd.f32 0.0, %v4353
      %4355 = vmatmul.f32.gmra.mxu0 %v4196
      %v4356 = vpop.f32.mrf.mxu0
      %v4357 = vadd.f32 0.0, %v4356
      %4358 = vmatmul.f32.gmra.mxu0 %v4199
      %v4359 = vpop.f32.mrf.mxu0
      %v4360 = vadd.f32 0.0, %v4359
      %4361 = vmatmul.f32.gmra.mxu0 %v4202
      %v4362 = vpop.f32.mrf.mxu0
      %v4363 = vadd.f32 0.0, %v4362
      %4364 = vmatmul.f32.gmra.mxu0 %v4205
      %v4365 = vpop.f32.mrf.mxu0
      %v4366 = vadd.f32 0.0, %v4365
      %4367 = vmatmul.f32.gmra.mxu0 %v4208
      %v4368 = vpop.f32.mrf.mxu0
      %v4369 = vadd.f32 0.0, %v4368
      %4370 = vmatmul.f32.gmra.mxu0 %v4211
      %v4371 = vpop.f32.mrf.mxu0
      %v4372 = vadd.f32 0.0, %v4371
      %4373 = vmatmul.f32.gmra.mxu0 %v4214
      %v4374 = vpop.f32.mrf.mxu0
      %v4375 = vadd.f32 0.0, %v4374
      %4376 = vmatmul.f32.gmra.mxu0 %v4217
      %v4377 = vpop.f32.mrf.mxu0
      %v4378 = vadd.f32 0.0, %v4377
      %4379 = vdwg.mxu0
      %v4380 = vadd.f32 %v4025, %v4237
      %v4381 = vadd.f32 %v4026, %v4240
      %v4382 = vadd.f32 %v4027, %v4243
      %v4383 = vadd.f32 %v4028, %v4246
      %v4384 = vadd.f32 %v4029, %v4249
      %v4385 = vadd.f32 %v4030, %v4252
      %v4386 = vadd.f32 %v4031, %v4255
      %v4387 = vadd.f32 %v4032, %v4258
      %v4388 = vadd.f32 %v4033, %v4261
      %v4389 = vadd.f32 %v4034, %v4264
      %v4390 = vadd.f32 %v4035, %v4267
      %v4391 = vadd.f32 %v4036, %v4270
      %v4392 = vadd.f32 %v4037, %v4273
      %v4393 = vadd.f32 %v4038, %v4276
      %v4394 = vadd.f32 %v4039, %v4279
      %v4395 = vadd.f32 %v4040, %v4282
      %v4396 = vadd.f32 %v4041, %v4285
      %v4397 = vadd.f32 %v4042, %v4288
      %v4398 = vadd.f32 %v4043, %v4291
      %v4399 = vadd.f32 %v4044, %v4294
      %v4400 = vadd.f32 %v4045, %v4297
      %v4401 = vadd.f32 %v4046, %v4300
      %v4402 = vadd.f32 %v4047, %v4303
      %v4403 = vadd.f32 %v4048, %v4306
      %v4404 = vadd.f32 %v4049, %v4309
      %v4405 = vadd.f32 %v4050, %v4312
      %v4406 = vadd.f32 %v4051, %v4315
      %v4407 = vadd.f32 %v4052, %v4318
      %v4408 = vadd.f32 %v4053, %v4321
      %v4409 = vadd.f32 %v4054, %v4324
      %v4410 = vadd.f32 %v4055, %v4327
      %v4411 = vadd.f32 %v4056, %v4330
      %v4412 = vadd.f32 %v4057, %v4333
      %v4413 = vadd.f32 %v4058, %v4336
      %v4414 = vadd.f32 %v4059, %v4339
      %v4415 = vadd.f32 %v4060, %v4342
      %v4416 = vadd.f32 %v4061, %v4345
      %v4417 = vadd.f32 %v4062, %v4348
      %v4418 = vadd.f32 %v4063, %v4351
      %v4419 = vadd.f32 %v4064, %v4354
      %v4420 = vadd.f32 %v4065, %v4357
      %v4421 = vadd.f32 %v4066, %v4360
      %v4422 = vadd.f32 %v4067, %v4363
      %v4423 = vadd.f32 %v4068, %v4366
      %v4424 = vadd.f32 %v4069, %v4369
      %v4425 = vadd.f32 %v4070, %v4372
      %v4426 = vadd.f32 %v4071, %v4375
      %v4427 = vadd.f32 %v4072, %v4378
      %v4428 = vld [vmem:[%s460 + $0x40] sm:$0xff]
      %v4429 = vld [vmem:[%s460 + $0x48] sm:$0xff]
      %v4431 = vsel %vm3107, %v1901, 0
      %v4434 = vsel %vm3107, %v1903, 0
      %v4437 = vsel %vm3107, %v1906, 0
      %v4440 = vsel %vm3107, %v1908, 0
      %v4443 = vsel %vm3107, %v1911, 0
      %v4446 = vsel %vm3107, %v1913, 0
      %v4449 = vsel %vm3107, %v1916, 0
      %v4452 = vsel %vm3107, %v1918, 0
      %v4455 = vsel %vm3107, %v1921, 0
      %v4458 = vsel %vm3107, %v1923, 0
      %v4461 = vsel %vm3107, %v1926, 0
      %v4464 = vsel %vm3107, %v1928, 0
      %v4467 = vsel %vm3107, %v1931, 0
      %v4470 = vsel %vm3107, %v1933, 0
      %v4473 = vsel %vm3107, %v1936, 0
      %v4476 = vsel %vm3107, %v1938, 0
      %v4479 = vsel %vm3107, %v1941, 0
      %v4482 = vsel %vm3107, %v1943, 0
      %v4485 = vsel %vm3107, %v1946, 0
      %v4488 = vsel %vm3107, %v1948, 0
      %v4491 = vsel %vm3107, %v1951, 0
      %v4494 = vsel %vm3107, %v1953, 0
      %v4497 = vsel %vm3107, %v1956, 0
      %v4500 = vsel %vm3107, %v1958, 0
      %v4503 = vsel %vm3107, %v1961, 0
      %v4506 = vsel %vm3107, %v1963, 0
      %v4509 = vsel %vm3107, %v1966, 0
      %v4512 = vsel %vm3107, %v1968, 0
      %v4515 = vsel %vm3107, %v1971, 0
      %v4518 = vsel %vm3107, %v1973, 0
      %v4521 = vsel %vm3107, %v1976, 0
      %v4524 = vsel %vm3107, %v1978, 0
      %v4527 = vsel %vm3107, %v1981, 0
      %v4530 = vsel %vm3107, %v1983, 0
      %v4533 = vsel %vm3107, %v1986, 0
      %v4536 = vsel %vm3107, %v1988, 0
      %v4539 = vsel %vm3107, %v1991, 0
      %v4542 = vsel %vm3107, %v1993, 0
      %v4545 = vsel %vm3107, %v1996, 0
      %v4548 = vsel %vm3107, %v1998, 0
      %v4551 = vsel %vm3107, %v2001, 0
      %v4554 = vsel %vm3107, %v2003, 0
      %v4557 = vsel %vm3107, %v2006, 0
      %v4560 = vsel %vm3107, %v2008, 0
      %v4563 = vsel %vm3107, %v2011, 0
      %v4566 = vsel %vm3107, %v2013, 0
      %v4569 = vsel %vm3107, %v2016, 0
      %v4572 = vsel %vm3107, %v2018, 0
      %4574 = vmatpush.msra.mxu0 0.0
      %4575 = vmatpush.msra.mxu0 0.0
      %4576 = vmatpush.msra.mxu0 0.0
      %4577 = vmatpush.msra.mxu0 0.0
      %4578 = vmatpush.msra.mxu0 0.0
      %4579 = vmatpush.msra.mxu0 0.0
      %4580 = vmatpush.msra.mxu0 0.0
      %4581 = vmatpush.msra.mxu0 0.0
      %4582 = vmatpush.msra.mxu0 0.0
      %4583 = vmatpush.msra.mxu0 0.0
      %4584 = vmatpush.msra.mxu0 0.0
      %4585 = vmatpush.msra.mxu0 0.0
      %4586 = vmatpush.msra.mxu0 0.0
      %4587 = vmatpush.msra.mxu0 0.0
      %4588 = vmatpush.msra.mxu0 %v4429
      %4589 = vmatpush.msra.mxu0 %v4428
      %4590 = vmatmul.f32.gmra.mxu0 %v4431
      %v4591 = vpop.f32.mrf.mxu0
      %v4592 = vadd.f32 0.0, %v4591
      %4593 = vmatmul.f32.gmra.mxu0 %v4434
      %v4594 = vpop.f32.mrf.mxu0
      %v4595 = vadd.f32 0.0, %v4594
      %4596 = vmatmul.f32.gmra.mxu0 %v4437
      %v4597 = vpop.f32.mrf.mxu0
      %v4598 = vadd.f32 0.0, %v4597
      %4599 = vmatmul.f32.gmra.mxu0 %v4440
      %v4600 = vpop.f32.mrf.mxu0
      %v4601 = vadd.f32 0.0, %v4600
      %4602 = vmatmul.f32.gmra.mxu0 %v4443
      %v4603 = vpop.f32.mrf.mxu0
      %v4604 = vadd.f32 0.0, %v4603
      %4605 = vmatmul.f32.gmra.mxu0 %v4446
      %v4606 = vpop.f32.mrf.mxu0
      %v4607 = vadd.f32 0.0, %v4606
      %4608 = vmatmul.f32.gmra.mxu0 %v4449
      %v4609 = vpop.f32.mrf.mxu0
      %v4610 = vadd.f32 0.0, %v4609
      %4611 = vmatmul.f32.gmra.mxu0 %v4452
      %v4612 = vpop.f32.mrf.mxu0
      %v4613 = vadd.f32 0.0, %v4612
      %4614 = vmatmul.f32.gmra.mxu0 %v4455
      %v4615 = vpop.f32.mrf.mxu0
      %v4616 = vadd.f32 0.0, %v4615
      %4617 = vmatmul.f32.gmra.mxu0 %v4458
      %v4618 = vpop.f32.mrf.mxu0
      %v4619 = vadd.f32 0.0, %v4618
      %4620 = vmatmul.f32.gmra.mxu0 %v4461
      %v4621 = vpop.f32.mrf.mxu0
      %v4622 = vadd.f32 0.0, %v4621
      %4623 = vmatmul.f32.gmra.mxu0 %v4464
      %v4624 = vpop.f32.mrf.mxu0
      %v4625 = vadd.f32 0.0, %v4624
      %4626 = vmatmul.f32.gmra.mxu0 %v4467
      %v4627 = vpop.f32.mrf.mxu0
      %v4628 = vadd.f32 0.0, %v4627
      %4629 = vmatmul.f32.gmra.mxu0 %v4470
      %v4630 = vpop.f32.mrf.mxu0
      %v4631 = vadd.f32 0.0, %v4630
      %4632 = vmatmul.f32.gmra.mxu0 %v4473
      %v4633 = vpop.f32.mrf.mxu0
      %v4634 = vadd.f32 0.0, %v4633
      %4635 = vmatmul.f32.gmra.mxu0 %v4476
      %v4636 = vpop.f32.mrf.mxu0
      %v4637 = vadd.f32 0.0, %v4636
      %4638 = vmatmul.f32.gmra.mxu0 %v4479
      %v4639 = vpop.f32.mrf.mxu0
      %v4640 = vadd.f32 0.0, %v4639
      %4641 = vmatmul.f32.gmra.mxu0 %v4482
      %v4642 = vpop.f32.mrf.mxu0
      %v4643 = vadd.f32 0.0, %v4642
      %4644 = vmatmul.f32.gmra.mxu0 %v4485
      %v4645 = vpop.f32.mrf.mxu0
      %v4646 = vadd.f32 0.0, %v4645
      %4647 = vmatmul.f32.gmra.mxu0 %v4488
      %v4648 = vpop.f32.mrf.mxu0
      %v4649 = vadd.f32 0.0, %v4648
      %4650 = vmatmul.f32.gmra.mxu0 %v4491
      %v4651 = vpop.f32.mrf.mxu0
      %v4652 = vadd.f32 0.0, %v4651
      %4653 = vmatmul.f32.gmra.mxu0 %v4494
      %v4654 = vpop.f32.mrf.mxu0
      %v4655 = vadd.f32 0.0, %v4654
      %4656 = vmatmul.f32.gmra.mxu0 %v4497
      %v4657 = vpop.f32.mrf.mxu0
      %v4658 = vadd.f32 0.0, %v4657
      %4659 = vmatmul.f32.gmra.mxu0 %v4500
      %v4660 = vpop.f32.mrf.mxu0
      %v4661 = vadd.f32 0.0, %v4660
      %4662 = vmatmul.f32.gmra.mxu0 %v4503
      %v4663 = vpop.f32.mrf.mxu0
      %v4664 = vadd.f32 0.0, %v4663
      %4665 = vmatmul.f32.gmra.mxu0 %v4506
      %v4666 = vpop.f32.mrf.mxu0
      %v4667 = vadd.f32 0.0, %v4666
      %4668 = vmatmul.f32.gmra.mxu0 %v4509
      %v4669 = vpop.f32.mrf.mxu0
      %v4670 = vadd.f32 0.0, %v4669
      %4671 = vmatmul.f32.gmra.mxu0 %v4512
      %v4672 = vpop.f32.mrf.mxu0
      %v4673 = vadd.f32 0.0, %v4672
      %4674 = vmatmul.f32.gmra.mxu0 %v4515
      %v4675 = vpop.f32.mrf.mxu0
      %v4676 = vadd.f32 0.0, %v4675
      %4677 = vmatmul.f32.gmra.mxu0 %v4518
      %v4678 = vpop.f32.mrf.mxu0
      %v4679 = vadd.f32 0.0, %v4678
      %4680 = vmatmul.f32.gmra.mxu0 %v4521
      %v4681 = vpop.f32.mrf.mxu0
      %v4682 = vadd.f32 0.0, %v4681
      %4683 = vmatmul.f32.gmra.mxu0 %v4524
      %v4684 = vpop.f32.mrf.mxu0
      %v4685 = vadd.f32 0.0, %v4684
      %4686 = vmatmul.f32.gmra.mxu0 %v4527
      %v4687 = vpop.f32.mrf.mxu0
      %v4688 = vadd.f32 0.0, %v4687
      %4689 = vmatmul.f32.gmra.mxu0 %v4530
      %v4690 = vpop.f32.mrf.mxu0
      %v4691 = vadd.f32 0.0, %v4690
      %4692 = vmatmul.f32.gmra.mxu0 %v4533
      %v4693 = vpop.f32.mrf.mxu0
      %v4694 = vadd.f32 0.0, %v4693
      %4695 = vmatmul.f32.gmra.mxu0 %v4536
      %v4696 = vpop.f32.mrf.mxu0
      %v4697 = vadd.f32 0.0, %v4696
      %4698 = vmatmul.f32.gmra.mxu0 %v4539
      %v4699 = vpop.f32.mrf.mxu0
      %v4700 = vadd.f32 0.0, %v4699
      %4701 = vmatmul.f32.gmra.mxu0 %v4542
      %v4702 = vpop.f32.mrf.mxu0
      %v4703 = vadd.f32 0.0, %v4702
      %4704 = vmatmul.f32.gmra.mxu0 %v4545
      %v4705 = vpop.f32.mrf.mxu0
      %v4706 = vadd.f32 0.0, %v4705
      %4707 = vmatmul.f32.gmra.mxu0 %v4548
      %v4708 = vpop.f32.mrf.mxu0
      %v4709 = vadd.f32 0.0, %v4708
      %4710 = vmatmul.f32.gmra.mxu0 %v4551
      %v4711 = vpop.f32.mrf.mxu0
      %v4712 = vadd.f32 0.0, %v4711
      %4713 = vmatmul.f32.gmra.mxu0 %v4554
      %v4714 = vpop.f32.mrf.mxu0
      %v4715 = vadd.f32 0.0, %v4714
      %4716 = vmatmul.f32.gmra.mxu0 %v4557
      %v4717 = vpop.f32.mrf.mxu0
      %v4718 = vadd.f32 0.0, %v4717
      %4719 = vmatmul.f32.gmra.mxu0 %v4560
      %v4720 = vpop.f32.mrf.mxu0
      %v4721 = vadd.f32 0.0, %v4720
      %4722 = vmatmul.f32.gmra.mxu0 %v4563
      %v4723 = vpop.f32.mrf.mxu0
      %v4724 = vadd.f32 0.0, %v4723
      %4725 = vmatmul.f32.gmra.mxu0 %v4566
      %v4726 = vpop.f32.mrf.mxu0
      %v4727 = vadd.f32 0.0, %v4726
      %4728 = vmatmul.f32.gmra.mxu0 %v4569
      %v4729 = vpop.f32.mrf.mxu0
      %v4730 = vadd.f32 0.0, %v4729
      %4731 = vmatmul.f32.gmra.mxu0 %v4572
      %v4732 = vpop.f32.mrf.mxu0
      %v4733 = vadd.f32 0.0, %v4732
      %4734 = vdwg.mxu0
      %v4735 = vadd.f32 %v4380, %v4592
      %v4736 = vadd.f32 %v4381, %v4595
      %v4737 = vadd.f32 %v4382, %v4598
      %v4738 = vadd.f32 %v4383, %v4601
      %v4739 = vadd.f32 %v4384, %v4604
      %v4740 = vadd.f32 %v4385, %v4607
      %v4741 = vadd.f32 %v4386, %v4610
      %v4742 = vadd.f32 %v4387, %v4613
      %v4743 = vadd.f32 %v4388, %v4616
      %v4744 = vadd.f32 %v4389, %v4619
      %v4745 = vadd.f32 %v4390, %v4622
      %v4746 = vadd.f32 %v4391, %v4625
      %v4747 = vadd.f32 %v4392, %v4628
      %v4748 = vadd.f32 %v4393, %v4631
      %v4749 = vadd.f32 %v4394, %v4634
      %v4750 = vadd.f32 %v4395, %v4637
      %v4751 = vadd.f32 %v4396, %v4640
      %v4752 = vadd.f32 %v4397, %v4643
      %v4753 = vadd.f32 %v4398, %v4646
      %v4754 = vadd.f32 %v4399, %v4649
      %v4755 = vadd.f32 %v4400, %v4652
      %v4756 = vadd.f32 %v4401, %v4655
      %v4757 = vadd.f32 %v4402, %v4658
      %v4758 = vadd.f32 %v4403, %v4661
      %v4759 = vadd.f32 %v4404, %v4664
      %v4760 = vadd.f32 %v4405, %v4667
      %v4761 = vadd.f32 %v4406, %v4670
      %v4762 = vadd.f32 %v4407, %v4673
      %v4763 = vadd.f32 %v4408, %v4676
      %v4764 = vadd.f32 %v4409, %v4679
      %v4765 = vadd.f32 %v4410, %v4682
      %v4766 = vadd.f32 %v4411, %v4685
      %v4767 = vadd.f32 %v4412, %v4688
      %v4768 = vadd.f32 %v4413, %v4691
      %v4769 = vadd.f32 %v4414, %v4694
      %v4770 = vadd.f32 %v4415, %v4697
      %v4771 = vadd.f32 %v4416, %v4700
      %v4772 = vadd.f32 %v4417, %v4703
      %v4773 = vadd.f32 %v4418, %v4706
      %v4774 = vadd.f32 %v4419, %v4709
      %v4775 = vadd.f32 %v4420, %v4712
      %v4776 = vadd.f32 %v4421, %v4715
      %v4777 = vadd.f32 %v4422, %v4718
      %v4778 = vadd.f32 %v4423, %v4721
      %v4779 = vadd.f32 %v4424, %v4724
      %v4780 = vadd.f32 %v4425, %v4727
      %v4781 = vadd.f32 %v4426, %v4730
      %v4782 = vadd.f32 %v4427, %v4733
      %v4783 = vld [vmem:[%s463] sm:$0x1]
      %v4785 = vperm.slane %v4783, 0
      %v4787 = vadd.f32 %v4735, %v4785
      %v4788 = vadd.f32 %v4736, %v4785
      %v4789 = vadd.f32 %v4737, %v4785
      %v4790 = vadd.f32 %v4738, %v4785
      %v4791 = vadd.f32 %v4739, %v4785
      %v4792 = vadd.f32 %v4740, %v4785
      %v4793 = vadd.f32 %v4741, %v4785
      %v4794 = vadd.f32 %v4742, %v4785
      %v4795 = vadd.f32 %v4743, %v4785
      %v4796 = vadd.f32 %v4744, %v4785
      %v4797 = vadd.f32 %v4745, %v4785
      %v4798 = vadd.f32 %v4746, %v4785
      %v4799 = vadd.f32 %v4747, %v4785
      %v4800 = vadd.f32 %v4748, %v4785
      %v4801 = vadd.f32 %v4749, %v4785
      %v4802 = vadd.f32 %v4750, %v4785
      %v4803 = vadd.f32 %v4751, %v4785
      %v4804 = vadd.f32 %v4752, %v4785
      %v4805 = vadd.f32 %v4753, %v4785
      %v4806 = vadd.f32 %v4754, %v4785
      %v4807 = vadd.f32 %v4755, %v4785
      %v4808 = vadd.f32 %v4756, %v4785
      %v4809 = vadd.f32 %v4757, %v4785
      %v4810 = vadd.f32 %v4758, %v4785
      %v4811 = vadd.f32 %v4759, %v4785
      %v4812 = vadd.f32 %v4760, %v4785
      %v4813 = vadd.f32 %v4761, %v4785
      %v4814 = vadd.f32 %v4762, %v4785
      %v4815 = vadd.f32 %v4763, %v4785
      %v4816 = vadd.f32 %v4764, %v4785
      %v4817 = vadd.f32 %v4765, %v4785
      %v4818 = vadd.f32 %v4766, %v4785
      %v4819 = vadd.f32 %v4767, %v4785
      %v4820 = vadd.f32 %v4768, %v4785
      %v4821 = vadd.f32 %v4769, %v4785
      %v4822 = vadd.f32 %v4770, %v4785
      %v4823 = vadd.f32 %v4771, %v4785
      %v4824 = vadd.f32 %v4772, %v4785
      %v4825 = vadd.f32 %v4773, %v4785
      %v4826 = vadd.f32 %v4774, %v4785
      %v4827 = vadd.f32 %v4775, %v4785
      %v4828 = vadd.f32 %v4776, %v4785
      %v4829 = vadd.f32 %v4777, %v4785
      %v4830 = vadd.f32 %v4778, %v4785
      %v4831 = vadd.f32 %v4779, %v4785
      %v4832 = vadd.f32 %v4780, %v4785
      %v4833 = vadd.f32 %v4781, %v4785
      %v4834 = vadd.f32 %v4782, %v4785
      %v4835 = vlaneseq
      %v4836 = vand.u32 %v4835, 127
      %vm4837 = vcmp.lt.s32.totalorder %v4836, 8
      %v4838 = vmax.f32 %v4787, 0.0
      %v4839 = vmax.f32 %v4788, 0.0
      %v4840 = vmax.f32 %v4789, 0.0
      %v4841 = vmax.f32 %v4790, 0.0
      %v4842 = vmax.f32 %v4791, 0.0
      %v4843 = vmax.f32 %v4792, 0.0
      %v4844 = vmax.f32 %v4793, 0.0
      %v4845 = vmax.f32 %v4794, 0.0
      %v4846 = vmax.f32 %v4795, 0.0
      %v4847 = vmax.f32 %v4796, 0.0
      %v4848 = vmax.f32 %v4797, 0.0
      %v4849 = vmax.f32 %v4798, 0.0
      %v4850 = vmax.f32 %v4799, 0.0
      %v4851 = vmax.f32 %v4800, 0.0
      %v4852 = vmax.f32 %v4801, 0.0
      %v4853 = vmax.f32 %v4802, 0.0
      %v4854 = vmax.f32 %v4803, 0.0
      %v4855 = vmax.f32 %v4804, 0.0
      %v4856 = vmax.f32 %v4805, 0.0
      %v4857 = vmax.f32 %v4806, 0.0
      %v4858 = vmax.f32 %v4807, 0.0
      %v4859 = vmax.f32 %v4808, 0.0
      %v4860 = vmax.f32 %v4809, 0.0
      %v4861 = vmax.f32 %v4810, 0.0
      %v4862 = vmax.f32 %v4811, 0.0
      %v4863 = vmax.f32 %v4812, 0.0
      %v4864 = vmax.f32 %v4813, 0.0
      %v4865 = vmax.f32 %v4814, 0.0
      %v4866 = vmax.f32 %v4815, 0.0
      %v4867 = vmax.f32 %v4816, 0.0
      %v4868 = vmax.f32 %v4817, 0.0
      %v4869 = vmax.f32 %v4818, 0.0
      %v4870 = vmax.f32 %v4819, 0.0
      %v4871 = vmax.f32 %v4820, 0.0
      %v4872 = vmax.f32 %v4821, 0.0
      %v4873 = vmax.f32 %v4822, 0.0
      %v4874 = vmax.f32 %v4823, 0.0
      %v4875 = vmax.f32 %v4824, 0.0
      %v4876 = vmax.f32 %v4825, 0.0
      %v4877 = vmax.f32 %v4826, 0.0
      %v4878 = vmax.f32 %v4827, 0.0
      %v4879 = vmax.f32 %v4828, 0.0
      %v4880 = vmax.f32 %v4829, 0.0
      %v4881 = vmax.f32 %v4830, 0.0
      %v4882 = vmax.f32 %v4831, 0.0
      %v4883 = vmax.f32 %v4832, 0.0
      %v4884 = vmax.f32 %v4833, 0.0
      %v4885 = vmax.f32 %v4834, 0.0
      %v4886 = vsel %vm4837, %v4787, %v4838
      %v4887 = vsel %vm4837, %v4788, %v4839
      %v4888 = vsel %vm4837, %v4789, %v4840
      %v4889 = vsel %vm4837, %v4790, %v4841
      %v4890 = vsel %vm4837, %v4791, %v4842
      %v4891 = vsel %vm4837, %v4792, %v4843
      %v4892 = vsel %vm4837, %v4793, %v4844
      %v4893 = vsel %vm4837, %v4794, %v4845
      %v4894 = vsel %vm4837, %v4795, %v4846
      %v4895 = vsel %vm4837, %v4796, %v4847
      %v4896 = vsel %vm4837, %v4797, %v4848
      %v4897 = vsel %vm4837, %v4798, %v4849
      %v4898 = vsel %vm4837, %v4799, %v4850
      %v4899 = vsel %vm4837, %v4800, %v4851
      %v4900 = vsel %vm4837, %v4801, %v4852
      %v4901 = vsel %vm4837, %v4802, %v4853
      %v4902 = vsel %vm4837, %v4803, %v4854
      %v4903 = vsel %vm4837, %v4804, %v4855
      %v4904 = vsel %vm4837, %v4805, %v4856
      %v4905 = vsel %vm4837, %v4806, %v4857
      %v4906 = vsel %vm4837, %v4807, %v4858
      %v4907 = vsel %vm4837, %v4808, %v4859
      %v4908 = vsel %vm4837, %v4809, %v4860
      %v4909 = vsel %vm4837, %v4810, %v4861
      %v4910 = vsel %vm4837, %v4811, %v4862
      %v4911 = vsel %vm4837, %v4812, %v4863
      %v4912 = vsel %vm4837, %v4813, %v4864
      %v4913 = vsel %vm4837, %v4814, %v4865
      %v4914 = vsel %vm4837, %v4815, %v4866
      %v4915 = vsel %vm4837, %v4816, %v4867
      %v4916 = vsel %vm4837, %v4817, %v4868
      %v4917 = vsel %vm4837, %v4818, %v4869
      %v4918 = vsel %vm4837, %v4819, %v4870
      %v4919 = vsel %vm4837, %v4820, %v4871
      %v4920 = vsel %vm4837, %v4821, %v4872
      %v4921 = vsel %vm4837, %v4822, %v4873
      %v4922 = vsel %vm4837, %v4823, %v4874
      %v4923 = vsel %vm4837, %v4824, %v4875
      %v4924 = vsel %vm4837, %v4825, %v4876
      %v4925 = vsel %vm4837, %v4826, %v4877
      %v4926 = vsel %vm4837, %v4827, %v4878
      %v4927 = vsel %vm4837, %v4828, %v4879
      %v4928 = vsel %vm4837, %v4829, %v4880
      %v4929 = vsel %vm4837, %v4830, %v4881
      %v4930 = vsel %vm4837, %v4831, %v4882
      %v4931 = vsel %vm4837, %v4832, %v4883
      %v4932 = vsel %vm4837, %v4833, %v4884
      %v4933 = vsel %vm4837, %v4834, %v4885
      %v4934 = vlaneseq
      %v4935 = vshrl.u32 %v4934, 7
      %v4936 = vadd.s32 %v4935, 8
      %v4937 = vadd.s32 %v4935, 16
      %v4938 = vadd.s32 %v4935, 24
      %v4939 = vadd.s32 %v4935, 32
      %v4940 = vadd.s32 %v4935, 40
      %v4941 = vadd.s32 %v4935, 48
      %v4942 = vadd.s32 %v4935, 56
      %v4943 = vadd.s32 %v4935, 64
      %v4944 = vadd.s32 %v4935, 72
      %v4945 = vadd.s32 %v4935, 80
      %v4946 = vadd.s32 %v4935, 88
      %v4947 = vadd.s32 %v4935, 96
      %v4948 = vadd.s32 %v4935, 104
      %v4949 = vadd.s32 %v4935, 112
      %v4950 = vadd.s32 %v4935, 120
      %v4951 = vadd.s32 %v4935, 128
      %v4952 = vadd.s32 %v4935, 136
      %v4953 = vadd.s32 %v4935, 144
      %v4954 = vadd.s32 %v4935, 152
      %v4955 = vadd.s32 %v4935, 160
      %v4956 = vadd.s32 %v4935, 168
      %v4957 = vadd.s32 %v4935, 176
      %v4958 = vadd.s32 %v4935, 184
      %v4959 = vadd.s32 %v4935, 192
      %v4960 = vadd.s32 %v4935, 200
      %v4961 = vadd.s32 %v4935, 208
      %v4962 = vadd.s32 %v4935, 216
      %v4963 = vadd.s32 %v4935, 224
      %v4964 = vadd.s32 %v4935, 232
      %v4965 = vadd.s32 %v4935, 240
      %v4966 = vadd.s32 %v4935, 248
      %v4967 = vadd.s32 %v4935, 256
      %v4968 = vadd.s32 %v4935, 264
      %v4969 = vadd.s32 %v4935, 272
      %v4970 = vadd.s32 %v4935, 280
      %v4971 = vadd.s32 %v4935, 288
      %v4972 = vadd.s32 %v4935, 296
      %v4973 = vadd.s32 %v4935, 304
      %v4974 = vadd.s32 %v4935, 312
      %v4975 = vadd.s32 %v4935, 320
      %v4976 = vadd.s32 %v4935, 328
      %v4977 = vadd.s32 %v4935, 336
      %v4978 = vadd.s32 %v4935, 344
      %v4979 = vadd.s32 %v4935, 352
      %v4980 = vadd.s32 %v4935, 360
      %v4981 = vadd.s32 %v4935, 368
      %v4982 = vadd.s32 %v4935, 376
      %v4983 = vstv %s476
      %vm4984 = vcmp.lt.s32.totalorder %v4935, %v4983
      %vm4985 = vcmp.lt.s32.totalorder %v4936, %v4983
      %vm4986 = vcmp.lt.s32.totalorder %v4937, %v4983
      %vm4987 = vcmp.lt.s32.totalorder %v4938, %v4983
      %vm4988 = vcmp.lt.s32.totalorder %v4939, %v4983
      %vm4989 = vcmp.lt.s32.totalorder %v4940, %v4983
      %vm4990 = vcmp.lt.s32.totalorder %v4941, %v4983
      %vm4991 = vcmp.lt.s32.totalorder %v4942, %v4983
      %vm4992 = vcmp.lt.s32.totalorder %v4943, %v4983
      %vm4993 = vcmp.lt.s32.totalorder %v4944, %v4983
      %vm4994 = vcmp.lt.s32.totalorder %v4945, %v4983
      %vm4995 = vcmp.lt.s32.totalorder %v4946, %v4983
      %vm4996 = vcmp.lt.s32.totalorder %v4947, %v4983
      %vm4997 = vcmp.lt.s32.totalorder %v4948, %v4983
      %vm4998 = vcmp.lt.s32.totalorder %v4949, %v4983
      %vm4999 = vcmp.lt.s32.totalorder %v4950, %v4983
      %vm5000 = vcmp.lt.s32.totalorder %v4951, %v4983
      %vm5001 = vcmp.lt.s32.totalorder %v4952, %v4983
      %vm5002 = vcmp.lt.s32.totalorder %v4953, %v4983
      %vm5003 = vcmp.lt.s32.totalorder %v4954, %v4983
      %vm5004 = vcmp.lt.s32.totalorder %v4955, %v4983
      %vm5005 = vcmp.lt.s32.totalorder %v4956, %v4983
      %vm5006 = vcmp.lt.s32.totalorder %v4957, %v4983
      %vm5007 = vcmp.lt.s32.totalorder %v4958, %v4983
      %vm5008 = vcmp.lt.s32.totalorder %v4959, %v4983
      %vm5009 = vcmp.lt.s32.totalorder %v4960, %v4983
      %vm5010 = vcmp.lt.s32.totalorder %v4961, %v4983
      %vm5011 = vcmp.lt.s32.totalorder %v4962, %v4983
      %vm5012 = vcmp.lt.s32.totalorder %v4963, %v4983
      %vm5013 = vcmp.lt.s32.totalorder %v4964, %v4983
      %vm5014 = vcmp.lt.s32.totalorder %v4965, %v4983
      %vm5015 = vcmp.lt.s32.totalorder %v4966, %v4983
      %vm5016 = vcmp.lt.s32.totalorder %v4967, %v4983
      %vm5017 = vcmp.lt.s32.totalorder %v4968, %v4983
      %vm5018 = vcmp.lt.s32.totalorder %v4969, %v4983
      %vm5019 = vcmp.lt.s32.totalorder %v4970, %v4983
      %vm5020 = vcmp.lt.s32.totalorder %v4971, %v4983
      %vm5021 = vcmp.lt.s32.totalorder %v4972, %v4983
      %vm5022 = vcmp.lt.s32.totalorder %v4973, %v4983
      %vm5023 = vcmp.lt.s32.totalorder %v4974, %v4983
      %vm5024 = vcmp.lt.s32.totalorder %v4975, %v4983
      %vm5025 = vcmp.lt.s32.totalorder %v4976, %v4983
      %vm5026 = vcmp.lt.s32.totalorder %v4977, %v4983
      %vm5027 = vcmp.lt.s32.totalorder %v4978, %v4983
      %vm5028 = vcmp.lt.s32.totalorder %v4979, %v4983
      %vm5029 = vcmp.lt.s32.totalorder %v4980, %v4983
      %vm5030 = vcmp.lt.s32.totalorder %v4981, %v4983
      %vm5031 = vcmp.lt.s32.totalorder %v4982, %v4983
      %v5032 = vsel %vm4984, 1, 0
      %v5033 = vsel %vm4985, 1, 0
      %v5034 = vsel %vm4986, 1, 0
      %v5035 = vsel %vm4987, 1, 0
      %v5036 = vsel %vm4988, 1, 0
      %v5037 = vsel %vm4989, 1, 0
      %v5038 = vsel %vm4990, 1, 0
      %v5039 = vsel %vm4991, 1, 0
      %v5040 = vsel %vm4992, 1, 0
      %v5041 = vsel %vm4993, 1, 0
      %v5042 = vsel %vm4994, 1, 0
      %v5043 = vsel %vm4995, 1, 0
      %v5044 = vsel %vm4996, 1, 0
      %v5045 = vsel %vm4997, 1, 0
      %v5046 = vsel %vm4998, 1, 0
      %v5047 = vsel %vm4999, 1, 0
      %v5048 = vsel %vm5000, 1, 0
      %v5049 = vsel %vm5001, 1, 0
      %v5050 = vsel %vm5002, 1, 0
      %v5051 = vsel %vm5003, 1, 0
      %v5052 = vsel %vm5004, 1, 0
      %v5053 = vsel %vm5005, 1, 0
      %v5054 = vsel %vm5006, 1, 0
      %v5055 = vsel %vm5007, 1, 0
      %v5056 = vsel %vm5008, 1, 0
      %v5057 = vsel %vm5009, 1, 0
      %v5058 = vsel %vm5010, 1, 0
      %v5059 = vsel %vm5011, 1, 0
      %v5060 = vsel %vm5012, 1, 0
      %v5061 = vsel %vm5013, 1, 0
      %v5062 = vsel %vm5014, 1, 0
      %v5063 = vsel %vm5015, 1, 0
      %v5064 = vsel %vm5016, 1, 0
      %v5065 = vsel %vm5017, 1, 0
      %v5066 = vsel %vm5018, 1, 0
      %v5067 = vsel %vm5019, 1, 0
      %v5068 = vsel %vm5020, 1, 0
      %v5069 = vsel %vm5021, 1, 0
      %v5070 = vsel %vm5022, 1, 0
      %v5071 = vsel %vm5023, 1, 0
      %v5072 = vsel %vm5024, 1, 0
      %v5073 = vsel %vm5025, 1, 0
      %v5074 = vsel %vm5026, 1, 0
      %v5075 = vsel %vm5027, 1, 0
      %v5076 = vsel %vm5028, 1, 0
      %v5077 = vsel %vm5029, 1, 0
      %v5078 = vsel %vm5030, 1, 0
      %v5079 = vsel %vm5031, 1, 0
      %v5080 = vcvt.s32.f32 %v5032
      %v5081 = vcvt.s32.f32 %v5033
      %v5082 = vcvt.s32.f32 %v5034
      %v5083 = vcvt.s32.f32 %v5035
      %v5084 = vcvt.s32.f32 %v5036
      %v5085 = vcvt.s32.f32 %v5037
      %v5086 = vcvt.s32.f32 %v5038
      %v5087 = vcvt.s32.f32 %v5039
      %v5088 = vcvt.s32.f32 %v5040
      %v5089 = vcvt.s32.f32 %v5041
      %v5090 = vcvt.s32.f32 %v5042
      %v5091 = vcvt.s32.f32 %v5043
      %v5092 = vcvt.s32.f32 %v5044
      %v5093 = vcvt.s32.f32 %v5045
      %v5094 = vcvt.s32.f32 %v5046
      %v5095 = vcvt.s32.f32 %v5047
      %v5096 = vcvt.s32.f32 %v5048
      %v5097 = vcvt.s32.f32 %v5049
      %v5098 = vcvt.s32.f32 %v5050
      %v5099 = vcvt.s32.f32 %v5051
      %v5100 = vcvt.s32.f32 %v5052
      %v5101 = vcvt.s32.f32 %v5053
      %v5102 = vcvt.s32.f32 %v5054
      %v5103 = vcvt.s32.f32 %v5055
      %v5104 = vcvt.s32.f32 %v5056
      %v5105 = vcvt.s32.f32 %v5057
      %v5106 = vcvt.s32.f32 %v5058
      %v5107 = vcvt.s32.f32 %v5059
      %v5108 = vcvt.s32.f32 %v5060
      %v5109 = vcvt.s32.f32 %v5061
      %v5110 = vcvt.s32.f32 %v5062
      %v5111 = vcvt.s32.f32 %v5063
      %v5112 = vcvt.s32.f32 %v5064
      %v5113 = vcvt.s32.f32 %v5065
      %v5114 = vcvt.s32.f32 %v5066
      %v5115 = vcvt.s32.f32 %v5067
      %v5116 = vcvt.s32.f32 %v5068
      %v5117 = vcvt.s32.f32 %v5069
      %v5118 = vcvt.s32.f32 %v5070
      %v5119 = vcvt.s32.f32 %v5071
      %v5120 = vcvt.s32.f32 %v5072
      %v5121 = vcvt.s32.f32 %v5073
      %v5122 = vcvt.s32.f32 %v5074
      %v5123 = vcvt.s32.f32 %v5075
      %v5124 = vcvt.s32.f32 %v5076
      %v5125 = vcvt.s32.f32 %v5077
      %v5126 = vcvt.s32.f32 %v5078
      %v5127 = vcvt.s32.f32 %v5079
      %v5128 = vmul.f32 %v4886, %v5080
      %v5129 = vmul.f32 %v4887, %v5081
      %v5130 = vmul.f32 %v4888, %v5082
      %v5131 = vmul.f32 %v4889, %v5083
      %v5132 = vmul.f32 %v4890, %v5084
      %v5133 = vmul.f32 %v4891, %v5085
      %v5134 = vmul.f32 %v4892, %v5086
      %v5135 = vmul.f32 %v4893, %v5087
      %v5136 = vmul.f32 %v4894, %v5088
      %v5137 = vmul.f32 %v4895, %v5089
      %v5138 = vmul.f32 %v4896, %v5090
      %v5139 = vmul.f32 %v4897, %v5091
      %v5140 = vmul.f32 %v4898, %v5092
      %v5141 = vmul.f32 %v4899, %v5093
      %v5142 = vmul.f32 %v4900, %v5094
      %v5143 = vmul.f32 %v4901, %v5095
      %v5144 = vmul.f32 %v4902, %v5096
      %v5145 = vmul.f32 %v4903, %v5097
      %v5146 = vmul.f32 %v4904, %v5098
      %v5147 = vmul.f32 %v4905, %v5099
      %v5148 = vmul.f32 %v4906, %v5100
      %v5149 = vmul.f32 %v4907, %v5101
      %v5150 = vmul.f32 %v4908, %v5102
      %v5151 = vmul.f32 %v4909, %v5103
      %v5152 = vmul.f32 %v4910, %v5104
      %v5153 = vmul.f32 %v4911, %v5105
      %v5154 = vmul.f32 %v4912, %v5106
      %v5155 = vmul.f32 %v4913, %v5107
      %v5156 = vmul.f32 %v4914, %v5108
      %v5157 = vmul.f32 %v4915, %v5109
      %v5158 = vmul.f32 %v4916, %v5110
      %v5159 = vmul.f32 %v4917, %v5111
      %v5160 = vmul.f32 %v4918, %v5112
      %v5161 = vmul.f32 %v4919, %v5113
      %v5162 = vmul.f32 %v4920, %v5114
      %v5163 = vmul.f32 %v4921, %v5115
      %v5164 = vmul.f32 %v4922, %v5116
      %v5165 = vmul.f32 %v4923, %v5117
      %v5166 = vmul.f32 %v4924, %v5118
      %v5167 = vmul.f32 %v4925, %v5119
      %v5168 = vmul.f32 %v4926, %v5120
      %v5169 = vmul.f32 %v4927, %v5121
      %v5170 = vmul.f32 %v4928, %v5122
      %v5171 = vmul.f32 %v4929, %v5123
      %v5172 = vmul.f32 %v4930, %v5124
      %v5173 = vmul.f32 %v4931, %v5125
      %v5174 = vmul.f32 %v4932, %v5126
      %v5175 = vmul.f32 %v4933, %v5127
      %v5176 = vadd.f32 %v5128, %v5129
      %v5177 = vadd.f32 %v5176, %v5130
      %v5178 = vadd.f32 %v5177, %v5131
      %v5179 = vadd.f32 %v5178, %v5132
      %v5180 = vadd.f32 %v5179, %v5133
      %v5181 = vadd.f32 %v5180, %v5134
      %v5182 = vadd.f32 %v5181, %v5135
      %v5183 = vadd.f32 %v5182, %v5136
      %v5184 = vadd.f32 %v5183, %v5137
      %v5185 = vadd.f32 %v5184, %v5138
      %v5186 = vadd.f32 %v5185, %v5139
      %v5187 = vadd.f32 %v5186, %v5140
      %v5188 = vadd.f32 %v5187, %v5141
      %v5189 = vadd.f32 %v5188, %v5142
      %v5190 = vadd.f32 %v5189, %v5143
      %v5191 = vadd.f32 %v5190, %v5144
      %v5192 = vadd.f32 %v5191, %v5145
      %v5193 = vadd.f32 %v5192, %v5146
      %v5194 = vadd.f32 %v5193, %v5147
      %v5195 = vadd.f32 %v5194, %v5148
      %v5196 = vadd.f32 %v5195, %v5149
      %v5197 = vadd.f32 %v5196, %v5150
      %v5198 = vadd.f32 %v5197, %v5151
      %v5199 = vadd.f32 %v5198, %v5152
      %v5200 = vadd.f32 %v5199, %v5153
      %v5201 = vadd.f32 %v5200, %v5154
      %v5202 = vadd.f32 %v5201, %v5155
      %v5203 = vadd.f32 %v5202, %v5156
      %v5204 = vadd.f32 %v5203, %v5157
      %v5205 = vadd.f32 %v5204, %v5158
      %v5206 = vadd.f32 %v5205, %v5159
      %v5207 = vadd.f32 %v5206, %v5160
      %v5208 = vadd.f32 %v5207, %v5161
      %v5209 = vadd.f32 %v5208, %v5162
      %v5210 = vadd.f32 %v5209, %v5163
      %v5211 = vadd.f32 %v5210, %v5164
      %v5212 = vadd.f32 %v5211, %v5165
      %v5213 = vadd.f32 %v5212, %v5166
      %v5214 = vadd.f32 %v5213, %v5167
      %v5215 = vadd.f32 %v5214, %v5168
      %v5216 = vadd.f32 %v5215, %v5169
      %v5217 = vadd.f32 %v5216, %v5170
      %v5218 = vadd.f32 %v5217, %v5171
      %v5219 = vadd.f32 %v5218, %v5172
      %v5220 = vadd.f32 %v5219, %v5173
      %v5221 = vadd.f32 %v5220, %v5174
      %v5222 = vadd.f32 %v5221, %v5175
      %v5223 = vrot.slane %v5222, 4
      %v5224 = vadd.f32 %v5222, %v5223
      %v5225 = vrot.slane %v5224, 2
      %v5226 = vadd.f32 %v5224, %v5225
      %v5227 = vrot.slane %v5226, 1
      %v5228 = vadd.f32 %v5226, %v5227
      %v5229 = vstv %s477
      %v5230 = vmul.f32 %v5228, %v5229
      %v5231 = vsub.f32 %v4886, %v5230
      %v5232 = vsub.f32 %v4887, %v5230
      %v5233 = vsub.f32 %v4888, %v5230
      %v5234 = vsub.f32 %v4889, %v5230
      %v5235 = vsub.f32 %v4890, %v5230
      %v5236 = vsub.f32 %v4891, %v5230
      %v5237 = vsub.f32 %v4892, %v5230
      %v5238 = vsub.f32 %v4893, %v5230
      %v5239 = vsub.f32 %v4894, %v5230
      %v5240 = vsub.f32 %v4895, %v5230
      %v5241 = vsub.f32 %v4896, %v5230
      %v5242 = vsub.f32 %v4897, %v5230
      %v5243 = vsub.f32 %v4898, %v5230
      %v5244 = vsub.f32 %v4899, %v5230
      %v5245 = vsub.f32 %v4900, %v5230
      %v5246 = vsub.f32 %v4901, %v5230
      %v5247 = vsub.f32 %v4902, %v5230
      %v5248 = vsub.f32 %v4903, %v5230
      %v5249 = vsub.f32 %v4904, %v5230
      %v5250 = vsub.f32 %v4905, %v5230
      %v5251 = vsub.f32 %v4906, %v5230
      %v5252 = vsub.f32 %v4907, %v5230
      %v5253 = vsub.f32 %v4908, %v5230
      %v5254 = vsub.f32 %v4909, %v5230
      %v5255 = vsub.f32 %v4910, %v5230
      %v5256 = vsub.f32 %v4911, %v5230
      %v5257 = vsub.f32 %v4912, %v5230
      %v5258 = vsub.f32 %v4913, %v5230
      %v5259 = vsub.f32 %v4914, %v5230
      %v5260 = vsub.f32 %v4915, %v5230
      %v5261 = vsub.f32 %v4916, %v5230
      %v5262 = vsub.f32 %v4917, %v5230
      %v5263 = vsub.f32 %v4918, %v5230
      %v5264 = vsub.f32 %v4919, %v5230
      %v5265 = vsub.f32 %v4920, %v5230
      %v5266 = vsub.f32 %v4921, %v5230
      %v5267 = vsub.f32 %v4922, %v5230
      %v5268 = vsub.f32 %v4923, %v5230
      %v5269 = vsub.f32 %v4924, %v5230
      %v5270 = vsub.f32 %v4925, %v5230
      %v5271 = vsub.f32 %v4926, %v5230
      %v5272 = vsub.f32 %v4927, %v5230
      %v5273 = vsub.f32 %v4928, %v5230
      %v5274 = vsub.f32 %v4929, %v5230
      %v5275 = vsub.f32 %v4930, %v5230
      %v5276 = vsub.f32 %v4931, %v5230
      %v5277 = vsub.f32 %v4932, %v5230
      %v5278 = vsub.f32 %v4933, %v5230
      %v5279 = vmul.f32 %v5231, %v5080
      %v5280 = vmul.f32 %v5232, %v5081
      %v5281 = vmul.f32 %v5233, %v5082
      %v5282 = vmul.f32 %v5234, %v5083
      %v5283 = vmul.f32 %v5235, %v5084
      %v5284 = vmul.f32 %v5236, %v5085
      %v5285 = vmul.f32 %v5237, %v5086
      %v5286 = vmul.f32 %v5238, %v5087
      %v5287 = vmul.f32 %v5239, %v5088
      %v5288 = vmul.f32 %v5240, %v5089
      %v5289 = vmul.f32 %v5241, %v5090
      %v5290 = vmul.f32 %v5242, %v5091
      %v5291 = vmul.f32 %v5243, %v5092
      %v5292 = vmul.f32 %v5244, %v5093
      %v5293 = vmul.f32 %v5245, %v5094
      %v5294 = vmul.f32 %v5246, %v5095
      %v5295 = vmul.f32 %v5247, %v5096
      %v5296 = vmul.f32 %v5248, %v5097
      %v5297 = vmul.f32 %v5249, %v5098
      %v5298 = vmul.f32 %v5250, %v5099
      %v5299 = vmul.f32 %v5251, %v5100
      %v5300 = vmul.f32 %v5252, %v5101
      %v5301 = vmul.f32 %v5253, %v5102
      %v5302 = vmul.f32 %v5254, %v5103
      %v5303 = vmul.f32 %v5255, %v5104
      %v5304 = vmul.f32 %v5256, %v5105
      %v5305 = vmul.f32 %v5257, %v5106
      %v5306 = vmul.f32 %v5258, %v5107
      %v5307 = vmul.f32 %v5259, %v5108
      %v5308 = vmul.f32 %v5260, %v5109
      %v5309 = vmul.f32 %v5261, %v5110
      %v5310 = vmul.f32 %v5262, %v5111
      %v5311 = vmul.f32 %v5263, %v5112
      %v5312 = vmul.f32 %v5264, %v5113
      %v5313 = vmul.f32 %v5265, %v5114
      %v5314 = vmul.f32 %v5266, %v5115
      %v5315 = vmul.f32 %v5267, %v5116
      %v5316 = vmul.f32 %v5268, %v5117
      %v5317 = vmul.f32 %v5269, %v5118
      %v5318 = vmul.f32 %v5270, %v5119
      %v5319 = vmul.f32 %v5271, %v5120
      %v5320 = vmul.f32 %v5272, %v5121
      %v5321 = vmul.f32 %v5273, %v5122
      %v5322 = vmul.f32 %v5274, %v5123
      %v5323 = vmul.f32 %v5275, %v5124
      %v5324 = vmul.f32 %v5276, %v5125
      %v5325 = vmul.f32 %v5277, %v5126
      %v5326 = vmul.f32 %v5278, %v5127
      %v5327 = vmul.f32 %v5279, %v5279
      %v5328 = vmul.f32 %v5280, %v5280
      %v5329 = vmul.f32 %v5281, %v5281
      %v5330 = vmul.f32 %v5282, %v5282
      %v5331 = vmul.f32 %v5283, %v5283
      %v5332 = vmul.f32 %v5284, %v5284
      %v5333 = vmul.f32 %v5285, %v5285
      %v5334 = vmul.f32 %v5286, %v5286
      %v5335 = vmul.f32 %v5287, %v5287
      %v5336 = vmul.f32 %v5288, %v5288
      %v5337 = vmul.f32 %v5289, %v5289
      %v5338 = vmul.f32 %v5290, %v5290
      %v5339 = vmul.f32 %v5291, %v5291
      %v5340 = vmul.f32 %v5292, %v5292
      %v5341 = vmul.f32 %v5293, %v5293
      %v5342 = vmul.f32 %v5294, %v5294
      %v5343 = vmul.f32 %v5295, %v5295
      %v5344 = vmul.f32 %v5296, %v5296
      %v5345 = vmul.f32 %v5297, %v5297
      %v5346 = vmul.f32 %v5298, %v5298
      %v5347 = vmul.f32 %v5299, %v5299
      %v5348 = vmul.f32 %v5300, %v5300
      %v5349 = vmul.f32 %v5301, %v5301
      %v5350 = vmul.f32 %v5302, %v5302
      %v5351 = vmul.f32 %v5303, %v5303
      %v5352 = vmul.f32 %v5304, %v5304
      %v5353 = vmul.f32 %v5305, %v5305
      %v5354 = vmul.f32 %v5306, %v5306
      %v5355 = vmul.f32 %v5307, %v5307
      %v5356 = vmul.f32 %v5308, %v5308
      %v5357 = vmul.f32 %v5309, %v5309
      %v5358 = vmul.f32 %v5310, %v5310
      %v5359 = vmul.f32 %v5311, %v5311
      %v5360 = vmul.f32 %v5312, %v5312
      %v5361 = vmul.f32 %v5313, %v5313
      %v5362 = vmul.f32 %v5314, %v5314
      %v5363 = vmul.f32 %v5315, %v5315
      %v5364 = vmul.f32 %v5316, %v5316
      %v5365 = vmul.f32 %v5317, %v5317
      %v5366 = vmul.f32 %v5318, %v5318
      %v5367 = vmul.f32 %v5319, %v5319
      %v5368 = vmul.f32 %v5320, %v5320
      %v5369 = vmul.f32 %v5321, %v5321
      %v5370 = vmul.f32 %v5322, %v5322
      %v5371 = vmul.f32 %v5323, %v5323
      %v5372 = vmul.f32 %v5324, %v5324
      %v5373 = vmul.f32 %v5325, %v5325
      %v5374 = vmul.f32 %v5326, %v5326
      %v5375 = vadd.f32 %v5327, %v5328
      %v5376 = vadd.f32 %v5375, %v5329
      %v5377 = vadd.f32 %v5376, %v5330
      %v5378 = vadd.f32 %v5377, %v5331
      %v5379 = vadd.f32 %v5378, %v5332
      %v5380 = vadd.f32 %v5379, %v5333
      %v5381 = vadd.f32 %v5380, %v5334
      %v5382 = vadd.f32 %v5381, %v5335
      %v5383 = vadd.f32 %v5382, %v5336
      %v5384 = vadd.f32 %v5383, %v5337
      %v5385 = vadd.f32 %v5384, %v5338
      %v5386 = vadd.f32 %v5385, %v5339
      %v5387 = vadd.f32 %v5386, %v5340
      %v5388 = vadd.f32 %v5387, %v5341
      %v5389 = vadd.f32 %v5388, %v5342
      %v5390 = vadd.f32 %v5389, %v5343
      %v5391 = vadd.f32 %v5390, %v5344
      %v5392 = vadd.f32 %v5391, %v5345
      %v5393 = vadd.f32 %v5392, %v5346
      %v5394 = vadd.f32 %v5393, %v5347
      %v5395 = vadd.f32 %v5394, %v5348
      %v5396 = vadd.f32 %v5395, %v5349
      %v5397 = vadd.f32 %v5396, %v5350
      %v5398 = vadd.f32 %v5397, %v5351
      %v5399 = vadd.f32 %v5398, %v5352
      %v5400 = vadd.f32 %v5399, %v5353
      %v5401 = vadd.f32 %v5400, %v5354
      %v5402 = vadd.f32 %v5401, %v5355
      %v5403 = vadd.f32 %v5402, %v5356
      %v5404 = vadd.f32 %v5403, %v5357
      %v5405 = vadd.f32 %v5404, %v5358
      %v5406 = vadd.f32 %v5405, %v5359
      %v5407 = vadd.f32 %v5406, %v5360
      %v5408 = vadd.f32 %v5407, %v5361
      %v5409 = vadd.f32 %v5408, %v5362
      %v5410 = vadd.f32 %v5409, %v5363
      %v5411 = vadd.f32 %v5410, %v5364
      %v5412 = vadd.f32 %v5411, %v5365
      %v5413 = vadd.f32 %v5412, %v5366
      %v5414 = vadd.f32 %v5413, %v5367
      %v5415 = vadd.f32 %v5414, %v5368
      %v5416 = vadd.f32 %v5415, %v5369
      %v5417 = vadd.f32 %v5416, %v5370
      %v5418 = vadd.f32 %v5417, %v5371
      %v5419 = vadd.f32 %v5418, %v5372
      %v5420 = vadd.f32 %v5419, %v5373
      %v5421 = vadd.f32 %v5420, %v5374
      %v5422 = vrot.slane %v5421, 4
      %v5423 = vadd.f32 %v5421, %v5422
      %v5424 = vrot.slane %v5423, 2
      %v5425 = vadd.f32 %v5423, %v5424
      %v5426 = vrot.slane %v5425, 1
      %v5427 = vadd.f32 %v5425, %v5426
      %v5428 = vmul.f32 %v5427, %v5229
      %v5429 = vld [vmem:[%s466] sm:$0x1]
      %v5430 = vadd.f32 %v5428, 1e-05
      %v5431 = vrsqrt.pop %v5430
      %v5432 = vmul.f32 %v5431, %v5430
      %v5433 = vmul.f32 %v5432, %v5431
      %v5434 = vmul.f32 0.5, %v5433
      %v5435 = vsub.f32 1.5, %v5434
      %v5436 = vmul.f32 %v5431, %v5435
      %vm5437 = vweird.f32 %v5430
      %vm5438 = vweird.f32 %v5431
      %vm5439 = vmor %vm5437, %vm5438
      %v5440 = vsel %vm5439, %v5431, %v5436
      %v5441 = vmul.f32 %v5429, %v5440
      %v5443 = vperm.slane %v5441, 0
      %v5445 = vmul.f32 %v5279, %v5443
      %v5446 = vmul.f32 %v5280, %v5443
      %v5447 = vmul.f32 %v5281, %v5443
      %v5448 = vmul.f32 %v5282, %v5443
      %v5449 = vmul.f32 %v5283, %v5443
      %v5450 = vmul.f32 %v5284, %v5443
      %v5451 = vmul.f32 %v5285, %v5443
      %v5452 = vmul.f32 %v5286, %v5443
      %v5453 = vmul.f32 %v5287, %v5443
      %v5454 = vmul.f32 %v5288, %v5443
      %v5455 = vmul.f32 %v5289, %v5443
      %v5456 = vmul.f32 %v5290, %v5443
      %v5457 = vmul.f32 %v5291, %v5443
      %v5458 = vmul.f32 %v5292, %v5443
      %v5459 = vmul.f32 %v5293, %v5443
      %v5460 = vmul.f32 %v5294, %v5443
      %v5461 = vmul.f32 %v5295, %v5443
      %v5462 = vmul.f32 %v5296, %v5443
      %v5463 = vmul.f32 %v5297, %v5443
      %v5464 = vmul.f32 %v5298, %v5443
      %v5465 = vmul.f32 %v5299, %v5443
      %v5466 = vmul.f32 %v5300, %v5443
      %v5467 = vmul.f32 %v5301, %v5443
      %v5468 = vmul.f32 %v5302, %v5443
      %v5469 = vmul.f32 %v5303, %v5443
      %v5470 = vmul.f32 %v5304, %v5443
      %v5471 = vmul.f32 %v5305, %v5443
      %v5472 = vmul.f32 %v5306, %v5443
      %v5473 = vmul.f32 %v5307, %v5443
      %v5474 = vmul.f32 %v5308, %v5443
      %v5475 = vmul.f32 %v5309, %v5443
      %v5476 = vmul.f32 %v5310, %v5443
      %v5477 = vmul.f32 %v5311, %v5443
      %v5478 = vmul.f32 %v5312, %v5443
      %v5479 = vmul.f32 %v5313, %v5443
      %v5480 = vmul.f32 %v5314, %v5443
      %v5481 = vmul.f32 %v5315, %v5443
      %v5482 = vmul.f32 %v5316, %v5443
      %v5483 = vmul.f32 %v5317, %v5443
      %v5484 = vmul.f32 %v5318, %v5443
      %v5485 = vmul.f32 %v5319, %v5443
      %v5486 = vmul.f32 %v5320, %v5443
      %v5487 = vmul.f32 %v5321, %v5443
      %v5488 = vmul.f32 %v5322, %v5443
      %v5489 = vmul.f32 %v5323, %v5443
      %v5490 = vmul.f32 %v5324, %v5443
      %v5491 = vmul.f32 %v5325, %v5443
      %v5492 = vmul.f32 %v5326, %v5443
      %v5493 = vld [vmem:[%s469] sm:$0x1]
      %v5495 = vperm.slane %v5493, 0
      %v5497 = vadd.f32 %v5445, %v5495
      %v5498 = vadd.f32 %v5446, %v5495
      %v5499 = vadd.f32 %v5447, %v5495
      %v5500 = vadd.f32 %v5448, %v5495
      %v5501 = vadd.f32 %v5449, %v5495
      %v5502 = vadd.f32 %v5450, %v5495
      %v5503 = vadd.f32 %v5451, %v5495
      %v5504 = vadd.f32 %v5452, %v5495
      %v5505 = vadd.f32 %v5453, %v5495
      %v5506 = vadd.f32 %v5454, %v5495
      %v5507 = vadd.f32 %v5455, %v5495
      %v5508 = vadd.f32 %v5456, %v5495
      %v5509 = vadd.f32 %v5457, %v5495
      %v5510 = vadd.f32 %v5458, %v5495
      %v5511 = vadd.f32 %v5459, %v5495
      %v5512 = vadd.f32 %v5460, %v5495
      %v5513 = vadd.f32 %v5461, %v5495
      %v5514 = vadd.f32 %v5462, %v5495
      %v5515 = vadd.f32 %v5463, %v5495
      %v5516 = vadd.f32 %v5464, %v5495
      %v5517 = vadd.f32 %v5465, %v5495
      %v5518 = vadd.f32 %v5466, %v5495
      %v5519 = vadd.f32 %v5467, %v5495
      %v5520 = vadd.f32 %v5468, %v5495
      %v5521 = vadd.f32 %v5469, %v5495
      %v5522 = vadd.f32 %v5470, %v5495
      %v5523 = vadd.f32 %v5471, %v5495
      %v5524 = vadd.f32 %v5472, %v5495
      %v5525 = vadd.f32 %v5473, %v5495
      %v5526 = vadd.f32 %v5474, %v5495
      %v5527 = vadd.f32 %v5475, %v5495
      %v5528 = vadd.f32 %v5476, %v5495
      %v5529 = vadd.f32 %v5477, %v5495
      %v5530 = vadd.f32 %v5478, %v5495
      %v5531 = vadd.f32 %v5479, %v5495
      %v5532 = vadd.f32 %v5480, %v5495
      %v5533 = vadd.f32 %v5481, %v5495
      %v5534 = vadd.f32 %v5482, %v5495
      %v5535 = vadd.f32 %v5483, %v5495
      %v5536 = vadd.f32 %v5484, %v5495
      %v5537 = vadd.f32 %v5485, %v5495
      %v5538 = vadd.f32 %v5486, %v5495
      %v5539 = vadd.f32 %v5487, %v5495
      %v5540 = vadd.f32 %v5488, %v5495
      %v5541 = vadd.f32 %v5489, %v5495
      %v5542 = vadd.f32 %v5490, %v5495
      %v5543 = vadd.f32 %v5491, %v5495
      %v5544 = vadd.f32 %v5492, %v5495
      %5545 = vst [vmem:[%s474] sm:$0xff] %v5497
      %5546 = vst [vmem:[%s474 + $0x8] sm:$0xff] %v5498
      %5547 = vst [vmem:[%s474 + $0x10] sm:$0xff] %v5499
      %5548 = vst [vmem:[%s474 + $0x18] sm:$0xff] %v5500
      %5549 = vst [vmem:[%s474 + $0x20] sm:$0xff] %v5501
      %5550 = vst [vmem:[%s474 + $0x28] sm:$0xff] %v5502
      %5551 = vst [vmem:[%s474 + $0x30] sm:$0xff] %v5503
      %5552 = vst [vmem:[%s474 + $0x38] sm:$0xff] %v5504
      %5553 = vst [vmem:[%s474 + $0x40] sm:$0xff] %v5505
      %5554 = vst [vmem:[%s474 + $0x48] sm:$0xff] %v5506
      %5555 = vst [vmem:[%s474 + $0x50] sm:$0xff] %v5507
      %5556 = vst [vmem:[%s474 + $0x58] sm:$0xff] %v5508
      %5557 = vst [vmem:[%s474 + $0x60] sm:$0xff] %v5509
      %5558 = vst [vmem:[%s474 + $0x68] sm:$0xff] %v5510
      %5559 = vst [vmem:[%s474 + $0x70] sm:$0xff] %v5511
      %5560 = vst [vmem:[%s474 + $0x78] sm:$0xff] %v5512
      %5561 = vst [vmem:[%s474 + $0x80] sm:$0xff] %v5513
      %5562 = vst [vmem:[%s474 + $0x88] sm:$0xff] %v5514
      %5563 = vst [vmem:[%s474 + $0x90] sm:$0xff] %v5515
      %5564 = vst [vmem:[%s474 + $0x98] sm:$0xff] %v5516
      %5565 = vst [vmem:[%s474 + $0xa0] sm:$0xff] %v5517
      %5566 = vst [vmem:[%s474 + $0xa8] sm:$0xff] %v5518
      %5567 = vst [vmem:[%s474 + $0xb0] sm:$0xff] %v5519
      %5568 = vst [vmem:[%s474 + $0xb8] sm:$0xff] %v5520
      %5569 = vst [vmem:[%s474 + $0xc0] sm:$0xff] %v5521
      %5570 = vst [vmem:[%s474 + $0xc8] sm:$0xff] %v5522
      %5571 = vst [vmem:[%s474 + $0xd0] sm:$0xff] %v5523
      %5572 = vst [vmem:[%s474 + $0xd8] sm:$0xff] %v5524
      %5573 = vst [vmem:[%s474 + $0xe0] sm:$0xff] %v5525
      %5574 = vst [vmem:[%s474 + $0xe8] sm:$0xff] %v5526
      %5575 = vst [vmem:[%s474 + $0xf0] sm:$0xff] %v5527
      %5576 = vst [vmem:[%s474 + $0xf8] sm:$0xff] %v5528
      %5577 = vst [vmem:[%s474 + $0x100] sm:$0xff] %v5529
      %5578 = vst [vmem:[%s474 + $0x108] sm:$0xff] %v5530
      %5579 = vst [vmem:[%s474 + $0x110] sm:$0xff] %v5531
      %5580 = vst [vmem:[%s474 + $0x118] sm:$0xff] %v5532
      %5581 = vst [vmem:[%s474 + $0x120] sm:$0xff] %v5533
      %5582 = vst [vmem:[%s474 + $0x128] sm:$0xff] %v5534
      %5583 = vst [vmem:[%s474 + $0x130] sm:$0xff] %v5535
      %5584 = vst [vmem:[%s474 + $0x138] sm:$0xff] %v5536
      %5585 = vst [vmem:[%s474 + $0x140] sm:$0xff] %v5537
      %5586 = vst [vmem:[%s474 + $0x148] sm:$0xff] %v5538
      %5587 = vst [vmem:[%s474 + $0x150] sm:$0xff] %v5539
      %5588 = vst [vmem:[%s474 + $0x158] sm:$0xff] %v5540
      %5589 = vst [vmem:[%s474 + $0x160] sm:$0xff] %v5541
      %5590 = vst [vmem:[%s474 + $0x168] sm:$0xff] %v5542
      %5591 = vst [vmem:[%s474 + $0x170] sm:$0xff] %v5543
      %5592 = vst [vmem:[%s474 + $0x178] sm:$0xff] %v5544
      %p5593 = scmp.lt.s32.totalorder %s20, 1
      %s5594 = scalar_select %p5593, %s20, 1
      %s5595 = smul.addr %s5594, 48
      %s5596 = smul.addr %s5595, 8
      %s5597 = scalar_lea.vmem %s9, %s5596
      // Predicated region
      $region57: #{lgnn_layer.1} parent=55 // pred_check
        %p5598 = pneg %p272
      $region58: #{lgnn_layer.1} parent=55 // pred_check_branch
        %5600 = sbr.rel (%p5598) target = $region60
      $region59: #{lgnn_layer.1} parent=55 // pred_region
        _
      $region60: #{lgnn_layer.1} parent=55 // pred_fallthru
        _
    $region56: #{lgnn_layer.1} parent=5 // pred_fallthru
      _
    %p5601 = scmp.le.s32.totalorder 2, %s15
    // Predicated region
    $region61: #{lgnn_layer.1} parent=5 // pred_check
      %p5602 = pneg %p5601
    $region62: #{lgnn_layer.1} parent=5 // pred_check_branch
      %5604 = sbr.rel (%p5602) target = $region64
    $region63: #{lgnn_layer.1} parent=5 // pred_region
      %s5605 = ssub.s32 %s15, 2
      // Predicated region
      $region65: #{lgnn_layer.1} parent=63 // pred_check
        %p5606 = pneg %p278
      $region66: #{lgnn_layer.1} parent=63 // pred_check_branch
        %5608 = sbr.rel (%p5606) target = $region68
      $region67: #{lgnn_layer.1} parent=63 // pred_region
        %p5609 = scmp.lt.s32.totalorder %s21, 1
        %s5610 = scalar_select %p5609, %s21, 1
        %s5611 = smul.addr %s5610, 48
        %s5612 = smul.addr %s5611, 8
        %s5613 = scalar_lea.vmem %s9, %s5612
      $region68: #{lgnn_layer.1} parent=63 // pred_fallthru
        _
    $region64: #{lgnn_layer.1} parent=5 // pred_fallthru
      _
  $region6: #{lgnn_layer.1} parent=0 // loop_footer
    %s19 = sadd.s32 1, %s15
  $region7: #{lgnn_layer.1} parent=0 // loop_footer_branch
    %14 = sbr.rel target = $region3
  $region8: #{lgnn_layer.1} parent=0 // loop_exit
    _

</llo_original>
